<compile_context>
chip_gen: v5e
topology: v5e:2x2
jax: 0.10.0
libtpu: 0.0.40
codegen_flags: <defaults>
</compile_context>

<pallas_src>
import functools

import numpy as np
import jax
import jax.numpy as jnp
from jax.experimental import pallas as pl
from jax.experimental.pallas import tpu as pltpu

# ----- FastKAN constants (RadialBasisFunction defaults; grid is a non-trainable buffer) -----
GRID_MIN, GRID_MAX, NUM_GRIDS = -2.0, 2.0, 8
RBF_GRID = np.linspace(GRID_MIN, GRID_MAX, NUM_GRIDS).astype(np.float32)
DENOM = (GRID_MAX - GRID_MIN) / (NUM_GRIDS - 1)
INV_DENOM = 1.0 / DENOM
LN_EPS = 1e-5
COMPUTE_DTYPE = jnp.bfloat16      # MXU operand dtype (f32 accumulation everywhere)
LANE = 128


# ---------------------------------------------------------------------------
# VMEM budgeting (generation aware, conservative fallback)
# ---------------------------------------------------------------------------
@functools.lru_cache(maxsize=None)
def _vmem_capacity_bytes():
    cap = 64 << 20                         # conservative fallback (v7x per-TC VMEM)
    try:
        info = pltpu.get_tpu_info()
        cap = int(getattr(info, "vmem_capacity_bytes", cap)) or cap
    except Exception:
        pass
    return cap


def _vmem_budget_bytes():
    # v5e/v6e (128 MiB): 28 MiB tile budget; v7x (64 MiB per TC): 16 MiB.
    return max(12 << 20, min(28 << 20, _vmem_capacity_bytes() // 4))


def _vmem_limit_bytes():
    # Explicit scoped-VMEM limit so the 16/32 MiB defaults never bind; stays <= v7x physical.
    return int(min(48 << 20, max(32 << 20, _vmem_capacity_bytes() * 3 // 4)))


# ---------------------------------------------------------------------------
# Kernel 1: FastKANLayer = LayerNorm -> RBF expansion -> SplineLinear (no bias)
#   x_ref (TILE, in_dim); a_ref/b_ref (1, G*in_dim) fold LN affine + grid + 1/denom;
#   w_ref (G*in_dim, out_pad) bf16 (out dim zero-padded to a multiple of 128 lanes).
# ---------------------------------------------------------------------------
def _fastkan_kernel(x_ref, a_ref, b_ref, w_ref, out_ref):
    x = x_ref[...].astype(jnp.float32)
    mu = jnp.mean(x, axis=-1, keepdims=True)
    var = jnp.mean((x - mu) ** 2, axis=-1, keepdims=True)          # biased var (PyTorch LN)
    xn = (x - mu) * jax.lax.rsqrt(var + LN_EPS)
    xt = jnp.concatenate([xn] * NUM_GRIDS, axis=-1)                 # (TILE, G*in) lane-major
    t = (xt * a_ref[...] + b_ref[...]).astype(COMPUTE_DTYPE)        # bf16 EUP exp (v6e/v7x)
    basis = jnp.exp(-(t * t))                                       # (TILE, G*in) bf16
    out_ref[...] = jnp.dot(basis, w_ref[...],
                           preferred_element_type=jnp.float32).astype(out_ref.dtype)


# ---------------------------------------------------------------------------
# Kernel 1b: fused q-projection + gating projection (same input x).
#   LN stats AND the G-fold lane expansion of xn are shared between the two branches.
# ---------------------------------------------------------------------------
def _fastkan_qg_kernel(x_ref, aq_ref, bq_ref, wq_ref, ag_ref, bg_ref, wg_ref,
                       oq_ref, og_ref):
    x = x_ref[...].astype(jnp.float32)
    mu = jnp.mean(x, axis=-1, keepdims=True)
    var = jnp.mean((x - mu) ** 2, axis=-1, keepdims=True)
    xn = (x - mu) * jax.lax.rsqrt(var + LN_EPS)
    xt = jnp.concatenate([xn] * NUM_GRIDS, axis=-1)                 # one shared G-fold concat
    for a_ref, b_ref, w_ref, out_ref in ((aq_ref, bq_ref, wq_ref, oq_ref),
                                         (ag_ref, bg_ref, wg_ref, og_ref)):
        t = (xt * a_ref[...] + b_ref[...]).astype(COMPUTE_DTYPE)
        basis = jnp.exp(-(t * t))
        out_ref[...] = jnp.dot(basis, w_ref[...],
                               preferred_element_type=jnp.float32).astype(out_ref.dtype)


def _row_tile(n, in_dim, out_pads, budget_bytes, max_tile=2048):
    """Rows per grid step under the VMEM budget.

    Resident constant-index blocks (weights, a/b rows) are still double-buffered by
    Pallas, so they are counted TWICE in the fixed term (safe on v5e's small scoped
    default and on v7x's 64 MiB).  Always emits >=2 tiles when splittable so a single
    full-extent block never leaves one v7x TensorCore idle."""
    k = NUM_GRIDS * in_dim
    n_out = len(out_pads)
    fixed = 2 * sum(2 * k * o for o in out_pads)        # bf16 packed weights   (x2 buffers)
    fixed += 2 * n_out * 2 * 4 * k                      # a_row + b_row (f32)   (x2 buffers)
    per_row = 2 * 4 * in_dim                            # f32 x tile, double-buffered
    per_row += sum(2 * 2 * o for o in out_pads)         # bf16 out tiles, double-buffered
    per_row += 4 * (in_dim + k)                         # xn + shared lane expansion (f32)
    per_row += n_out * 4 * k                            # per-branch t + basis (bf16 each)
    tile = (budget_bytes - fixed) // max(per_row, 1)
    tile = max(8, min(int(tile), max_tile, n))
    if tile >= n:
        if n < 16:
            return n                                    # too small to split: full-extent block
        tile = ((n + 1) // 2 + 7) // 8 * 8              # >=2 tiles feed both v7x TCs
    return max(8, (tile // 8) * 8)


def _pad_rows(x2, tile):
    n = x2.shape[0]
    pad = (-n) % tile
    if pad:
        x2 = jnp.concatenate([x2, jnp.zeros((pad, x2.shape[1]), x2.dtype)], axis=0)
    return x2, n


def fastkan_layer(x, p, out_dim):
    """x: (..., in_dim). Returns bf16 (..., out_dim)."""
    in_dim = x.shape[-1]
    lead = x.shape[:-1]
    k, out_pad = p["weight"].shape
    n = int(np.prod(lead)) if lead else 1
    x2 = x.reshape(n, in_dim)
    tile = _row_tile(n, in_dim, (out_pad,), _vmem_budget_bytes())
    x2, n_orig = _pad_rows(x2, tile)
    n_pad = x2.shape[0]

    out = pl.pallas_call(
        _fastkan_kernel,
        out_shape=jax.ShapeDtypeStruct((n_pad, out_pad), COMPUTE_DTYPE),
        grid=(n_pad // tile,),
        in_specs=[
            pl.BlockSpec((tile, in_dim), lambda i: (i, 0)),
            pl.BlockSpec((1, k), lambda i: (0, 0)),
            pl.BlockSpec((1, k), lambda i: (0, 0)),
            pl.BlockSpec((k, out_pad), lambda i: (0, 0)),
        ],
        out_specs=pl.BlockSpec((tile, out_pad), lambda i: (i, 0)),
        compiler_params=pltpu.CompilerParams(
            dimension_semantics=("parallel",),
            vmem_limit_bytes=_vmem_limit_bytes()),
    )(x2, p["a_row"], p["b_row"], p["weight"])
    if n_pad != n_orig or out_pad != out_dim:
        out = out[:n_orig, :out_dim]
    return out.reshape(*lead, out_dim)


def fastkan_qg(x, pq, pg, out_dim):
    """Fused linear_q + linear_g on the same input x; returns (wq_scaled, gate_logits), bf16."""
    in_dim = x.shape[-1]
    lead = x.shape[:-1]
    k, out_pad = pq["weight"].shape
    n = int(np.prod(lead)) if lead else 1
    x2 = x.reshape(n, in_dim)
    tile = _row_tile(n, in_dim, (out_pad, pg["weight"].shape[1]), _vmem_budget_bytes())
    x2, n_orig = _pad_rows(x2, tile)
    n_pad = x2.shape[0]
    const = lambda i: (0, 0)

    wq, g = pl.pallas_call(
        _fastkan_qg_kernel,
        out_shape=(jax.ShapeDtypeStruct((n_pad, out_pad), COMPUTE_DTYPE),
                   jax.ShapeDtypeStruct((n_pad, out_pad), COMPUTE_DTYPE)),
        grid=(n_pad // tile,),
        in_specs=[
            pl.BlockSpec((tile, in_dim), lambda i: (i, 0)),
            pl.BlockSpec((1, k), const),
            pl.BlockSpec((1, k), const),
            pl.BlockSpec((k, out_pad), const),
            pl.BlockSpec((1, k), const),
            pl.BlockSpec((1, k), const),
            pl.BlockSpec((k, out_pad), const),
        ],
        out_specs=(pl.BlockSpec((tile, out_pad), lambda i: (i, 0)),
                   pl.BlockSpec((tile, out_pad), lambda i: (i, 0))),
        compiler_params=pltpu.CompilerParams(
            dimension_semantics=("parallel",),
            vmem_limit_bytes=_vmem_limit_bytes()),
    )(x2, pq["a_row"], pq["b_row"], pq["weight"],
      pg["a_row"], pg["b_row"], pg["weight"])
    if n_pad != n_orig or out_pad != out_dim:
        wq, g = wq[:n_orig, :out_dim], g[:n_orig, :out_dim]
    return wq.reshape(*lead, out_dim), g.reshape(*lead, out_dim)


# ---------------------------------------------------------------------------
# Kernel 2: attention core (bf16 MXU operands, f32 softmax stats) + sigmoid gating
#           + fused output FastKAN projection (LN -> RBF -> SplineLinear) epilogue.
#   Blocks are (Bt, L, H*D): no split-head transposes; per-head results go to a VMEM
#   scratch (no big lane concatenate); output is a lane-dense (Bt, Lq, q_pad) f32 store.
#   wq already carries the 1/sqrt(head_dim) scale (folded into its spline weight).
# ---------------------------------------------------------------------------
def _attn_kernel(num_heads, head_dim,
                 wq_ref, wk_ref, wv_ref, g_ref, ao_ref, bo_ref, wo_ref,
                 out_ref, oacc_ref):
    wq = wq_ref[...]                                   # bf16 (Bt, Lq, H*D)
    wk = wk_ref[...]                                   # bf16 (Bt, Lk, H*D)
    wv = wv_ref[...]                                   # bf16 (Bt, Lk, H*D)
    for h in range(num_heads):                         # static unroll over heads
        sl = slice(h * head_dim, (h + 1) * head_dim)
        s = jnp.einsum('bqd,bkd->bqk', wq[..., sl], wk[..., sl],
                       preferred_element_type=jnp.float32)           # f32 (Bt, Lq, Lk)
        s = s - jnp.max(s, axis=-1, keepdims=True)
        p = jnp.exp(s)
        inv = pl.reciprocal(jnp.sum(p, axis=-1, keepdims=True), approx=True)
        pv = jnp.einsum('bqk,bkd->bqd', p.astype(COMPUTE_DTYPE), wv[..., sl],
                        preferred_element_type=jnp.float32)
        oacc_ref[:, :, sl] = pv * inv                  # per-head result -> VMEM scratch

    o = jax.nn.sigmoid(g_ref[...].astype(jnp.float32)) * oacc_ref[...]   # (Bt, Lq, H*D) f32
    # ---- fused output projection: LayerNorm -> RBF -> SplineLinear ----
    mu = jnp.mean(o, axis=-1, keepdims=True)
    var = jnp.mean((o - mu) ** 2, axis=-1, keepdims=True)
    xn = (o - mu) * jax.lax.rsqrt(var + LN_EPS)
    xt = jnp.concatenate([xn] * NUM_GRIDS, axis=-1)                      # (Bt, Lq, G*H*D)
    t = (xt * ao_ref[...] + bo_ref[...]).astype(COMPUTE_DTYPE)
    basis = jnp.exp(-(t * t))                                            # bf16
    bt, lq, ghd = basis.shape
    out2 = jnp.dot(basis.reshape(bt * lq, ghd), wo_ref[...],
                   preferred_element_type=jnp.float32)                   # (Bt*Lq, q_pad)
    out_ref[...] = out2.reshape(bt, lq, -1).astype(out_ref.dtype)


def _attn_batch_tile(B, Lq, Lk, HD, q_pad, budget_bytes):
    """Batches per attention grid step; keeps >=2 grid steps (v7x has 2 TCs)."""
    ghd = NUM_GRIDS * HD
    fixed = 2 * (2 * ghd * q_pad + 2 * 4 * ghd)          # o-proj weight + a/b rows (x2 buffers)
    per_b = 2 * 2 * (2 * Lq * HD + 2 * Lk * HD)          # bf16 wq/g + wk/wv, double-buffered
    per_b += 2 * 4 * Lq * q_pad                          # f32 out, double-buffered
    per_b += 4 * Lq * HD                                 # o_acc scratch
    per_b += 2 * 4 * Lq * Lk                             # per-head f32 scores (~2 live)
    per_b += 8 * Lq * ghd                                # o-proj lane expansion + basis
    bt_max = max(1, (budget_bytes - fixed) // max(per_b, 1))
    if B <= 1:
        return 1
    best = 1
    for cand in range(1, B + 1):
        if B % cand == 0 and cand <= bt_max and B // cand >= 2:
            best = cand
    return best


def attention_fused(wq, wk, wv, gate, p_o, num_heads, head_dim, q_dim):
    B, Lq, HD = wq.shape
    Lk = wk.shape[1]
    k_o, q_pad = p_o["weight"].shape
    Bt = _attn_batch_tile(B, Lq, Lk, HD, q_pad, _vmem_budget_bytes())
    kern = functools.partial(_attn_kernel, num_heads, head_dim)
    const = lambda b: (0, 0)
    out = pl.pallas_call(
        kern,
        out_shape=jax.ShapeDtypeStruct((B, Lq, q_pad), jnp.float32),
        grid=(B // Bt,),
        in_specs=[pl.BlockSpec((Bt, Lq, HD), lambda b: (b, 0, 0)),
                  pl.BlockSpec((Bt, Lk, HD), lambda b: (b, 0, 0)),
                  pl.BlockSpec((Bt, Lk, HD), lambda b: (b, 0, 0)),
                  pl.BlockSpec((Bt, Lq, HD), lambda b: (b, 0, 0)),
                  pl.BlockSpec((1, k_o), const),
                  pl.BlockSpec((1, k_o), const),
                  pl.BlockSpec((k_o, q_pad), const)],
        out_specs=pl.BlockSpec((Bt, Lq, q_pad), lambda b: (b, 0, 0)),
        scratch_shapes=[pltpu.VMEM((Bt, Lq, HD), jnp.float32)],
        compiler_params=pltpu.CompilerParams(
            dimension_semantics=("parallel",),
            vmem_limit_bytes=_vmem_limit_bytes()),
    )(wq, wk, wv, gate, p_o["a_row"], p_o["b_row"], p_o["weight"])
    if q_pad != q_dim:
        out = out[..., :q_dim]
    return out


# ---------------------------------------------------------------------------
# Parameters: raw (PyTorch layout, used by the reference) + one-time packing for kernels
# ---------------------------------------------------------------------------
def init_fastkan_params(key, in_dim, out_dim):
    # LayerNorm default init (ones / zeros); SplineLinear ~ trunc_normal(std=0.1)
    w = jax.random.normal(key, (out_dim, in_dim * NUM_GRIDS), jnp.float32) * 0.1
    return dict(gamma=jnp.ones((in_dim,), jnp.float32),
                beta=jnp.zeros((in_dim,), jnp.float32),
                weight=w)


def pack_fastkan_params(raw, scale=1.0):
    """One-time repack:
      * PyTorch (out, in*G) weight -> (G*in, out_pad) MXU layout, bf16, out dim zero-padded
        to a multiple of 128 lanes, optional folded output scale (head_dim**-0.5 for q).
      * LN affine + RBF grid + 1/denom folded into per-lane a_row/b_row:
          t[lane g*in+i] = xn_i * a_row + b_row,   basis = exp(-t^2)."""
    out_dim, kin = raw["weight"].shape
    in_dim = kin // NUM_GRIDS
    w3 = raw["weight"].reshape(out_dim, in_dim, NUM_GRIDS)          # w3[o, i, g]
    w = jnp.transpose(w3, (2, 1, 0)).reshape(NUM_GRIDS * in_dim, out_dim) * scale
    out_pad = ((out_dim + LANE - 1) // LANE) * LANE
    if out_pad != out_dim:
        w = jnp.pad(w, ((0, 0), (0, out_pad - out_dim)))
    grid = jnp.asarray(RBF_GRID, jnp.float32)
    a_row = (jnp.tile(raw["gamma"], NUM_GRIDS) * INV_DENOM).reshape(1, -1).astype(jnp.float32)
    b_row = ((jnp.tile(raw["beta"], NUM_GRIDS) - jnp.repeat(grid, in_dim))
             * INV_DENOM).reshape(1, -1).astype(jnp.float32)
    return dict(a_row=a_row, b_row=b_row, weight=w.astype(COMPUTE_DTYPE))


# ---------------------------------------------------------------------------
# Full module forward
# ---------------------------------------------------------------------------
def attention_with_fastkan(packed, q, k, v, num_heads, head_dim):
    total_dim = num_heads * head_dim
    wq, g = fastkan_qg(q, packed["q"], packed["g"], total_dim)   # fused q-proj + gate
    wk = fastkan_layer(k, packed["k"], total_dim)
    wv = fastkan_layer(v, packed["v"], total_dim)
    # attention + gating + output FastKAN projection fused in one kernel
    return attention_fused(wq, wk, wv, g, packed["o"], num_heads, head_dim, q.shape[-1])


# ---------------------------------------------------------------------------
# Pure-JAX reference (mirrors the PyTorch broadcasting exactly, f32 throughout)
# ---------------------------------------------------------------------------
def _fastkan_ref(x, gamma, beta, weight):
    mu = x.mean(-1, keepdims=True)
    var = ((x - mu) ** 2).mean(-1, keepdims=True)
    y = (x - mu) / jnp.sqrt(var + LN_EPS) * gamma + beta
    grid = jnp.asarray(RBF_GRID, jnp.float32)
    basis = jnp.exp(-(((y[..., None] - grid) / DENOM) ** 2))
    flat = basis.reshape(*basis.shape[:-2], -1)
    return flat @ weight.T


def _attention_ref(params, q, k, v, num_heads, head_dim):
    scale = head_dim ** (-0.5)
    wq = _fastkan_ref(q, **params["q"]).reshape(*q.shape[:-1], 1, num_heads, head_dim) * scale
    wk = _fastkan_ref(k, **params["k"]).reshape(*k.shape[:-2], 1, k.shape[-2], num_heads, head_dim)
    att = jax.nn.softmax((wq * wk).sum(-1), axis=-2)
    wv = _fastkan_ref(v, **params["v"]).reshape(*v.shape[:-2], 1, v.shape[-2], num_heads, head_dim)
    o = (att[..., None] * wv).sum(-3)
    o = o.reshape(*o.shape[:-2], -1)
    g = _fastkan_ref(q, **params["g"])
    o = jax.nn.sigmoid(g) * o
    return _fastkan_ref(o, **params["o"])


if __name__ == "__main__":
    key = jax.random.PRNGKey(0)
    B, Lq, Lk = 2, 8, 8
    q_dim, k_dim, v_dim = 16, 16, 16
    head_dim, num_heads = 8, 4
    total_dim = head_dim * num_heads
    attn_scale = head_dim ** (-0.5)

    ks = jax.random.split(key, 8)
    raw = {
        "q": init_fastkan_params(ks[0], q_dim, total_dim),
        "k": init_fastkan_params(ks[1], k_dim, total_dim),
        "v": init_fastkan_params(ks[2], v_dim, total_dim),
        "o": init_fastkan_params(ks[3], total_dim, q_dim),
        "g": init_fastkan_params(ks[4], q_dim, total_dim),
    }
    # one-time packing (1/sqrt(head_dim) folded into the q spline weight)
    packed = {name: pack_fastkan_params(p, scale=(attn_scale if name == "q" else 1.0))
              for name, p in raw.items()}

    q = jax.random.normal(ks[5], (B, Lq, q_dim), jnp.float32)
    k = jax.random.normal(ks[6], (B, Lk, k_dim), jnp.float32)
    v = jax.random.normal(ks[7], (B, Lk, v_dim), jnp.float32)

    fwd = jax.jit(functools.partial(attention_with_fastkan,
                                    num_heads=num_heads, head_dim=head_dim))
    out = jax.block_until_ready(fwd(packed, q, k, v))

    ref = _attention_ref(raw, q, k, v, num_heads, head_dim)
    assert out.shape == (B, Lq, q_dim), out.shape
    # bf16 MXU operands / intermediates / basis + approx reciprocal vs the f32 reference:
    # check relative Frobenius error (robust to per-element bf16 rounding outliers).
    rel = float(jnp.linalg.norm(out.astype(jnp.float32) - ref) /
                (jnp.linalg.norm(ref) + 1e-12))
    assert rel < 1e-1, f"relative error {rel}"

    print("KERNEL_OK")
</pallas_src>

<mosaic_0001>
module attributes {stable_mosaic.version = 11 : i64} {
  func.func @_fastkan_kernel(%arg0: i32, %arg1: memref<8x16xf32, #tpu.memory_space<vmem>>, %arg2: memref<1x128xf32, #tpu.memory_space<vmem>>, %arg3: memref<1x128xf32, #tpu.memory_space<vmem>>, %arg4: memref<128x128xbf16, #tpu.memory_space<vmem>>, %arg5: memref<8x128xbf16, #tpu.memory_space<vmem>>) attributes {dimension_semantics = [#tpu.dimension_semantics<parallel>], iteration_bounds = array<i64: 2>, scalar_prefetch = 0 : i64, scratch_operands = 0 : i64, tpu.core_type = #tpu.core_type<tc>, window_params = [{transform_indices = @transform_0, window_bounds = array<i64: 8, 16>}, {pipeline_mode = #tpu.pipeline_mode<synchronous>, transform_indices = @transform_1, window_bounds = array<i64: 1, 128>}, {pipeline_mode = #tpu.pipeline_mode<synchronous>, transform_indices = @transform_2, window_bounds = array<i64: 1, 128>}, {pipeline_mode = #tpu.pipeline_mode<synchronous>, transform_indices = @transform_3, window_bounds = array<i64: 128, 128>}, {transform_indices = @transform_4, window_bounds = array<i64: 8, 128>}]} {
    %c0 = arith.constant 0 : index
    %c0_0 = arith.constant 0 : index
    %0 = vector.load %arg1[%c0, %c0_0] : memref<8x16xf32, #tpu.memory_space<vmem>>, vector<8x16xf32>
    %cst = arith.constant dense<0.000000e+00> : vector<8xf32>
    %1 = vector.multi_reduction <add>, %0, %cst [1] : vector<8x16xf32> to vector<8xf32>
    %2 = vector.shape_cast %1 : vector<8xf32> to vector<8x1xf32>
    %cst_1 = arith.constant 1.600000e+01 : f32
    %3 = vector.broadcast %cst_1 : f32 to vector<8x1xf32>
    %4 = arith.divf %2, %3 : vector<8x1xf32>
    %5 = vector.broadcast %4 : vector<8x1xf32> to vector<8x16xf32>
    %6 = arith.subf %0, %5 : vector<8x16xf32>
    %7 = arith.mulf %6, %6 : vector<8x16xf32>
    %cst_2 = arith.constant dense<0.000000e+00> : vector<8xf32>
    %8 = vector.multi_reduction <add>, %7, %cst_2 [1] : vector<8x16xf32> to vector<8xf32>
    %9 = vector.shape_cast %8 : vector<8xf32> to vector<8x1xf32>
    %cst_3 = arith.constant 1.600000e+01 : f32
    %10 = vector.broadcast %cst_3 : f32 to vector<8x1xf32>
    %11 = arith.divf %9, %10 : vector<8x1xf32>
    %12 = vector.broadcast %4 : vector<8x1xf32> to vector<8x16xf32>
    %13 = arith.subf %0, %12 : vector<8x16xf32>
    %cst_4 = arith.constant 9.99999974E-6 : f32
    %14 = vector.broadcast %cst_4 : f32 to vector<8x1xf32>
    %15 = arith.addf %11, %14 : vector<8x1xf32>
    %16 = math.rsqrt %15 : vector<8x1xf32>
    %17 = vector.broadcast %16 : vector<8x1xf32> to vector<8x16xf32>
    %18 = arith.mulf %13, %17 : vector<8x16xf32>
    %19 = tpu.concatenate %18, %18, %18, %18, %18, %18, %18, %18 in 1 : vector<8x16xf32>, vector<8x16xf32>, vector<8x16xf32>, vector<8x16xf32>, vector<8x16xf32>, vector<8x16xf32>, vector<8x16xf32>, vector<8x16xf32> -> vector<8x128xf32>
    %c0_5 = arith.constant 0 : index
    %c0_6 = arith.constant 0 : index
    %20 = vector.load %arg2[%c0_5, %c0_6] : memref<1x128xf32, #tpu.memory_space<vmem>>, vector<1x128xf32>
    %21 = vector.broadcast %20 : vector<1x128xf32> to vector<8x128xf32>
    %22 = arith.mulf %19, %21 : vector<8x128xf32>
    %c0_7 = arith.constant 0 : index
    %c0_8 = arith.constant 0 : index
    %23 = vector.load %arg3[%c0_7, %c0_8] : memref<1x128xf32, #tpu.memory_space<vmem>>, vector<1x128xf32>
    %24 = vector.broadcast %23 : vector<1x128xf32> to vector<8x128xf32>
    %25 = arith.addf %22, %24 : vector<8x128xf32>
    %26 = arith.truncf %25 : vector<8x128xf32> to vector<8x128xbf16>
    %27 = arith.mulf %26, %26 : vector<8x128xbf16>
    %cst_9 = arith.constant 0.000000e+00 : bf16
    %28 = vector.broadcast %cst_9 : bf16 to vector<8x128xbf16>
    %29 = arith.subf %28, %27 : vector<8x128xbf16>
    %30 = math.exp %29 : vector<8x128xbf16>
    %c0_10 = arith.constant 0 : index
    %c0_11 = arith.constant 0 : index
    %31 = vector.load %arg4[%c0_10, %c0_11] : memref<128x128xbf16, #tpu.memory_space<vmem>>, vector<128x128xbf16>
    %cst_12 = arith.constant dense<0.000000e+00> : vector<8x128xf32>
    %32 = tpu.matmul %30, %31, %cst_12 {dimension_numbers = #tpu.dot_dimension_numbers<[1], [0], [0], [1], [0, 0, 1, 1], [], []>} : vector<8x128xbf16>, vector<128x128xbf16>, vector<8x128xf32> -> vector<8x128xf32>
    %33 = arith.truncf %32 : vector<8x128xf32> to vector<8x128xbf16>
    %c0_13 = arith.constant 0 : index
    %c0_14 = arith.constant 0 : index
    %34 = vector.load %arg5[%c0_13, %c0_14] : memref<8x128xbf16, #tpu.memory_space<vmem>>, vector<8x128xbf16>
    tpu.vector_store %arg5[%c0_13, %c0_14], %33 {strides = array<i32>} : memref<8x128xbf16, #tpu.memory_space<vmem>>, vector<8x128xbf16>,
    return
  }
  func.func @transform_0(%arg0: i32) -> (i32, i32) {
    %c0_i32 = arith.constant 0 : i32
    %c0_i32_0 = arith.constant 0 : i32
    return %arg0, %c0_i32 : i32, i32
  }
  func.func @transform_1(%arg0: i32) -> (i32, i32) {
    %c0_i32 = arith.constant 0 : i32
    %c0_i32_0 = arith.constant 0 : i32
    %c0_i32_1 = arith.constant 0 : i32
    return %c0_i32, %c0_i32_0 : i32, i32
  }
  func.func @transform_2(%arg0: i32) -> (i32, i32) {
    %c0_i32 = arith.constant 0 : i32
    %c0_i32_0 = arith.constant 0 : i32
    %c0_i32_1 = arith.constant 0 : i32
    return %c0_i32, %c0_i32_0 : i32, i32
  }
  func.func @transform_3(%arg0: i32) -> (i32, i32) {
    %c0_i32 = arith.constant 0 : i32
    %c0_i32_0 = arith.constant 0 : i32
    %c0_i32_1 = arith.constant 0 : i32
    return %c0_i32, %c0_i32_0 : i32, i32
  }
  func.func @transform_4(%arg0: i32) -> (i32, i32) {
    %c0_i32 = arith.constant 0 : i32
    %c0_i32_0 = arith.constant 0 : i32
    return %arg0, %c0_i32 : i32, i32
  }
}

module attributes {stable_mosaic.version = 11 : i64} {
  func.func @_fastkan_kernel(%arg0: i32, %arg1: memref<8x16xf32, #tpu.memory_space<vmem>>, %arg2: memref<1x128xf32, #tpu.memory_space<vmem>>, %arg3: memref<1x128xf32, #tpu.memory_space<vmem>>, %arg4: memref<128x128xbf16, #tpu.memory_space<vmem>>, %arg5: memref<8x128xbf16, #tpu.memory_space<vmem>>) attributes {dimension_semantics = [#tpu.dimension_semantics<parallel>], iteration_bounds = array<i64: 2>, scalar_prefetch = 0 : i64, scratch_operands = 0 : i64, tpu.core_type = #tpu.core_type<tc>, window_params = [{transform_indices = @transform_0, window_bounds = array<i64: 8, 16>}, {pipeline_mode = #tpu.pipeline_mode<synchronous>, transform_indices = @transform_1, window_bounds = array<i64: 1, 128>}, {pipeline_mode = #tpu.pipeline_mode<synchronous>, transform_indices = @transform_2, window_bounds = array<i64: 1, 128>}, {pipeline_mode = #tpu.pipeline_mode<synchronous>, transform_indices = @transform_3, window_bounds = array<i64: 128, 128>}, {transform_indices = @transform_4, window_bounds = array<i64: 8, 128>}]} {
    %c0 = arith.constant 0 : index
    %c0_0 = arith.constant 0 : index
    %0 = vector.load %arg1[%c0, %c0_0] : memref<8x16xf32, #tpu.memory_space<vmem>>, vector<8x16xf32>
    %cst = arith.constant dense<0.000000e+00> : vector<8xf32>
    %1 = vector.multi_reduction <add>, %0, %cst [1] : vector<8x16xf32> to vector<8xf32>
    %2 = vector.shape_cast %1 : vector<8xf32> to vector<8x1xf32>
    %cst_1 = arith.constant 1.600000e+01 : f32
    %3 = vector.broadcast %cst_1 : f32 to vector<8x1xf32>
    %4 = arith.divf %2, %3 : vector<8x1xf32>
    %5 = vector.broadcast %4 : vector<8x1xf32> to vector<8x16xf32>
    %6 = arith.subf %0, %5 : vector<8x16xf32>
    %7 = arith.mulf %6, %6 : vector<8x16xf32>
    %cst_2 = arith.constant dense<0.000000e+00> : vector<8xf32>
    %8 = vector.multi_reduction <add>, %7, %cst_2 [1] : vector<8x16xf32> to vector<8xf32>
    %9 = vector.shape_cast %8 : vector<8xf32> to vector<8x1xf32>
    %cst_3 = arith.constant 1.600000e+01 : f32
    %10 = vector.broadcast %cst_3 : f32 to vector<8x1xf32>
    %11 = arith.divf %9, %10 : vector<8x1xf32>
    %12 = vector.broadcast %4 : vector<8x1xf32> to vector<8x16xf32>
    %13 = arith.subf %0, %12 : vector<8x16xf32>
    %cst_4 = arith.constant 9.99999974E-6 : f32
    %14 = vector.broadcast %cst_4 : f32 to vector<8x1xf32>
    %15 = arith.addf %11, %14 : vector<8x1xf32>
    %16 = math.rsqrt %15 : vector<8x1xf32>
    %17 = vector.broadcast %16 : vector<8x1xf32> to vector<8x16xf32>
    %18 = arith.mulf %13, %17 : vector<8x16xf32>
    %19 = tpu.concatenate %18, %18, %18, %18, %18, %18, %18, %18 in 1 : vector<8x16xf32>, vector<8x16xf32>, vector<8x16xf32>, vector<8x16xf32>, vector<8x16xf32>, vector<8x16xf32>, vector<8x16xf32>, vector<8x16xf32> -> vector<8x128xf32>
    %c0_5 = arith.constant 0 : index
    %c0_6 = arith.constant 0 : index
    %20 = vector.load %arg2[%c0_5, %c0_6] : memref<1x128xf32, #tpu.memory_space<vmem>>, vector<1x128xf32>
    %21 = vector.broadcast %20 : vector<1x128xf32> to vector<8x128xf32>
    %22 = arith.mulf %19, %21 : vector<8x128xf32>
    %c0_7 = arith.constant 0 : index
    %c0_8 = arith.constant 0 : index
    %23 = vector.load %arg3[%c0_7, %c0_8] : memref<1x128xf32, #tpu.memory_space<vmem>>, vector<1x128xf32>
    %24 = vector.broadcast %23 : vector<1x128xf32> to vector<8x128xf32>
    %25 = arith.addf %22, %24 : vector<8x128xf32>
    %26 = arith.truncf %25 : vector<8x128xf32> to vector<8x128xbf16>
    %27 = arith.mulf %26, %26 : vector<8x128xbf16>
    %cst_9 = arith.constant 0.000000e+00 : bf16
    %28 = vector.broadcast %cst_9 : bf16 to vector<8x128xbf16>
    %29 = arith.subf %28, %27 : vector<8x128xbf16>
    %30 = math.exp %29 : vector<8x128xbf16>
    %c0_10 = arith.constant 0 : index
    %c0_11 = arith.constant 0 : index
    %31 = vector.load %arg4[%c0_10, %c0_11] : memref<128x128xbf16, #tpu.memory_space<vmem>>, vector<128x128xbf16>
    %cst_12 = arith.constant dense<0.000000e+00> : vector<8x128xf32>
    %32 = tpu.matmul %30, %31, %cst_12 {dimension_numbers = #tpu.dot_dimension_numbers<[1], [0], [0], [1], [0, 0, 1, 1], [], []>} : vector<8x128xbf16>, vector<128x128xbf16>, vector<8x128xf32> -> vector<8x128xf32>
    %33 = arith.truncf %32 : vector<8x128xf32> to vector<8x128xbf16>
    %c0_13 = arith.constant 0 : index
    %c0_14 = arith.constant 0 : index
    %34 = vector.load %arg5[%c0_13, %c0_14] : memref<8x128xbf16, #tpu.memory_space<vmem>>, vector<8x128xbf16>
    tpu.vector_store %arg5[%c0_13, %c0_14], %33 {strides = array<i32>} : memref<8x128xbf16, #tpu.memory_space<vmem>>, vector<8x128xbf16>,
    return
  }
  func.func @transform_0(%arg0: i32) -> (i32, i32) {
    %c0_i32 = arith.constant 0 : i32
    %c0_i32_0 = arith.constant 0 : i32
    return %arg0, %c0_i32 : i32, i32
  }
  func.func @transform_1(%arg0: i32) -> (i32, i32) {
    %c0_i32 = arith.constant 0 : i32
    %c0_i32_0 = arith.constant 0 : i32
    %c0_i32_1 = arith.constant 0 : i32
    return %c0_i32, %c0_i32_0 : i32, i32
  }
  func.func @transform_2(%arg0: i32) -> (i32, i32) {
    %c0_i32 = arith.constant 0 : i32
    %c0_i32_0 = arith.constant 0 : i32
    %c0_i32_1 = arith.constant 0 : i32
    return %c0_i32, %c0_i32_0 : i32, i32
  }
  func.func @transform_3(%arg0: i32) -> (i32, i32) {
    %c0_i32 = arith.constant 0 : i32
    %c0_i32_0 = arith.constant 0 : i32
    %c0_i32_1 = arith.constant 0 : i32
    return %c0_i32, %c0_i32_0 : i32, i32
  }
  func.func @transform_4(%arg0: i32) -> (i32, i32) {
    %c0_i32 = arith.constant 0 : i32
    %c0_i32_0 = arith.constant 0 : i32
    return %arg0, %c0_i32 : i32, i32
  }
}

module attributes {stable_mosaic.version = 11 : i64} {
  func.func @_fastkan_qg_kernel(%arg0: i32, %arg1: memref<8x16xf32, #tpu.memory_space<vmem>>, %arg2: memref<1x128xf32, #tpu.memory_space<vmem>>, %arg3: memref<1x128xf32, #tpu.memory_space<vmem>>, %arg4: memref<128x128xbf16, #tpu.memory_space<vmem>>, %arg5: memref<1x128xf32, #tpu.memory_space<vmem>>, %arg6: memref<1x128xf32, #tpu.memory_space<vmem>>, %arg7: memref<128x128xbf16, #tpu.memory_space<vmem>>, %arg8: memref<8x128xbf16, #tpu.memory_space<vmem>>, %arg9: memref<8x128xbf16, #tpu.memory_space<vmem>>) attributes {dimension_semantics = [#tpu.dimension_semantics<parallel>], iteration_bounds = array<i64: 2>, scalar_prefetch = 0 : i64, scratch_operands = 0 : i64, tpu.core_type = #tpu.core_type<tc>, window_params = [{transform_indices = @transform_0, window_bounds = array<i64: 8, 16>}, {pipeline_mode = #tpu.pipeline_mode<synchronous>, transform_indices = @transform_1, window_bounds = array<i64: 1, 128>}, {pipeline_mode = #tpu.pipeline_mode<synchronous>, transform_indices = @transform_2, window_bounds = array<i64: 1, 128>}, {pipeline_mode = #tpu.pipeline_mode<synchronous>, transform_indices = @transform_3, window_bounds = array<i64: 128, 128>}, {pipeline_mode = #tpu.pipeline_mode<synchronous>, transform_indices = @transform_4, window_bounds = array<i64: 1, 128>}, {pipeline_mode = #tpu.pipeline_mode<synchronous>, transform_indices = @transform_5, window_bounds = array<i64: 1, 128>}, {pipeline_mode = #tpu.pipeline_mode<synchronous>, transform_indices = @transform_6, window_bounds = array<i64: 128, 128>}, {transform_indices = @transform_7, window_bounds = array<i64: 8, 128>}, {transform_indices = @transform_8, window_bounds = array<i64: 8, 128>}]} {
    %c0 = arith.constant 0 : index
    %c0_0 = arith.constant 0 : index
    %0 = vector.load %arg1[%c0, %c0_0] : memref<8x16xf32, #tpu.memory_space<vmem>>, vector<8x16xf32>
    %cst = arith.constant dense<0.000000e+00> : vector<8xf32>
    %1 = vector.multi_reduction <add>, %0, %cst [1] : vector<8x16xf32> to vector<8xf32>
    %2 = vector.shape_cast %1 : vector<8xf32> to vector<8x1xf32>
    %cst_1 = arith.constant 1.600000e+01 : f32
    %3 = vector.broadcast %cst_1 : f32 to vector<8x1xf32>
    %4 = arith.divf %2, %3 : vector<8x1xf32>
    %5 = vector.broadcast %4 : vector<8x1xf32> to vector<8x16xf32>
    %6 = arith.subf %0, %5 : vector<8x16xf32>
    %7 = arith.mulf %6, %6 : vector<8x16xf32>
    %cst_2 = arith.constant dense<0.000000e+00> : vector<8xf32>
    %8 = vector.multi_reduction <add>, %7, %cst_2 [1] : vector<8x16xf32> to vector<8xf32>
    %9 = vector.shape_cast %8 : vector<8xf32> to vector<8x1xf32>
    %cst_3 = arith.constant 1.600000e+01 : f32
    %10 = vector.broadcast %cst_3 : f32 to vector<8x1xf32>
    %11 = arith.divf %9, %10 : vector<8x1xf32>
    %12 = vector.broadcast %4 : vector<8x1xf32> to vector<8x16xf32>
    %13 = arith.subf %0, %12 : vector<8x16xf32>
    %cst_4 = arith.constant 9.99999974E-6 : f32
    %14 = vector.broadcast %cst_4 : f32 to vector<8x1xf32>
    %15 = arith.addf %11, %14 : vector<8x1xf32>
    %16 = math.rsqrt %15 : vector<8x1xf32>
    %17 = vector.broadcast %16 : vector<8x1xf32> to vector<8x16xf32>
    %18 = arith.mulf %13, %17 : vector<8x16xf32>
    %19 = tpu.concatenate %18, %18, %18, %18, %18, %18, %18, %18 in 1 : vector<8x16xf32>, vector<8x16xf32>, vector<8x16xf32>, vector<8x16xf32>, vector<8x16xf32>, vector<8x16xf32>, vector<8x16xf32>, vector<8x16xf32> -> vector<8x128xf32>
    %c0_5 = arith.constant 0 : index
    %c0_6 = arith.constant 0 : index
    %20 = vector.load %arg2[%c0_5, %c0_6] : memref<1x128xf32, #tpu.memory_space<vmem>>, vector<1x128xf32>
    %21 = vector.broadcast %20 : vector<1x128xf32> to vector<8x128xf32>
    %22 = arith.mulf %19, %21 : vector<8x128xf32>
    %c0_7 = arith.constant 0 : index
    %c0_8 = arith.constant 0 : index
    %23 = vector.load %arg3[%c0_7, %c0_8] : memref<1x128xf32, #tpu.memory_space<vmem>>, vector<1x128xf32>
    %24 = vector.broadcast %23 : vector<1x128xf32> to vector<8x128xf32>
    %25 = arith.addf %22, %24 : vector<8x128xf32>
    %26 = arith.truncf %25 : vector<8x128xf32> to vector<8x128xbf16>
    %27 = arith.mulf %26, %26 : vector<8x128xbf16>
    %cst_9 = arith.constant 0.000000e+00 : bf16
    %28 = vector.broadcast %cst_9 : bf16 to vector<8x128xbf16>
    %29 = arith.subf %28, %27 : vector<8x128xbf16>
    %30 = math.exp %29 : vector<8x128xbf16>
    %c0_10 = arith.constant 0 : index
    %c0_11 = arith.constant 0 : index
    %31 = vector.load %arg4[%c0_10, %c0_11] : memref<128x128xbf16, #tpu.memory_space<vmem>>, vector<128x128xbf16>
    %cst_12 = arith.constant dense<0.000000e+00> : vector<8x128xf32>
    %32 = tpu.matmul %30, %31, %cst_12 {dimension_numbers = #tpu.dot_dimension_numbers<[1], [0], [0], [1], [0, 0, 1, 1], [], []>} : vector<8x128xbf16>, vector<128x128xbf16>, vector<8x128xf32> -> vector<8x128xf32>
    %33 = arith.truncf %32 : vector<8x128xf32> to vector<8x128xbf16>
    %c0_13 = arith.constant 0 : index
    %c0_14 = arith.constant 0 : index
    %34 = vector.load %arg8[%c0_13, %c0_14] : memref<8x128xbf16, #tpu.memory_space<vmem>>, vector<8x128xbf16>
    tpu.vector_store %arg8[%c0_13, %c0_14], %33 {strides = array<i32>} : memref<8x128xbf16, #tpu.memory_space<vmem>>, vector<8x128xbf16>,
    %c0_15 = arith.constant 0 : index
    %c0_16 = arith.constant 0 : index
    %35 = vector.load %arg5[%c0_15, %c0_16] : memref<1x128xf32, #tpu.memory_space<vmem>>, vector<1x128xf32>
    %36 = vector.broadcast %35 : vector<1x128xf32> to vector<8x128xf32>
    %37 = arith.mulf %19, %36 : vector<8x128xf32>
    %c0_17 = arith.constant 0 : index
    %c0_18 = arith.constant 0 : index
    %38 = vector.load %arg6[%c0_17, %c0_18] : memref<1x128xf32, #tpu.memory_space<vmem>>, vector<1x128xf32>
    %39 = vector.broadcast %38 : vector<1x128xf32> to vector<8x128xf32>
    %40 = arith.addf %37, %39 : vector<8x128xf32>
    %41 = arith.truncf %40 : vector<8x128xf32> to vector<8x128xbf16>
    %42 = arith.mulf %41, %41 : vector<8x128xbf16>
    %cst_19 = arith.constant 0.000000e+00 : bf16
    %43 = vector.broadcast %cst_19 : bf16 to vector<8x128xbf16>
    %44 = arith.subf %43, %42 : vector<8x128xbf16>
    %45 = math.exp %44 : vector<8x128xbf16>
    %c0_20 = arith.constant 0 : index
    %c0_21 = arith.constant 0 : index
    %46 = vector.load %arg7[%c0_20, %c0_21] : memref<128x128xbf16, #tpu.memory_space<vmem>>, vector<128x128xbf16>
    %cst_22 = arith.constant dense<0.000000e+00> : vector<8x128xf32>
    %47 = tpu.matmul %45, %46, %cst_22 {dimension_numbers = #tpu.dot_dimension_numbers<[1], [0], [0], [1], [0, 0, 1, 1], [], []>} : vector<8x128xbf16>, vector<128x128xbf16>, vector<8x128xf32> -> vector<8x128xf32>
    %48 = arith.truncf %47 : vector<8x128xf32> to vector<8x128xbf16>
    %c0_23 = arith.constant 0 : index
    %c0_24 = arith.constant 0 : index
    %49 = vector.load %arg9[%c0_23, %c0_24] : memref<8x128xbf16, #tpu.memory_space<vmem>>, vector<8x128xbf16>
    tpu.vector_store %arg9[%c0_23, %c0_24], %48 {strides = array<i32>} : memref<8x128xbf16, #tpu.memory_space<vmem>>, vector<8x128xbf16>,
    return
  }
  func.func @transform_0(%arg0: i32) -> (i32, i32) {
    %c0_i32 = arith.constant 0 : i32
    %c0_i32_0 = arith.constant 0 : i32
    return %arg0, %c0_i32 : i32, i32
  }
  func.func @transform_1(%arg0: i32) -> (i32, i32) {
    %c0_i32 = arith.constant 0 : i32
    %c0_i32_0 = arith.constant 0 : i32
    %c0_i32_1 = arith.constant 0 : i32
    return %c0_i32, %c0_i32_0 : i32, i32
  }
  func.func @transform_2(%arg0: i32) -> (i32, i32) {
    %c0_i32 = arith.constant 0 : i32
    %c0_i32_0 = arith.constant 0 : i32
    %c0_i32_1 = arith.constant 0 : i32
    return %c0_i32, %c0_i32_0 : i32, i32
  }
  func.func @transform_3(%arg0: i32) -> (i32, i32) {
    %c0_i32 = arith.constant 0 : i32
    %c0_i32_0 = arith.constant 0 : i32
    %c0_i32_1 = arith.constant 0 : i32
    return %c0_i32, %c0_i32_0 : i32, i32
  }
  func.func @transform_4(%arg0: i32) -> (i32, i32) {
    %c0_i32 = arith.constant 0 : i32
    %c0_i32_0 = arith.constant 0 : i32
    %c0_i32_1 = arith.constant 0 : i32
    return %c0_i32, %c0_i32_0 : i32, i32
  }
  func.func @transform_5(%arg0: i32) -> (i32, i32) {
    %c0_i32 = arith.constant 0 : i32
    %c0_i32_0 = arith.constant 0 : i32
    %c0_i32_1 = arith.constant 0 : i32
    return %c0_i32, %c0_i32_0 : i32, i32
  }
  func.func @transform_6(%arg0: i32) -> (i32, i32) {
    %c0_i32 = arith.constant 0 : i32
    %c0_i32_0 = arith.constant 0 : i32
    %c0_i32_1 = arith.constant 0 : i32
    return %c0_i32, %c0_i32_0 : i32, i32
  }
  func.func @transform_7(%arg0: i32) -> (i32, i32) {
    %c0_i32 = arith.constant 0 : i32
    %c0_i32_0 = arith.constant 0 : i32
    return %arg0, %c0_i32 : i32, i32
  }
  func.func @transform_8(%arg0: i32) -> (i32, i32) {
    %c0_i32 = arith.constant 0 : i32
    %c0_i32_0 = arith.constant 0 : i32
    return %arg0, %c0_i32 : i32, i32
  }
}

module attributes {stable_mosaic.version = 11 : i64} {
  func.func @_attn_kernel(%arg0: i32, %arg1: memref<1x8x32xbf16, #tpu.memory_space<vmem>>, %arg2: memref<1x8x32xbf16, #tpu.memory_space<vmem>>, %arg3: memref<1x8x32xbf16, #tpu.memory_space<vmem>>, %arg4: memref<1x8x32xbf16, #tpu.memory_space<vmem>>, %arg5: memref<1x256xf32, #tpu.memory_space<vmem>>, %arg6: memref<1x256xf32, #tpu.memory_space<vmem>>, %arg7: memref<256x128xbf16, #tpu.memory_space<vmem>>, %arg8: memref<1x8x128xf32, #tpu.memory_space<vmem>>, %arg9: memref<1x8x32xf32, #tpu.memory_space<vmem>>) attributes {dimension_semantics = [#tpu.dimension_semantics<parallel>], iteration_bounds = array<i64: 2>, scalar_prefetch = 0 : i64, scratch_operands = 1 : i64, tpu.core_type = #tpu.core_type<tc>, window_params = [{transform_indices = @transform_0, window_bounds = array<i64: 1, 8, 32>}, {transform_indices = @transform_1, window_bounds = array<i64: 1, 8, 32>}, {transform_indices = @transform_2, window_bounds = array<i64: 1, 8, 32>}, {transform_indices = @transform_3, window_bounds = array<i64: 1, 8, 32>}, {pipeline_mode = #tpu.pipeline_mode<synchronous>, transform_indices = @transform_4, window_bounds = array<i64: 1, 256>}, {pipeline_mode = #tpu.pipeline_mode<synchronous>, transform_indices = @transform_5, window_bounds = array<i64: 1, 256>}, {pipeline_mode = #tpu.pipeline_mode<synchronous>, transform_indices = @transform_6, window_bounds = array<i64: 256, 128>}, {transform_indices = @transform_7, window_bounds = array<i64: 1, 8, 128>}]} {
    %c0 = arith.constant 0 : index
    %c0_0 = arith.constant 0 : index
    %c0_1 = arith.constant 0 : index
    %0 = vector.load %arg1[%c0, %c0_0, %c0_1] : memref<1x8x32xbf16, #tpu.memory_space<vmem>>, vector<1x8x32xbf16>
    %c0_2 = arith.constant 0 : index
    %c0_3 = arith.constant 0 : index
    %c0_4 = arith.constant 0 : index
    %1 = vector.load %arg2[%c0_2, %c0_3, %c0_4] : memref<1x8x32xbf16, #tpu.memory_space<vmem>>, vector<1x8x32xbf16>
    %c0_5 = arith.constant 0 : index
    %c0_6 = arith.constant 0 : index
    %c0_7 = arith.constant 0 : index
    %2 = vector.load %arg3[%c0_5, %c0_6, %c0_7] : memref<1x8x32xbf16, #tpu.memory_space<vmem>>, vector<1x8x32xbf16>
    %3 = vector.extract_strided_slice %0 {offsets = [0, 0, 0], sizes = [1, 8, 8], strides = [1, 1, 1]} : vector<1x8x32xbf16> to vector<1x8x8xbf16>
    %4 = vector.extract_strided_slice %1 {offsets = [0, 0, 0], sizes = [1, 8, 8], strides = [1, 1, 1]} : vector<1x8x32xbf16> to vector<1x8x8xbf16>
    "tpu.trace_start"() <{level = 10 : i32, message = "bqd,bkd->bqk"}> : () -> ()
    %cst = arith.constant dense<0.000000e+00> : vector<1x8x8xf32>
    %5 = tpu.matmul %3, %4, %cst {dimension_numbers = #tpu.dot_dimension_numbers<[2], [2], [1], [1], [0, 0, 0, 1, 1, 1], [0], [0]>} : vector<1x8x8xbf16>, vector<1x8x8xbf16>, vector<1x8x8xf32> -> vector<1x8x8xf32>
    "tpu.trace_stop"() : () -> ()
    %cst_8 = arith.constant dense<0xFF800000> : vector<1x8xf32>
    %6 = vector.multi_reduction <maximumf>, %5, %cst_8 [2] : vector<1x8x8xf32> to vector<1x8xf32>
    %7 = vector.shape_cast %6 : vector<1x8xf32> to vector<1x8x1xf32>
    %8 = vector.broadcast %7 : vector<1x8x1xf32> to vector<1x8x8xf32>
    %9 = arith.subf %5, %8 : vector<1x8x8xf32>
    %10 = math.exp %9 : vector<1x8x8xf32>
    %cst_9 = arith.constant dense<0.000000e+00> : vector<1x8xf32>
    %11 = vector.multi_reduction <add>, %10, %cst_9 [2] : vector<1x8x8xf32> to vector<1x8xf32>
    %12 = vector.shape_cast %11 : vector<1x8xf32> to vector<1x8x1xf32>
    %13 = tpu.reciprocal %12 {approx = true} : vector<1x8x1xf32> -> vector<1x8x1xf32>
    %14 = arith.truncf %10 : vector<1x8x8xf32> to vector<1x8x8xbf16>
    %15 = vector.extract_strided_slice %2 {offsets = [0, 0, 0], sizes = [1, 8, 8], strides = [1, 1, 1]} : vector<1x8x32xbf16> to vector<1x8x8xbf16>
    "tpu.trace_start"() <{level = 10 : i32, message = "bqk,bkd->bqd"}> : () -> ()
    %cst_10 = arith.constant dense<0.000000e+00> : vector<1x8x8xf32>
    %16 = tpu.matmul %14, %15, %cst_10 {dimension_numbers = #tpu.dot_dimension_numbers<[2], [1], [1], [2], [0, 0, 0, 1, 1, 2], [0], [0]>} : vector<1x8x8xbf16>, vector<1x8x8xbf16>, vector<1x8x8xf32> -> vector<1x8x8xf32>
    "tpu.trace_stop"() : () -> ()
    %17 = vector.broadcast %13 : vector<1x8x1xf32> to vector<1x8x8xf32>
    %18 = arith.mulf %16, %17 : vector<1x8x8xf32>
    %c0_11 = arith.constant 0 : index
    %c0_12 = arith.constant 0 : index
    %c0_13 = arith.constant 0 : index
    %19 = vector.load %arg9[%c0_11, %c0_12, %c0_13] : memref<1x8x32xf32, #tpu.memory_space<vmem>>, vector<1x8x8xf32>
    tpu.vector_store %arg9[%c0_11, %c0_12, %c0_13], %18 {strides = array<i32>} : memref<1x8x32xf32, #tpu.memory_space<vmem>>, vector<1x8x8xf32>,
    %20 = vector.extract_strided_slice %0 {offsets = [0, 0, 8], sizes = [1, 8, 8], strides = [1, 1, 1]} : vector<1x8x32xbf16> to vector<1x8x8xbf16>
    %21 = vector.extract_strided_slice %1 {offsets = [0, 0, 8], sizes = [1, 8, 8], strides = [1, 1, 1]} : vector<1x8x32xbf16> to vector<1x8x8xbf16>
    "tpu.trace_start"() <{level = 10 : i32, message = "bqd,bkd->bqk"}> : () -> ()
    %cst_14 = arith.constant dense<0.000000e+00> : vector<1x8x8xf32>
    %22 = tpu.matmul %20, %21, %cst_14 {dimension_numbers = #tpu.dot_dimension_numbers<[2], [2], [1], [1], [0, 0, 0, 1, 1, 1], [0], [0]>} : vector<1x8x8xbf16>, vector<1x8x8xbf16>, vector<1x8x8xf32> -> vector<1x8x8xf32>
    "tpu.trace_stop"() : () -> ()
    %cst_15 = arith.constant dense<0xFF800000> : vector<1x8xf32>
    %23 = vector.multi_reduction <maximumf>, %22, %cst_15 [2] : vector<1x8x8xf32> to vector<1x8xf32>
    %24 = vector.shape_cast %23 : vector<1x8xf32> to vector<1x8x1xf32>
    %25 = vector.broadcast %24 : vector<1x8x1xf32> to vector<1x8x8xf32>
    %26 = arith.subf %22, %25 : vector<1x8x8xf32>
    %27 = math.exp %26 : vector<1x8x8xf32>
    %cst_16 = arith.constant dense<0.000000e+00> : vector<1x8xf32>
    %28 = vector.multi_reduction <add>, %27, %cst_16 [2] : vector<1x8x8xf32> to vector<1x8xf32>
    %29 = vector.shape_cast %28 : vector<1x8xf32> to vector<1x8x1xf32>
    %30 = tpu.reciprocal %29 {approx = true} : vector<1x8x1xf32> -> vector<1x8x1xf32>
    %31 = arith.truncf %27 : vector<1x8x8xf32> to vector<1x8x8xbf16>
    %32 = vector.extract_strided_slice %2 {offsets = [0, 0, 8], sizes = [1, 8, 8], strides = [1, 1, 1]} : vector<1x8x32xbf16> to vector<1x8x8xbf16>
    "tpu.trace_start"() <{level = 10 : i32, message = "bqk,bkd->bqd"}> : () -> ()
    %cst_17 = arith.constant dense<0.000000e+00> : vector<1x8x8xf32>
    %33 = tpu.matmul %31, %32, %cst_17 {dimension_numbers = #tpu.dot_dimension_numbers<[2], [1], [1], [2], [0, 0, 0, 1, 1, 2], [0], [0]>} : vector<1x8x8xbf16>, vector<1x8x8xbf16>, vector<1x8x8xf32> -> vector<1x8x8xf32>
    "tpu.trace_stop"() : () -> ()
    %34 = vector.broadcast %30 : vector<1x8x1xf32> to vector<1x8x8xf32>
    %35 = arith.mulf %33, %34 : vector<1x8x8xf32>
    %c0_18 = arith.constant 0 : index
    %c0_19 = arith.constant 0 : index
    %c8 = arith.constant 8 : index
    %36 = vector.load %arg9[%c0_18, %c0_19, %c8] : memref<1x8x32xf32, #tpu.memory_space<vmem>>, vector<1x8x8xf32>
    tpu.vector_store %arg9[%c0_18, %c0_19, %c8], %35 {strides = array<i32>} : memref<1x8x32xf32, #tpu.memory_space<vmem>>, vector<1x8x8xf32>,
    %37 = vector.extract_strided_slice %0 {offsets = [0, 0, 16], sizes = [1, 8, 8], strides = [1, 1, 1]} : vector<1x8x32xbf16> to vector<1x8x8xbf16>
    %38 = vector.extract_strided_slice %1 {offsets = [0, 0, 16], sizes = [1, 8, 8], strides = [1, 1, 1]} : vector<1x8x32xbf16> to vector<1x8x8xbf16>
    "tpu.trace_start"() <{level = 10 : i32, message = "bqd,bkd->bqk"}> : () -> ()
    %cst_20 = arith.constant dense<0.000000e+00> : vector<1x8x8xf32>
    %39 = tpu.matmul %37, %38, %cst_20 {dimension_numbers = #tpu.dot_dimension_numbers<[2], [2], [1], [1], [0, 0, 0, 1, 1, 1], [0], [0]>} : vector<1x8x8xbf16>, vector<1x8x8xbf16>, vector<1x8x8xf32> -> vector<1x8x8xf32>
    "tpu.trace_stop"() : () -> ()
    %cst_21 = arith.constant dense<0xFF800000> : vector<1x8xf32>
    %40 = vector.multi_reduction <maximumf>, %39, %cst_21 [2] : vector<1x8x8xf32> to vector<1x8xf32>
    %41 = vector.shape_cast %40 : vector<1x8xf32> to vector<1x8x1xf32>
    %42 = vector.broadcast %41 : vector<1x8x1xf32> to vector<1x8x8xf32>
    %43 = arith.subf %39, %42 : vector<1x8x8xf32>
    %44 = math.exp %43 : vector<1x8x8xf32>
    %cst_22 = arith.constant dense<0.000000e+00> : vector<1x8xf32>
    %45 = vector.multi_reduction <add>, %44, %cst_22 [2] : vector<1x8x8xf32> to vector<1x8xf32>
    %46 = vector.shape_cast %45 : vector<1x8xf32> to vector<1x8x1xf32>
    %47 = tpu.reciprocal %46 {approx = true} : vector<1x8x1xf32> -> vector<1x8x1xf32>
    %48 = arith.truncf %44 : vector<1x8x8xf32> to vector<1x8x8xbf16>
    %49 = vector.extract_strided_slice %2 {offsets = [0, 0, 16], sizes = [1, 8, 8], strides = [1, 1, 1]} : vector<1x8x32xbf16> to vector<1x8x8xbf16>
    "tpu.trace_start"() <{level = 10 : i32, message = "bqk,bkd->bqd"}> : () -> ()
    %cst_23 = arith.constant dense<0.000000e+00> : vector<1x8x8xf32>
    %50 = tpu.matmul %48, %49, %cst_23 {dimension_numbers = #tpu.dot_dimension_numbers<[2], [1], [1], [2], [0, 0, 0, 1, 1, 2], [0], [0]>} : vector<1x8x8xbf16>, vector<1x8x8xbf16>, vector<1x8x8xf32> -> vector<1x8x8xf32>
    "tpu.trace_stop"() : () -> ()
    %51 = vector.broadcast %47 : vector<1x8x1xf32> to vector<1x8x8xf32>
    %52 = arith.mulf %50, %51 : vector<1x8x8xf32>
    %c0_24 = arith.constant 0 : index
    %c0_25 = arith.constant 0 : index
    %c16 = arith.constant 16 : index
    %53 = vector.load %arg9[%c0_24, %c0_25, %c16] : memref<1x8x32xf32, #tpu.memory_space<vmem>>, vector<1x8x8xf32>
    tpu.vector_store %arg9[%c0_24, %c0_25, %c16], %52 {strides = array<i32>} : memref<1x8x32xf32, #tpu.memory_space<vmem>>, vector<1x8x8xf32>,
    %54 = vector.extract_strided_slice %0 {offsets = [0, 0, 24], sizes = [1, 8, 8], strides = [1, 1, 1]} : vector<1x8x32xbf16> to vector<1x8x8xbf16>
    %55 = vector.extract_strided_slice %1 {offsets = [0, 0, 24], sizes = [1, 8, 8], strides = [1, 1, 1]} : vector<1x8x32xbf16> to vector<1x8x8xbf16>
    "tpu.trace_start"() <{level = 10 : i32, message = "bqd,bkd->bqk"}> : () -> ()
    %cst_26 = arith.constant dense<0.000000e+00> : vector<1x8x8xf32>
    %56 = tpu.matmul %54, %55, %cst_26 {dimension_numbers = #tpu.dot_dimension_numbers<[2], [2], [1], [1], [0, 0, 0, 1, 1, 1], [0], [0]>} : vector<1x8x8xbf16>, vector<1x8x8xbf16>, vector<1x8x8xf32> -> vector<1x8x8xf32>
    "tpu.trace_stop"() : () -> ()
    %cst_27 = arith.constant dense<0xFF800000> : vector<1x8xf32>
    %57 = vector.multi_reduction <maximumf>, %56, %cst_27 [2] : vector<1x8x8xf32> to vector<1x8xf32>
    %58 = vector.shape_cast %57 : vector<1x8xf32> to vector<1x8x1xf32>
    %59 = vector.broadcast %58 : vector<1x8x1xf32> to vector<1x8x8xf32>
    %60 = arith.subf %56, %59 : vector<1x8x8xf32>
    %61 = math.exp %60 : vector<1x8x8xf32>
    %cst_28 = arith.constant dense<0.000000e+00> : vector<1x8xf32>
    %62 = vector.multi_reduction <add>, %61, %cst_28 [2] : vector<1x8x8xf32> to vector<1x8xf32>
    %63 = vector.shape_cast %62 : vector<1x8xf32> to vector<1x8x1xf32>
    %64 = tpu.reciprocal %63 {approx = true} : vector<1x8x1xf32> -> vector<1x8x1xf32>
    %65 = arith.truncf %61 : vector<1x8x8xf32> to vector<1x8x8xbf16>
    %66 = vector.extract_strided_slice %2 {offsets = [0, 0, 24], sizes = [1, 8, 8], strides = [1, 1, 1]} : vector<1x8x32xbf16> to vector<1x8x8xbf16>
    "tpu.trace_start"() <{level = 10 : i32, message = "bqk,bkd->bqd"}> : () -> ()
    %cst_29 = arith.constant dense<0.000000e+00> : vector<1x8x8xf32>
    %67 = tpu.matmul %65, %66, %cst_29 {dimension_numbers = #tpu.dot_dimension_numbers<[2], [1], [1], [2], [0, 0, 0, 1, 1, 2], [0], [0]>} : vector<1x8x8xbf16>, vector<1x8x8xbf16>, vector<1x8x8xf32> -> vector<1x8x8xf32>
    "tpu.trace_stop"() : () -> ()
    %68 = vector.broadcast %64 : vector<1x8x1xf32> to vector<1x8x8xf32>
    %69 = arith.mulf %67, %68 : vector<1x8x8xf32>
    %c0_30 = arith.constant 0 : index
    %c0_31 = arith.constant 0 : index
    %c24 = arith.constant 24 : index
    %70 = vector.load %arg9[%c0_30, %c0_31, %c24] : memref<1x8x32xf32, #tpu.memory_space<vmem>>, vector<1x8x8xf32>
    tpu.vector_store %arg9[%c0_30, %c0_31, %c24], %69 {strides = array<i32>} : memref<1x8x32xf32, #tpu.memory_space<vmem>>, vector<1x8x8xf32>,
    %c0_32 = arith.constant 0 : index
    %c0_33 = arith.constant 0 : index
    %c0_34 = arith.constant 0 : index
    %71 = vector.load %arg4[%c0_32, %c0_33, %c0_34] : memref<1x8x32xbf16, #tpu.memory_space<vmem>>, vector<1x8x32xbf16>
    %72 = arith.extf %71 : vector<1x8x32xbf16> to vector<1x8x32xf32>
    %73 = arith.negf %72 : vector<1x8x32xf32>
    %74 = math.exp %73 : vector<1x8x32xf32>
    %cst_35 = arith.constant 1.000000e+00 : f32
    %75 = vector.broadcast %cst_35 : f32 to vector<1x8x32xf32>
    %76 = arith.addf %75, %74 : vector<1x8x32xf32>
    %77 = arith.divf %75, %76 : vector<1x8x32xf32>
    %c0_36 = arith.constant 0 : index
    %c0_37 = arith.constant 0 : index
    %c0_38 = arith.constant 0 : index
    %78 = vector.load %arg9[%c0_36, %c0_37, %c0_38] : memref<1x8x32xf32, #tpu.memory_space<vmem>>, vector<1x8x32xf32>
    %79 = arith.mulf %77, %78 : vector<1x8x32xf32>
    %cst_39 = arith.constant dense<0.000000e+00> : vector<1x8xf32>
    %80 = vector.multi_reduction <add>, %79, %cst_39 [2] : vector<1x8x32xf32> to vector<1x8xf32>
    %81 = vector.shape_cast %80 : vector<1x8xf32> to vector<1x8x1xf32>
    %cst_40 = arith.constant 3.200000e+01 : f32
    %82 = vector.broadcast %cst_40 : f32 to vector<1x8x1xf32>
    %83 = arith.divf %81, %82 : vector<1x8x1xf32>
    %84 = vector.broadcast %83 : vector<1x8x1xf32> to vector<1x8x32xf32>
    %85 = arith.subf %79, %84 : vector<1x8x32xf32>
    %86 = arith.mulf %85, %85 : vector<1x8x32xf32>
    %cst_41 = arith.constant dense<0.000000e+00> : vector<1x8xf32>
    %87 = vector.multi_reduction <add>, %86, %cst_41 [2] : vector<1x8x32xf32> to vector<1x8xf32>
    %88 = vector.shape_cast %87 : vector<1x8xf32> to vector<1x8x1xf32>
    %cst_42 = arith.constant 3.200000e+01 : f32
    %89 = vector.broadcast %cst_42 : f32 to vector<1x8x1xf32>
    %90 = arith.divf %88, %89 : vector<1x8x1xf32>
    %91 = vector.broadcast %83 : vector<1x8x1xf32> to vector<1x8x32xf32>
    %92 = arith.subf %79, %91 : vector<1x8x32xf32>
    %cst_43 = arith.constant 9.99999974E-6 : f32
    %93 = vector.broadcast %cst_43 : f32 to vector<1x8x1xf32>
    %94 = arith.addf %90, %93 : vector<1x8x1xf32>
    %95 = math.rsqrt %94 : vector<1x8x1xf32>
    %96 = vector.broadcast %95 : vector<1x8x1xf32> to vector<1x8x32xf32>
    %97 = arith.mulf %92, %96 : vector<1x8x32xf32>
    %98 = tpu.concatenate %97, %97, %97, %97, %97, %97, %97, %97 in 2 : vector<1x8x32xf32>, vector<1x8x32xf32>, vector<1x8x32xf32>, vector<1x8x32xf32>, vector<1x8x32xf32>, vector<1x8x32xf32>, vector<1x8x32xf32>, vector<1x8x32xf32> -> vector<1x8x256xf32>
    %c0_44 = arith.constant 0 : index
    %c0_45 = arith.constant 0 : index
    %99 = vector.load %arg5[%c0_44, %c0_45] : memref<1x256xf32, #tpu.memory_space<vmem>>, vector<1x256xf32>
    %100 = vector.shape_cast %99 : vector<1x256xf32> to vector<1x1x256xf32>
    %101 = vector.broadcast %100 : vector<1x1x256xf32> to vector<1x8x256xf32>
    %102 = arith.mulf %98, %101 : vector<1x8x256xf32>
    %c0_46 = arith.constant 0 : index
    %c0_47 = arith.constant 0 : index
    %103 = vector.load %arg6[%c0_46, %c0_47] : memref<1x256xf32, #tpu.memory_space<vmem>>, vector<1x256xf32>
    %104 = vector.shape_cast %103 : vector<1x256xf32> to vector<1x1x256xf32>
    %105 = vector.broadcast %104 : vector<1x1x256xf32> to vector<1x8x256xf32>
    %106 = arith.addf %102, %105 : vector<1x8x256xf32>
    %107 = arith.truncf %106 : vector<1x8x256xf32> to vector<1x8x256xbf16>
    %108 = arith.mulf %107, %107 : vector<1x8x256xbf16>
    %cst_48 = arith.constant 0.000000e+00 : bf16
    %109 = vector.broadcast %cst_48 : bf16 to vector<1x8x256xbf16>
    %110 = arith.subf %109, %108 : vector<1x8x256xbf16>
    %111 = math.exp %110 : vector<1x8x256xbf16>
    %112 = vector.shape_cast %111 : vector<1x8x256xbf16> to vector<8x256xbf16>
    %c0_49 = arith.constant 0 : index
    %c0_50 = arith.constant 0 : index
    %113 = vector.load %arg7[%c0_49, %c0_50] : memref<256x128xbf16, #tpu.memory_space<vmem>>, vector<256x128xbf16>
    %cst_51 = arith.constant dense<0.000000e+00> : vector<8x128xf32>
    %114 = tpu.matmul %112, %113, %cst_51 {dimension_numbers = #tpu.dot_dimension_numbers<[1], [0], [0], [1], [0, 0, 1, 1], [], []>} : vector<8x256xbf16>, vector<256x128xbf16>, vector<8x128xf32> -> vector<8x128xf32>
    %115 = vector.shape_cast %114 : vector<8x128xf32> to vector<1x8x128xf32>
    %c0_52 = arith.constant 0 : index
    %c0_53 = arith.constant 0 : index
    %c0_54 = arith.constant 0 : index
    %116 = vector.load %arg8[%c0_52, %c0_53, %c0_54] : memref<1x8x128xf32, #tpu.memory_space<vmem>>, vector<1x8x128xf32>
    tpu.vector_store %arg8[%c0_52, %c0_53, %c0_54], %115 {strides = array<i32>} : memref<1x8x128xf32, #tpu.memory_space<vmem>>, vector<1x8x128xf32>,
    return
  }
  func.func @transform_0(%arg0: i32) -> (i32, i32, i32) {
    %c0_i32 = arith.constant 0 : i32
    %c0_i32_0 = arith.constant 0 : i32
    %c0_i32_1 = arith.constant 0 : i32
    return %arg0, %c0_i32, %c0_i32_0 : i32, i32, i32
  }
  func.func @transform_1(%arg0: i32) -> (i32, i32, i32) {
    %c0_i32 = arith.constant 0 : i32
    %c0_i32_0 = arith.constant 0 : i32
    %c0_i32_1 = arith.constant 0 : i32
    return %arg0, %c0_i32, %c0_i32_0 : i32, i32, i32
  }
  func.func @transform_2(%arg0: i32) -> (i32, i32, i32) {
    %c0_i32 = arith.constant 0 : i32
    %c0_i32_0 = arith.constant 0 : i32
    %c0_i32_1 = arith.constant 0 : i32
    return %arg0, %c0_i32, %c0_i32_0 : i32, i32, i32
  }
  func.func @transform_3(%arg0: i32) -> (i32, i32, i32) {
    %c0_i32 = arith.constant 0 : i32
    %c0_i32_0 = arith.constant 0 : i32
    %c0_i32_1 = arith.constant 0 : i32
    return %arg0, %c0_i32, %c0_i32_0 : i32, i32, i32
  }
  func.func @transform_4(%arg0: i32) -> (i32, i32) {
    %c0_i32 = arith.constant 0 : i32
    %c0_i32_0 = arith.constant 0 : i32
    %c0_i32_1 = arith.constant 0 : i32
    return %c0_i32, %c0_i32_0 : i32, i32
  }
  func.func @transform_5(%arg0: i32) -> (i32, i32) {
    %c0_i32 = arith.constant 0 : i32
    %c0_i32_0 = arith.constant 0 : i32
    %c0_i32_1 = arith.constant 0 : i32
    return %c0_i32, %c0_i32_0 : i32, i32
  }
  func.func @transform_6(%arg0: i32) -> (i32, i32) {
    %c0_i32 = arith.constant 0 : i32
    %c0_i32_0 = arith.constant 0 : i32
    %c0_i32_1 = arith.constant 0 : i32
    return %c0_i32, %c0_i32_0 : i32, i32
  }
  func.func @transform_7(%arg0: i32) -> (i32, i32, i32) {
    %c0_i32 = arith.constant 0 : i32
    %c0_i32_0 = arith.constant 0 : i32
    %c0_i32_1 = arith.constant 0 : i32
    return %arg0, %c0_i32, %c0_i32_0 : i32, i32, i32
  }
}

</mosaic_0001>

<llo_original>
// kernel: attention_with_fastkan.6
$region0: #{attention_with_fastkan.6}
  #allocation0 [shape = 'u32[]', space=smem, size = 0x4, offset = 0x4, fixed_abs, tag = 'smem constant byte address 0x4 - core index']
  #allocation1 [shape = 'u32[72,128]{1,0:T(1,128)}', space=vmem, size = 0x9000, scoped, tag = 'internal scratch']
  %s0 = inlined_call_operand.vmem [shape: f32[16,16], index: 0, kind: input, shape index: {}]
  %s1 = inlined_call_operand.vmem [shape: f32[1,128], index: 1, kind: input, shape index: {}]
  %s2 = inlined_call_operand.vmem [shape: f32[1,128], index: 2, kind: input, shape index: {}]
  %s3 = inlined_call_operand.hbm [shape: bf16[128,128], index: 3, kind: input, shape index: {}]
  %s4 = inlined_call_operand.vmem [shape: bf16[16,128], index: 4, kind: output, shape index: {}]
  %s5 = sld [smem:[#allocation0]]
  $region53: #{attention_with_fastkan.6} parent=0
    _
  %s7 = ssub.s32 1, %s5
  %s8 = scalar_select 0, %s7, %s5
  $region1: #{attention_with_fastkan.6} parent=0
    #allocation2 [shape = 'u8[32768]{0}', space=vmem, size = 0x8000, scoped, tag = 'input window, operand 3, single buffered']
    #allocation3 [shape = 's32[2]{0}', space=sflag, size = 0x8, scoped, tag = 'scoped memory for attention_with_fastkan.6']
    %9 = vsyncpa [#allocation3], 0
    loop: start=0, step=1, limit=4
    $region2: #{attention_with_fastkan.6} parent=1 // loop_pre_header
      _
    $region3: #{attention_with_fastkan.6} parent=1 // loop_header
      %s11 = sphi 0, %s15
      %p12 = scmp.ge.s32.totalorder %s11, 4
      %s21 = sphi 0, %s23
      %s24 = sphi 0, %s21
      %s25 = sphi 0, %s24
      %s41 = sphi 0, %s25
      %s45 = sphi 0, %s45
      %s47 = sphi 0, %s45
      %s48 = sphi 0, %s47
      %s62 = sphi 0, %s48
      %s66 = sphi 0, %s66
      %s68 = sphi 0, %s66
      %s69 = sphi 0, %s68
      %s83 = sphi 0, %s69
      %s87 = sphi 0, %s87
      %s89 = sphi 0, %s87
      %s90 = sphi 0, %s89
      %s104 = sphi 0, %s90
      %s110 = sphi 0, %s112
      %s113 = sphi 0, %s110
      %s114 = sphi 0, %s113
      %s130 = sphi 0, %s114
    $region4: #{attention_with_fastkan.6} parent=1 // loop_header_branch
      %14 = sbr.rel (%p12) target = $region8
    $region5: #{attention_with_fastkan.6} parent=1 // loop_body
      %s16 = ssub.s32 %s11, 1
      %s17 = ssub.s32 %s11, 2
      %s18 = sadd.s32 %s11, 1
      %s19 = ssub.s32 %s11, %s18
      %p20 = scmp.eq.s32.totalorder %s19, 0
      %s22 = sadd.s32 %s21, 1
      %s23 = scalar_select %p20, %s21, %s22
      %p26 = pneg %p20
      %p27 = scmp.eq.s32.totalorder %s11, 1
      %p28 = por %p26, %p27
      %p29 = scmp.ne.s32.totalorder %s21, %s24
      %p30 = scmp.eq.s32.totalorder %s11, 0
      %p31 = por %p29, %p30
      %p32 = scmp.ne.s32.totalorder %s21, %s24
      %p33 = scmp.eq.s32.totalorder %s16, 1
      %p34 = por %p32, %p33
      %p35 = scmp.ne.s32.totalorder %s24, %s25
      %p36 = scmp.eq.s32.totalorder %s16, 0
      %p37 = por %p35, %p36
      %p38 = scmp.ne.s32.totalorder %s24, %s25
      %p39 = scmp.eq.s32.totalorder %s17, 1
      %p40 = por %p38, %p39
      %p42 = scmp.ne.s32.totalorder %s25, %s41
      %p43 = scmp.eq.s32.totalorder %s17, 0
      %p44 = por %p42, %p43
      %s46 = sadd.s32 %s45, 1
      %p49 = scmp.eq.s32.totalorder %s11, 1
      %p50 = scmp.ne.s32.totalorder %s45, %s47
      %p51 = scmp.eq.s32.totalorder %s11, 0
      %p52 = por %p50, %p51
      %p53 = scmp.ne.s32.totalorder %s45, %s47
      %p54 = scmp.eq.s32.totalorder %s16, 1
      %p55 = por %p53, %p54
      %p56 = scmp.ne.s32.totalorder %s47, %s48
      %p57 = scmp.eq.s32.totalorder %s16, 0
      %p58 = por %p56, %p57
      %p59 = scmp.ne.s32.totalorder %s47, %s48
      %p60 = scmp.eq.s32.totalorder %s17, 1
      %p61 = por %p59, %p60
      %p63 = scmp.ne.s32.totalorder %s48, %s62
      %p64 = scmp.eq.s32.totalorder %s17, 0
      %p65 = por %p63, %p64
      %s67 = sadd.s32 %s66, 1
      %p70 = scmp.eq.s32.totalorder %s11, 1
      %p71 = scmp.ne.s32.totalorder %s66, %s68
      %p72 = scmp.eq.s32.totalorder %s11, 0
      %p73 = por %p71, %p72
      %p74 = scmp.ne.s32.totalorder %s66, %s68
      %p75 = scmp.eq.s32.totalorder %s16, 1
      %p76 = por %p74, %p75
      %p77 = scmp.ne.s32.totalorder %s68, %s69
      %p78 = scmp.eq.s32.totalorder %s16, 0
      %p79 = por %p77, %p78
      %p80 = scmp.ne.s32.totalorder %s68, %s69
      %p81 = scmp.eq.s32.totalorder %s17, 1
      %p82 = por %p80, %p81
      %p84 = scmp.ne.s32.totalorder %s69, %s83
      %p85 = scmp.eq.s32.totalorder %s17, 0
      %p86 = por %p84, %p85
      %s88 = sadd.s32 %s87, 1
      %p91 = scmp.eq.s32.totalorder %s11, 1
      %p92 = scmp.ne.s32.totalorder %s87, %s89
      %p93 = scmp.eq.s32.totalorder %s11, 0
      %p94 = por %p92, %p93
      %p95 = scmp.ne.s32.totalorder %s87, %s89
      %p96 = scmp.eq.s32.totalorder %s16, 1
      %p97 = por %p95, %p96
      %p98 = scmp.ne.s32.totalorder %s89, %s90
      %p99 = scmp.eq.s32.totalorder %s16, 0
      %p100 = por %p98, %p99
      %p101 = scmp.ne.s32.totalorder %s89, %s90
      %p102 = scmp.eq.s32.totalorder %s17, 1
      %p103 = por %p101, %p102
      %p105 = scmp.ne.s32.totalorder %s90, %s104
      %p106 = scmp.eq.s32.totalorder %s17, 0
      %p107 = por %p105, %p106
      %s108 = ssub.s32 %s11, %s18
      %p109 = scmp.eq.s32.totalorder %s108, 0
      %s111 = sadd.s32 %s110, 1
      %s112 = scalar_select %p109, %s110, %s111
      %p115 = pneg %p109
      %p116 = scmp.eq.s32.totalorder %s11, 1
      %p117 = por %p115, %p116
      %p118 = scmp.ne.s32.totalorder %s110, %s113
      %p119 = scmp.eq.s32.totalorder %s11, 0
      %p120 = por %p118, %p119
      %p121 = scmp.ne.s32.totalorder %s110, %s113
      %p122 = scmp.eq.s32.totalorder %s16, 1
      %p123 = por %p121, %p122
      %p124 = scmp.ne.s32.totalorder %s113, %s114
      %p125 = scmp.eq.s32.totalorder %s16, 0
      %p126 = por %p124, %p125
      %p127 = scmp.ne.s32.totalorder %s113, %s114
      %p128 = scmp.eq.s32.totalorder %s17, 1
      %p129 = por %p127, %p128
      %p131 = scmp.ne.s32.totalorder %s114, %s130
      %p132 = scmp.eq.s32.totalorder %s17, 0
      %p133 = por %p131, %p132
      %p134 = scmp.le.s32.totalorder 1, %s11
      %p135 = scmp.lt.s32.totalorder %s11, 3
      %p136 = pnand %p134, %p135
      %p137 = pneg %p136
      // Predicated region
      $region9: #{attention_with_fastkan.6} parent=5 // pred_check
        _
      $region10: #{attention_with_fastkan.6} parent=5 // pred_check_branch
        %139 = sbr.rel (%p136) target = $region12
      $region11: #{attention_with_fastkan.6} parent=5 // pred_region
        %s140 = ssub.s32 %s11, 1
        // Predicated region
        $region13: #{attention_with_fastkan.6} parent=11 // pred_check
          %p141 = pneg %p58
        $region14: #{attention_with_fastkan.6} parent=11 // pred_check_branch
          %143 = sbr.rel (%p141) target = $region16
        $region15: #{attention_with_fastkan.6} parent=11 // pred_region
          _
        $region16: #{attention_with_fastkan.6} parent=11 // pred_fallthru
          _
        // Predicated region
        $region17: #{attention_with_fastkan.6} parent=11 // pred_check
          %p144 = pneg %p79
        $region18: #{attention_with_fastkan.6} parent=11 // pred_check_branch
          %146 = sbr.rel (%p144) target = $region20
        $region19: #{attention_with_fastkan.6} parent=11 // pred_region
          _
        $region20: #{attention_with_fastkan.6} parent=11 // pred_fallthru
          _
        // Predicated region
        $region21: #{attention_with_fastkan.6} parent=11 // pred_check
          %p147 = pneg %p100
        $region22: #{attention_with_fastkan.6} parent=11 // pred_check_branch
          %149 = sbr.rel (%p147) target = $region24
        $region23: #{attention_with_fastkan.6} parent=11 // pred_region
          %151 = vsyncadd [#allocation3], 0
          %s152 = sshll.u32 %s3, 4
          %s153 = int_to_ptr.hbm [resolvable:$true] %s152
          %s154 = sshll.u32 [#allocation2], 4
          %s155 = int_to_ptr.vmem [resolvable:$true] %s154
          %160 = dma.hbm_to_vmem [thread:$0]  %s153, 1024, %s155, [#allocation3], 64, 64, 4
        $region24: #{attention_with_fastkan.6} parent=11 // pred_fallthru
          _
      $region12: #{attention_with_fastkan.6} parent=5 // pred_fallthru
        _
      %p161 = scmp.lt.s32.totalorder %s11, 2
      // Predicated region
      $region25: #{attention_with_fastkan.6} parent=5 // pred_check
        %p162 = pneg %p161
      $region26: #{attention_with_fastkan.6} parent=5 // pred_check_branch
        %164 = sbr.rel (%p162) target = $region28
      $region27: #{attention_with_fastkan.6} parent=5 // pred_region
        // Predicated region
        $region29: #{attention_with_fastkan.6} parent=27 // pred_check
          %p165 = pneg %p31
        $region30: #{attention_with_fastkan.6} parent=27 // pred_check_branch
          %167 = sbr.rel (%p165) target = $region32
        $region31: #{attention_with_fastkan.6} parent=27 // pred_region
          %p168 = scmp.lt.s32.totalorder %s11, 1
          %s169 = scalar_select %p168, %s11, 1
          %s170 = smul.addr %s169, 8
          %s171 = scalar_lea.vmem %s0, %s170
        $region32: #{attention_with_fastkan.6} parent=27 // pred_fallthru
          _
      $region28: #{attention_with_fastkan.6} parent=5 // pred_fallthru
        _
      %p172 = scmp.le.s32.totalorder 1, %s11
      %p173 = scmp.lt.s32.totalorder %s11, 3
      %p174 = pnand %p172, %p173
      %p175 = pneg %p174
      // Predicated region
      $region33: #{attention_with_fastkan.6} parent=5 // pred_check
        _
      $region34: #{attention_with_fastkan.6} parent=5 // pred_check_branch
        %177 = sbr.rel (%p174) target = $region36
      $region35: #{attention_with_fastkan.6} parent=5 // pred_region
        %s178 = ssub.s32 %s11, 1
        // Predicated region
        $region37: #{attention_with_fastkan.6} parent=35 // pred_check
          %p179 = pneg %p100
        $region38: #{attention_with_fastkan.6} parent=35 // pred_check_branch
          %181 = sbr.rel (%p179) target = $region40
        $region39: #{attention_with_fastkan.6} parent=35 // pred_region
          %183 = dma.done [#allocation3], 1024
        $region40: #{attention_with_fastkan.6} parent=35 // pred_fallthru
          _
        %p184 = scmp.lt.s32.totalorder %s16, 1
        %s185 = scalar_select %p184, %s16, 1
        %s186 = smul.addr %s185, 8
        %s187 = scalar_lea.vmem %s0, %s186
        %p188 = pneg %p37
        %p189 = pneg %p34
        %p190 = pneg %p58
        %p191 = pneg %p55
        %p192 = pneg %p79
        %p193 = pneg %p76
        %p194 = pneg %p100
        %p195 = pneg %p97
        %p196 = pneg %p126
        %p197 = pneg %p123
        %p198 = scmp.lt.s32.totalorder %s16, 1
        %s199 = scalar_select %p198, %s16, 1
        %s200 = smul.addr %s199, 4
        %s201 = scalar_lea.vmem %s4, %s200
        %p202 = scmp.lt.s32.totalorder %s16, 1
        %s203 = scalar_select %p202, %s16, 1
        %s204 = smul.addr %s203, 8
        %s205 = scalar_lea.vmem %s0, %s204
        %p206 = scmp.lt.s32.totalorder %s16, 1
        %s207 = scalar_select %p206, %s16, 1
        %s208 = smul.addr %s207, 4
        %s209 = scalar_lea.vmem %s4, %s208
        %v210 = vld [vmem:[%s205] sm:$0xff]
        %vm211 = vcmask 130048
        %v212 = vsel %vm211, %v210, 0.0
        %213 = vadd.xlane.f32.xlu0 %v212
        %v214 = vpop.xlane.xlu0 %213
        %v215 = vrcp.pop 16.0
        %v216 = vmul.f32 16.0, %v215
        %v217 = vsub.f32 1.0, %v216
        %v218 = vmul.f32 %v215, %v217
        %v219 = vadd.f32 %v215, %v218
        %vm220 = vweird.f32 %v215
        %v221 = vsel %vm220, %v215, %v219
        %v222 = vmul.f32 %v214, %v221
        %v223 = vsub.f32 %v210, %v222
        %v224 = vmul.f32 %v223, %v223
        %v225 = vsel %vm211, %v224, 0.0
        %226 = vadd.xlane.f32.xlu0 %v225
        %v227 = vpop.xlane.xlu0 %226
        %v228 = vmul.f32 %v227, %v221
        %v229 = vadd.f32 %v228, 1e-05
        %v230 = vrsqrt.pop %v229
        %v231 = vmul.f32 %v230, %v229
        %v232 = vmul.f32 %v231, %v230
        %v233 = vmul.f32 0.5, %v232
        %v234 = vsub.f32 1.5, %v233
        %v235 = vmul.f32 %v230, %v234
        %vm236 = vweird.f32 %v229
        %vm237 = vweird.f32 %v230
        %vm238 = vmor %vm236, %vm237
        %v239 = vsel %vm238, %v230, %v235
        %v240 = vmul.f32 %v223, %v239
        %242 = vrot.lane.b32.xlu0 %v240, 16
        %v243 = vpop.permute.xlu0 %242
        %245 = vrot.lane.b32.xlu0 %v240, 32
        %v246 = vpop.permute.xlu0 %245
        %248 = vrot.lane.b32.xlu0 %v240, 48
        %v249 = vpop.permute.xlu0 %248
        %251 = vrot.lane.b32.xlu0 %v240, 64
        %v252 = vpop.permute.xlu0 %251
        %254 = vrot.lane.b32.xlu0 %v240, 80
        %v255 = vpop.permute.xlu0 %254
        %257 = vrot.lane.b32.xlu0 %v240, 96
        %v258 = vpop.permute.xlu0 %257
        %260 = vrot.lane.b32.xlu0 %v240, 112
        %v261 = vpop.permute.xlu0 %260
        %v263 = vsel %vm211, %v240, %v243
        %vm264 = vcmask 261120
        %v265 = vsel %vm264, %v263, %v246
        %vm266 = vcmask 392192
        %v267 = vsel %vm266, %v265, %v249
        %vm268 = vcmask 523264
        %v269 = vsel %vm268, %v267, %v252
        %vm270 = vcmask 654336
        %v271 = vsel %vm270, %v269, %v255
        %vm272 = vcmask 785408
        %v273 = vsel %vm272, %v271, %v258
        %vm274 = vcmask 916480
        %v275 = vsel %vm274, %v273, %v261
        %v276 = vld [vmem:[%s1] sm:$0x1]
        %v278 = vperm.slane %v276, 0
        %v280 = vmul.f32 %v275, %v278
        %v281 = vld [vmem:[%s2] sm:$0x1]
        %v283 = vperm.slane %v281, 0
        %v285 = vadd.f32 %v280, %v283
        %v286 = vpack.c.bf16 %v285, %v285
        %v287 = vunpack.c.l.bf16 %v286
        %v288 = vmul.f32 %v287, %v287
        %v289 = vpack.c.bf16 %v288, %v288
        %v290 = vunpack.c.l.bf16 %v289
        %v291 = vsub.f32 0.0, %v290
        %v292 = vpack.c.bf16 %v291, %v291
        %v293 = vunpack.c.l.bf16 %v292
        %v294 = vmul.f32 %v293, 1.442695
        %v295 = vpow.pop %v294
        %v296 = vpack.c.bf16 %v295, %v295
        %v297 = vld [vmem:[#allocation2] sm:$0xf]
        %v298 = vld [vmem:[#allocation2 + $0x4] sm:$0xf]
        %v299 = vld [vmem:[#allocation2 + $0x8] sm:$0xf]
        %v300 = vld [vmem:[#allocation2 + $0xc] sm:$0xf]
        %v301 = vld [vmem:[#allocation2 + $0x10] sm:$0xf]
        %v302 = vld [vmem:[#allocation2 + $0x14] sm:$0xf]
        %v303 = vld [vmem:[#allocation2 + $0x18] sm:$0xf]
        %v304 = vld [vmem:[#allocation2 + $0x1c] sm:$0xf]
        %v305 = vld [vmem:[#allocation2 + $0x20] sm:$0xf]
        %v306 = vld [vmem:[#allocation2 + $0x24] sm:$0xf]
        %v307 = vld [vmem:[#allocation2 + $0x28] sm:$0xf]
        %v308 = vld [vmem:[#allocation2 + $0x2c] sm:$0xf]
        %v309 = vld [vmem:[#allocation2 + $0x30] sm:$0xf]
        %v310 = vld [vmem:[#allocation2 + $0x34] sm:$0xf]
        %v311 = vld [vmem:[#allocation2 + $0x38] sm:$0xf]
        %v312 = vld [vmem:[#allocation2 + $0x3c] sm:$0xf]
        %v329 = vunpack.c.l.b16 %v297
        %v330 = vunpack.c.l.b16 %v298
        %v331 = vunpack.c.l.b16 %v299
        %v332 = vunpack.c.l.b16 %v300
        %v333 = vunpack.c.l.b16 %v301
        %v334 = vunpack.c.l.b16 %v302
        %v335 = vunpack.c.l.b16 %v303
        %v336 = vunpack.c.l.b16 %v304
        %v337 = vunpack.c.l.b16 %v305
        %v338 = vunpack.c.l.b16 %v306
        %v339 = vunpack.c.l.b16 %v307
        %v340 = vunpack.c.l.b16 %v308
        %v341 = vunpack.c.l.b16 %v309
        %v342 = vunpack.c.l.b16 %v310
        %v343 = vunpack.c.l.b16 %v311
        %v344 = vunpack.c.l.b16 %v312
        %v345 = vpack.c.b16 %v330, %v329
        %v346 = vpack.c.b16 %v332, %v331
        %v347 = vpack.c.b16 %v334, %v333
        %v348 = vpack.c.b16 %v336, %v335
        %v349 = vpack.c.b16 %v338, %v337
        %v350 = vpack.c.b16 %v340, %v339
        %v351 = vpack.c.b16 %v342, %v341
        %v352 = vpack.c.b16 %v344, %v343
        %361 = vmatpush.bf16.msra.mxu0 %v352
        %362 = vmatpush.bf16.msra.mxu0 %v351
        %363 = vmatpush.bf16.msra.mxu0 %v350
        %364 = vmatpush.bf16.msra.mxu0 %v349
        %365 = vmatpush.bf16.msra.mxu0 %v348
        %366 = vmatpush.bf16.msra.mxu0 %v347
        %367 = vmatpush.bf16.msra.mxu0 %v346
        %368 = vmatpush.bf16.msra.mxu0 %v345
        %369 = vmatmul.bf16.gmra.mxu0 %v296
        %v370 = vpop.f32.mrf.mxu0
        %v371 = vadd.f32 0.0, %v370
        %v372 = vpop.f32.mrf.mxu0
        %373 = vdwg.mxu0
        %v374 = vpack.c.bf16 %v371, %v371
        %375 = vst [vmem:[%s209] sm:$0xf] %v374
        %p376 = scmp.lt.s32.totalorder %s16, 1
        %s377 = scalar_select %p376, %s16, 1
        %s378 = smul.addr %s377, 4
        %s379 = scalar_lea.vmem %s4, %s378
        // Predicated region
        $region41: #{attention_with_fastkan.6} parent=35 // pred_check
          %p380 = pneg %p123
        $region42: #{attention_with_fastkan.6} parent=35 // pred_check_branch
          %382 = sbr.rel (%p380) target = $region44
        $region43: #{attention_with_fastkan.6} parent=35 // pred_region
          _
        $region44: #{attention_with_fastkan.6} parent=35 // pred_fallthru
          _
      $region36: #{attention_with_fastkan.6} parent=5 // pred_fallthru
        _
      %p383 = scmp.le.s32.totalorder 2, %s11
      // Predicated region
      $region45: #{attention_with_fastkan.6} parent=5 // pred_check
        %p384 = pneg %p383
      $region46: #{attention_with_fastkan.6} parent=5 // pred_check_branch
        %386 = sbr.rel (%p384) target = $region48
      $region47: #{attention_with_fastkan.6} parent=5 // pred_region
        %s387 = ssub.s32 %s11, 2
        // Predicated region
        $region49: #{attention_with_fastkan.6} parent=47 // pred_check
          %p388 = pneg %p129
        $region50: #{attention_with_fastkan.6} parent=47 // pred_check_branch
          %390 = sbr.rel (%p388) target = $region52
        $region51: #{attention_with_fastkan.6} parent=47 // pred_region
          %p391 = scmp.lt.s32.totalorder %s17, 1
          %s392 = scalar_select %p391, %s17, 1
          %s393 = smul.addr %s392, 4
          %s394 = scalar_lea.vmem %s4, %s393
        $region52: #{attention_with_fastkan.6} parent=47 // pred_fallthru
          _
      $region48: #{attention_with_fastkan.6} parent=5 // pred_fallthru
        _
    $region6: #{attention_with_fastkan.6} parent=1 // loop_footer
      %s15 = sadd.s32 1, %s11
    $region7: #{attention_with_fastkan.6} parent=1 // loop_footer_branch
      %10 = sbr.rel target = $region3
    $region8: #{attention_with_fastkan.6} parent=1 // loop_exit
      _
    %395 = vsyncpa [#allocation3], 1
    %s396 = scalar_lea.sflag [#allocation3], 1
    %397 = vsyncpa %s396, 1

// kernel: attention_with_fastkan.5
$region0: #{attention_with_fastkan.5}
  #allocation0 [shape = 'u32[]', space=smem, size = 0x4, offset = 0x4, fixed_abs, tag = 'smem constant byte address 0x4 - core index']
  #allocation1 [shape = 'u32[72,128]{1,0:T(1,128)}', space=vmem, size = 0x9000, scoped, tag = 'internal scratch']
  %s0 = inlined_call_operand.vmem [shape: f32[16,16], index: 0, kind: input, shape index: {}]
  %s1 = inlined_call_operand.hbm [shape: f32[1,128], index: 1, kind: input, shape index: {}]
  %s2 = inlined_call_operand.hbm [shape: f32[1,128], index: 2, kind: input, shape index: {}]
  %s3 = inlined_call_operand.hbm [shape: bf16[128,128], index: 3, kind: input, shape index: {}]
  %s4 = inlined_call_operand.vmem [shape: bf16[16,128], index: 4, kind: output, shape index: {}]
  %s5 = sld [smem:[#allocation0]]
  $region61: #{attention_with_fastkan.5} parent=0
    _
  %s7 = ssub.s32 1, %s5
  %s8 = scalar_select 0, %s7, %s5
  $region1: #{attention_with_fastkan.5} parent=0
    #allocation2 [shape = 'u8[512]{0}', space=vmem, size = 0x400, scoped, tag = 'input window, operand 1, single buffered']
    #allocation3 [shape = 's32[2]{0}', space=sflag, size = 0x8, scoped, tag = 'scoped memory for attention_with_fastkan.5']
    #allocation4 [shape = 'u8[512]{0}', space=vmem, size = 0x400, scoped, tag = 'input window, operand 2, single buffered']
    #allocation5 [shape = 's32[1]{0}', space=sflag, size = 0x4, scoped, tag = 'scoped memory for attention_with_fastkan.5']
    #allocation6 [shape = 'u8[32768]{0}', space=vmem, size = 0x8000, scoped, tag = 'input window, operand 3, single buffered']
    %9 = vsyncpa [#allocation3], 0
    %10 = vsyncpa [#allocation5], 0
    loop: start=0, step=1, limit=4
    $region2: #{attention_with_fastkan.5} parent=1 // loop_pre_header
      _
    $region3: #{attention_with_fastkan.5} parent=1 // loop_header
      %s12 = sphi 0, %s16
      %p13 = scmp.ge.s32.totalorder %s12, 4
      %s22 = sphi 0, %s24
      %s25 = sphi 0, %s22
      %s26 = sphi 0, %s25
      %s42 = sphi 0, %s26
      %s46 = sphi 0, %s46
      %s48 = sphi 0, %s46
      %s49 = sphi 0, %s48
      %s63 = sphi 0, %s49
      %s67 = sphi 0, %s67
      %s69 = sphi 0, %s67
      %s70 = sphi 0, %s69
      %s84 = sphi 0, %s70
      %s88 = sphi 0, %s88
      %s90 = sphi 0, %s88
      %s91 = sphi 0, %s90
      %s105 = sphi 0, %s91
      %s111 = sphi 0, %s113
      %s114 = sphi 0, %s111
      %s115 = sphi 0, %s114
      %s131 = sphi 0, %s115
    $region4: #{attention_with_fastkan.5} parent=1 // loop_header_branch
      %15 = sbr.rel (%p13) target = $region8
    $region5: #{attention_with_fastkan.5} parent=1 // loop_body
      %s17 = ssub.s32 %s12, 1
      %s18 = ssub.s32 %s12, 2
      %s19 = sadd.s32 %s12, 1
      %s20 = ssub.s32 %s12, %s19
      %p21 = scmp.eq.s32.totalorder %s20, 0
      %s23 = sadd.s32 %s22, 1
      %s24 = scalar_select %p21, %s22, %s23
      %p27 = pneg %p21
      %p28 = scmp.eq.s32.totalorder %s12, 1
      %p29 = por %p27, %p28
      %p30 = scmp.ne.s32.totalorder %s22, %s25
      %p31 = scmp.eq.s32.totalorder %s12, 0
      %p32 = por %p30, %p31
      %p33 = scmp.ne.s32.totalorder %s22, %s25
      %p34 = scmp.eq.s32.totalorder %s17, 1
      %p35 = por %p33, %p34
      %p36 = scmp.ne.s32.totalorder %s25, %s26
      %p37 = scmp.eq.s32.totalorder %s17, 0
      %p38 = por %p36, %p37
      %p39 = scmp.ne.s32.totalorder %s25, %s26
      %p40 = scmp.eq.s32.totalorder %s18, 1
      %p41 = por %p39, %p40
      %p43 = scmp.ne.s32.totalorder %s26, %s42
      %p44 = scmp.eq.s32.totalorder %s18, 0
      %p45 = por %p43, %p44
      %s47 = sadd.s32 %s46, 1
      %p50 = scmp.eq.s32.totalorder %s12, 1
      %p51 = scmp.ne.s32.totalorder %s46, %s48
      %p52 = scmp.eq.s32.totalorder %s12, 0
      %p53 = por %p51, %p52
      %p54 = scmp.ne.s32.totalorder %s46, %s48
      %p55 = scmp.eq.s32.totalorder %s17, 1
      %p56 = por %p54, %p55
      %p57 = scmp.ne.s32.totalorder %s48, %s49
      %p58 = scmp.eq.s32.totalorder %s17, 0
      %p59 = por %p57, %p58
      %p60 = scmp.ne.s32.totalorder %s48, %s49
      %p61 = scmp.eq.s32.totalorder %s18, 1
      %p62 = por %p60, %p61
      %p64 = scmp.ne.s32.totalorder %s49, %s63
      %p65 = scmp.eq.s32.totalorder %s18, 0
      %p66 = por %p64, %p65
      %s68 = sadd.s32 %s67, 1
      %p71 = scmp.eq.s32.totalorder %s12, 1
      %p72 = scmp.ne.s32.totalorder %s67, %s69
      %p73 = scmp.eq.s32.totalorder %s12, 0
      %p74 = por %p72, %p73
      %p75 = scmp.ne.s32.totalorder %s67, %s69
      %p76 = scmp.eq.s32.totalorder %s17, 1
      %p77 = por %p75, %p76
      %p78 = scmp.ne.s32.totalorder %s69, %s70
      %p79 = scmp.eq.s32.totalorder %s17, 0
      %p80 = por %p78, %p79
      %p81 = scmp.ne.s32.totalorder %s69, %s70
      %p82 = scmp.eq.s32.totalorder %s18, 1
      %p83 = por %p81, %p82
      %p85 = scmp.ne.s32.totalorder %s70, %s84
      %p86 = scmp.eq.s32.totalorder %s18, 0
      %p87 = por %p85, %p86
      %s89 = sadd.s32 %s88, 1
      %p92 = scmp.eq.s32.totalorder %s12, 1
      %p93 = scmp.ne.s32.totalorder %s88, %s90
      %p94 = scmp.eq.s32.totalorder %s12, 0
      %p95 = por %p93, %p94
      %p96 = scmp.ne.s32.totalorder %s88, %s90
      %p97 = scmp.eq.s32.totalorder %s17, 1
      %p98 = por %p96, %p97
      %p99 = scmp.ne.s32.totalorder %s90, %s91
      %p100 = scmp.eq.s32.totalorder %s17, 0
      %p101 = por %p99, %p100
      %p102 = scmp.ne.s32.totalorder %s90, %s91
      %p103 = scmp.eq.s32.totalorder %s18, 1
      %p104 = por %p102, %p103
      %p106 = scmp.ne.s32.totalorder %s91, %s105
      %p107 = scmp.eq.s32.totalorder %s18, 0
      %p108 = por %p106, %p107
      %s109 = ssub.s32 %s12, %s19
      %p110 = scmp.eq.s32.totalorder %s109, 0
      %s112 = sadd.s32 %s111, 1
      %s113 = scalar_select %p110, %s111, %s112
      %p116 = pneg %p110
      %p117 = scmp.eq.s32.totalorder %s12, 1
      %p118 = por %p116, %p117
      %p119 = scmp.ne.s32.totalorder %s111, %s114
      %p120 = scmp.eq.s32.totalorder %s12, 0
      %p121 = por %p119, %p120
      %p122 = scmp.ne.s32.totalorder %s111, %s114
      %p123 = scmp.eq.s32.totalorder %s17, 1
      %p124 = por %p122, %p123
      %p125 = scmp.ne.s32.totalorder %s114, %s115
      %p126 = scmp.eq.s32.totalorder %s17, 0
      %p127 = por %p125, %p126
      %p128 = scmp.ne.s32.totalorder %s114, %s115
      %p129 = scmp.eq.s32.totalorder %s18, 1
      %p130 = por %p128, %p129
      %p132 = scmp.ne.s32.totalorder %s115, %s131
      %p133 = scmp.eq.s32.totalorder %s18, 0
      %p134 = por %p132, %p133
      %p135 = scmp.le.s32.totalorder 1, %s12
      %p136 = scmp.lt.s32.totalorder %s12, 3
      %p137 = pnand %p135, %p136
      %p138 = pneg %p137
      // Predicated region
      $region9: #{attention_with_fastkan.5} parent=5 // pred_check
        _
      $region10: #{attention_with_fastkan.5} parent=5 // pred_check_branch
        %140 = sbr.rel (%p137) target = $region12
      $region11: #{attention_with_fastkan.5} parent=5 // pred_region
        %s141 = ssub.s32 %s12, 1
        // Predicated region
        $region13: #{attention_with_fastkan.5} parent=11 // pred_check
          %p142 = pneg %p59
        $region14: #{attention_with_fastkan.5} parent=11 // pred_check_branch
          %144 = sbr.rel (%p142) target = $region16
        $region15: #{attention_with_fastkan.5} parent=11 // pred_region
          %146 = vsyncadd [#allocation3], 0
          %s148 = sshll.u32 %s1, 4
          %s149 = int_to_ptr.hbm [resolvable:$true] %s148
          %s150 = sshll.u32 [#allocation2], 4
          %s151 = int_to_ptr.vmem [resolvable:$true] %s150
          %153 = dma.hbm_to_vmem [thread:$0]  %s149, 16, %s151, [#allocation3]
        $region16: #{attention_with_fastkan.5} parent=11 // pred_fallthru
          _
        // Predicated region
        $region17: #{attention_with_fastkan.5} parent=11 // pred_check
          %p154 = pneg %p80
        $region18: #{attention_with_fastkan.5} parent=11 // pred_check_branch
          %156 = sbr.rel (%p154) target = $region20
        $region19: #{attention_with_fastkan.5} parent=11 // pred_region
          %158 = vsyncadd [#allocation5], 0
          %s160 = sshll.u32 %s2, 4
          %s161 = int_to_ptr.hbm [resolvable:$true] %s160
          %s162 = sshll.u32 [#allocation4], 4
          %s163 = int_to_ptr.vmem [resolvable:$true] %s162
          %165 = dma.hbm_to_vmem [thread:$0]  %s161, 16, %s163, [#allocation5]
        $region20: #{attention_with_fastkan.5} parent=11 // pred_fallthru
          _
        // Predicated region
        $region21: #{attention_with_fastkan.5} parent=11 // pred_check
          %p166 = pneg %p101
        $region22: #{attention_with_fastkan.5} parent=11 // pred_check_branch
          %168 = sbr.rel (%p166) target = $region24
        $region23: #{attention_with_fastkan.5} parent=11 // pred_region
          %170 = vsyncadd [#allocation5], 0
          %s171 = sshll.u32 %s3, 4
          %s172 = int_to_ptr.hbm [resolvable:$true] %s171
          %s173 = sshll.u32 [#allocation6], 4
          %s174 = int_to_ptr.vmem [resolvable:$true] %s173
          %179 = dma.hbm_to_vmem [thread:$0]  %s172, 1024, %s174, [#allocation5], 64, 64, 4
        $region24: #{attention_with_fastkan.5} parent=11 // pred_fallthru
          _
      $region12: #{attention_with_fastkan.5} parent=5 // pred_fallthru
        _
      %p180 = scmp.lt.s32.totalorder %s12, 2
      // Predicated region
      $region25: #{attention_with_fastkan.5} parent=5 // pred_check
        %p181 = pneg %p180
      $region26: #{attention_with_fastkan.5} parent=5 // pred_check_branch
        %183 = sbr.rel (%p181) target = $region28
      $region27: #{attention_with_fastkan.5} parent=5 // pred_region
        // Predicated region
        $region29: #{attention_with_fastkan.5} parent=27 // pred_check
          %p184 = pneg %p32
        $region30: #{attention_with_fastkan.5} parent=27 // pred_check_branch
          %186 = sbr.rel (%p184) target = $region32
        $region31: #{attention_with_fastkan.5} parent=27 // pred_region
          %p187 = scmp.lt.s32.totalorder %s12, 1
          %s188 = scalar_select %p187, %s12, 1
          %s189 = smul.addr %s188, 8
          %s190 = scalar_lea.vmem %s0, %s189
        $region32: #{attention_with_fastkan.5} parent=27 // pred_fallthru
          _
      $region28: #{attention_with_fastkan.5} parent=5 // pred_fallthru
        _
      %p191 = scmp.le.s32.totalorder 1, %s12
      %p192 = scmp.lt.s32.totalorder %s12, 3
      %p193 = pnand %p191, %p192
      %p194 = pneg %p193
      // Predicated region
      $region33: #{attention_with_fastkan.5} parent=5 // pred_check
        _
      $region34: #{attention_with_fastkan.5} parent=5 // pred_check_branch
        %196 = sbr.rel (%p193) target = $region36
      $region35: #{attention_with_fastkan.5} parent=5 // pred_region
        %s197 = ssub.s32 %s12, 1
        // Predicated region
        $region37: #{attention_with_fastkan.5} parent=35 // pred_check
          %p198 = pneg %p59
        $region38: #{attention_with_fastkan.5} parent=35 // pred_check_branch
          %200 = sbr.rel (%p198) target = $region40
        $region39: #{attention_with_fastkan.5} parent=35 // pred_region
          %202 = dma.done [#allocation3], 16
        $region40: #{attention_with_fastkan.5} parent=35 // pred_fallthru
          _
        // Predicated region
        $region41: #{attention_with_fastkan.5} parent=35 // pred_check
          %p203 = pneg %p80
        $region42: #{attention_with_fastkan.5} parent=35 // pred_check_branch
          %205 = sbr.rel (%p203) target = $region44
        $region43: #{attention_with_fastkan.5} parent=35 // pred_region
          %207 = dma.done [#allocation5], 16
        $region44: #{attention_with_fastkan.5} parent=35 // pred_fallthru
          _
        // Predicated region
        $region45: #{attention_with_fastkan.5} parent=35 // pred_check
          %p208 = pneg %p101
        $region46: #{attention_with_fastkan.5} parent=35 // pred_check_branch
          %210 = sbr.rel (%p208) target = $region48
        $region47: #{attention_with_fastkan.5} parent=35 // pred_region
          %212 = dma.done [#allocation5], 1024
        $region48: #{attention_with_fastkan.5} parent=35 // pred_fallthru
          _
        %p213 = scmp.lt.s32.totalorder %s17, 1
        %s214 = scalar_select %p213, %s17, 1
        %s215 = smul.addr %s214, 8
        %s216 = scalar_lea.vmem %s0, %s215
        %p217 = pneg %p38
        %p218 = pneg %p35
        %p219 = pneg %p59
        %p220 = pneg %p56
        %p221 = pneg %p80
        %p222 = pneg %p77
        %p223 = pneg %p101
        %p224 = pneg %p98
        %p225 = pneg %p127
        %p226 = pneg %p124
        %p227 = scmp.lt.s32.totalorder %s17, 1
        %s228 = scalar_select %p227, %s17, 1
        %s229 = smul.addr %s228, 4
        %s230 = scalar_lea.vmem %s4, %s229
        %p231 = scmp.lt.s32.totalorder %s17, 1
        %s232 = scalar_select %p231, %s17, 1
        %s233 = smul.addr %s232, 8
        %s234 = scalar_lea.vmem %s0, %s233
        %p235 = scmp.lt.s32.totalorder %s17, 1
        %s236 = scalar_select %p235, %s17, 1
        %s237 = smul.addr %s236, 4
        %s238 = scalar_lea.vmem %s4, %s237
        %v239 = vld [vmem:[%s234] sm:$0xff]
        %vm240 = vcmask 130048
        %v241 = vsel %vm240, %v239, 0.0
        %242 = vadd.xlane.f32.xlu0 %v241
        %v243 = vpop.xlane.xlu0 %242
        %v244 = vrcp.pop 16.0
        %v245 = vmul.f32 16.0, %v244
        %v246 = vsub.f32 1.0, %v245
        %v247 = vmul.f32 %v244, %v246
        %v248 = vadd.f32 %v244, %v247
        %vm249 = vweird.f32 %v244
        %v250 = vsel %vm249, %v244, %v248
        %v251 = vmul.f32 %v243, %v250
        %v252 = vsub.f32 %v239, %v251
        %v253 = vmul.f32 %v252, %v252
        %v254 = vsel %vm240, %v253, 0.0
        %255 = vadd.xlane.f32.xlu0 %v254
        %v256 = vpop.xlane.xlu0 %255
        %v257 = vmul.f32 %v256, %v250
        %v258 = vadd.f32 %v257, 1e-05
        %v259 = vrsqrt.pop %v258
        %v260 = vmul.f32 %v259, %v258
        %v261 = vmul.f32 %v260, %v259
        %v262 = vmul.f32 0.5, %v261
        %v263 = vsub.f32 1.5, %v262
        %v264 = vmul.f32 %v259, %v263
        %vm265 = vweird.f32 %v258
        %vm266 = vweird.f32 %v259
        %vm267 = vmor %vm265, %vm266
        %v268 = vsel %vm267, %v259, %v264
        %v269 = vmul.f32 %v252, %v268
        %271 = vrot.lane.b32.xlu0 %v269, 16
        %v272 = vpop.permute.xlu0 %271
        %274 = vrot.lane.b32.xlu0 %v269, 32
        %v275 = vpop.permute.xlu0 %274
        %277 = vrot.lane.b32.xlu0 %v269, 48
        %v278 = vpop.permute.xlu0 %277
        %280 = vrot.lane.b32.xlu0 %v269, 64
        %v281 = vpop.permute.xlu0 %280
        %283 = vrot.lane.b32.xlu0 %v269, 80
        %v284 = vpop.permute.xlu0 %283
        %286 = vrot.lane.b32.xlu0 %v269, 96
        %v287 = vpop.permute.xlu0 %286
        %289 = vrot.lane.b32.xlu0 %v269, 112
        %v290 = vpop.permute.xlu0 %289
        %v292 = vsel %vm240, %v269, %v272
        %vm293 = vcmask 261120
        %v294 = vsel %vm293, %v292, %v275
        %vm295 = vcmask 392192
        %v296 = vsel %vm295, %v294, %v278
        %vm297 = vcmask 523264
        %v298 = vsel %vm297, %v296, %v281
        %vm299 = vcmask 654336
        %v300 = vsel %vm299, %v298, %v284
        %vm301 = vcmask 785408
        %v302 = vsel %vm301, %v300, %v287
        %vm303 = vcmask 916480
        %v304 = vsel %vm303, %v302, %v290
        %v305 = vld [vmem:[#allocation2] sm:$0x1]
        %v307 = vperm.slane %v305, 0
        %v309 = vmul.f32 %v304, %v307
        %v310 = vld [vmem:[#allocation4] sm:$0x1]
        %v312 = vperm.slane %v310, 0
        %v314 = vadd.f32 %v309, %v312
        %v315 = vpack.c.bf16 %v314, %v314
        %v316 = vunpack.c.l.bf16 %v315
        %v317 = vmul.f32 %v316, %v316
        %v318 = vpack.c.bf16 %v317, %v317
        %v319 = vunpack.c.l.bf16 %v318
        %v320 = vsub.f32 0.0, %v319
        %v321 = vpack.c.bf16 %v320, %v320
        %v322 = vunpack.c.l.bf16 %v321
        %v323 = vmul.f32 %v322, 1.442695
        %v324 = vpow.pop %v323
        %v325 = vpack.c.bf16 %v324, %v324
        %v326 = vld [vmem:[#allocation6] sm:$0xf]
        %v327 = vld [vmem:[#allocation6 + $0x4] sm:$0xf]
        %v328 = vld [vmem:[#allocation6 + $0x8] sm:$0xf]
        %v329 = vld [vmem:[#allocation6 + $0xc] sm:$0xf]
        %v330 = vld [vmem:[#allocation6 + $0x10] sm:$0xf]
        %v331 = vld [vmem:[#allocation6 + $0x14] sm:$0xf]
        %v332 = vld [vmem:[#allocation6 + $0x18] sm:$0xf]
        %v333 = vld [vmem:[#allocation6 + $0x1c] sm:$0xf]
        %v334 = vld [vmem:[#allocation6 + $0x20] sm:$0xf]
        %v335 = vld [vmem:[#allocation6 + $0x24] sm:$0xf]
        %v336 = vld [vmem:[#allocation6 + $0x28] sm:$0xf]
        %v337 = vld [vmem:[#allocation6 + $0x2c] sm:$0xf]
        %v338 = vld [vmem:[#allocation6 + $0x30] sm:$0xf]
        %v339 = vld [vmem:[#allocation6 + $0x34] sm:$0xf]
        %v340 = vld [vmem:[#allocation6 + $0x38] sm:$0xf]
        %v341 = vld [vmem:[#allocation6 + $0x3c] sm:$0xf]
        %v358 = vunpack.c.l.b16 %v326
        %v359 = vunpack.c.l.b16 %v327
        %v360 = vunpack.c.l.b16 %v328
        %v361 = vunpack.c.l.b16 %v329
        %v362 = vunpack.c.l.b16 %v330
        %v363 = vunpack.c.l.b16 %v331
        %v364 = vunpack.c.l.b16 %v332
        %v365 = vunpack.c.l.b16 %v333
        %v366 = vunpack.c.l.b16 %v334
        %v367 = vunpack.c.l.b16 %v335
        %v368 = vunpack.c.l.b16 %v336
        %v369 = vunpack.c.l.b16 %v337
        %v370 = vunpack.c.l.b16 %v338
        %v371 = vunpack.c.l.b16 %v339
        %v372 = vunpack.c.l.b16 %v340
        %v373 = vunpack.c.l.b16 %v341
        %v374 = vpack.c.b16 %v359, %v358
        %v375 = vpack.c.b16 %v361, %v360
        %v376 = vpack.c.b16 %v363, %v362
        %v377 = vpack.c.b16 %v365, %v364
        %v378 = vpack.c.b16 %v367, %v366
        %v379 = vpack.c.b16 %v369, %v368
        %v380 = vpack.c.b16 %v371, %v370
        %v381 = vpack.c.b16 %v373, %v372
        %390 = vmatpush.bf16.msra.mxu0 %v381
        %391 = vmatpush.bf16.msra.mxu0 %v380
        %392 = vmatpush.bf16.msra.mxu0 %v379
        %393 = vmatpush.bf16.msra.mxu0 %v378
        %394 = vmatpush.bf16.msra.mxu0 %v377
        %395 = vmatpush.bf16.msra.mxu0 %v376
        %396 = vmatpush.bf16.msra.mxu0 %v375
        %397 = vmatpush.bf16.msra.mxu0 %v374
        %398 = vmatmul.bf16.gmra.mxu0 %v325
        %v399 = vpop.f32.mrf.mxu0
        %v400 = vadd.f32 0.0, %v399
        %v401 = vpop.f32.mrf.mxu0
        %402 = vdwg.mxu0
        %v403 = vpack.c.bf16 %v400, %v400
        %404 = vst [vmem:[%s238] sm:$0xf] %v403
        %p405 = scmp.lt.s32.totalorder %s17, 1
        %s406 = scalar_select %p405, %s17, 1
        %s407 = smul.addr %s406, 4
        %s408 = scalar_lea.vmem %s4, %s407
        // Predicated region
        $region49: #{attention_with_fastkan.5} parent=35 // pred_check
          %p409 = pneg %p124
        $region50: #{attention_with_fastkan.5} parent=35 // pred_check_branch
          %411 = sbr.rel (%p409) target = $region52
        $region51: #{attention_with_fastkan.5} parent=35 // pred_region
          _
        $region52: #{attention_with_fastkan.5} parent=35 // pred_fallthru
          _
      $region36: #{attention_with_fastkan.5} parent=5 // pred_fallthru
        _
      %p412 = scmp.le.s32.totalorder 2, %s12
      // Predicated region
      $region53: #{attention_with_fastkan.5} parent=5 // pred_check
        %p413 = pneg %p412
      $region54: #{attention_with_fastkan.5} parent=5 // pred_check_branch
        %415 = sbr.rel (%p413) target = $region56
      $region55: #{attention_with_fastkan.5} parent=5 // pred_region
        %s416 = ssub.s32 %s12, 2
        // Predicated region
        $region57: #{attention_with_fastkan.5} parent=55 // pred_check
          %p417 = pneg %p130
        $region58: #{attention_with_fastkan.5} parent=55 // pred_check_branch
          %419 = sbr.rel (%p417) target = $region60
        $region59: #{attention_with_fastkan.5} parent=55 // pred_region
          %p420 = scmp.lt.s32.totalorder %s18, 1
          %s421 = scalar_select %p420, %s18, 1
          %s422 = smul.addr %s421, 4
          %s423 = scalar_lea.vmem %s4, %s422
        $region60: #{attention_with_fastkan.5} parent=55 // pred_fallthru
          _
      $region56: #{attention_with_fastkan.5} parent=5 // pred_fallthru
        _
    $region6: #{attention_with_fastkan.5} parent=1 // loop_footer
      %s16 = sadd.s32 1, %s12
    $region7: #{attention_with_fastkan.5} parent=1 // loop_footer_branch
      %11 = sbr.rel target = $region3
    $region8: #{attention_with_fastkan.5} parent=1 // loop_exit
      _
    %424 = vsyncpa [#allocation3], 1
    %s425 = scalar_lea.sflag [#allocation3], 1
    %426 = vsyncpa %s425, 1
    %427 = vsyncpa [#allocation5], 1

// kernel: attention_with_fastkan.4
$region0: #{attention_with_fastkan.4}
  #allocation0 [shape = 'u32[]', space=smem, size = 0x4, offset = 0x4, fixed_abs, tag = 'smem constant byte address 0x4 - core index']
  #allocation1 [shape = 'u32[72,128]{1,0:T(1,128)}', space=vmem, size = 0x9000, scoped, tag = 'internal scratch']
  %s0 = inlined_call_operand.vmem [shape: f32[16,16], index: 0, kind: input, shape index: {}]
  %s1 = inlined_call_operand.vmem [shape: f32[1,128], index: 1, kind: input, shape index: {}]
  %s2 = inlined_call_operand.vmem [shape: f32[1,128], index: 2, kind: input, shape index: {}]
  %s3 = inlined_call_operand.hbm [shape: bf16[128,128], index: 3, kind: input, shape index: {}]
  %s4 = inlined_call_operand.hbm [shape: f32[1,128], index: 4, kind: input, shape index: {}]
  %s5 = inlined_call_operand.hbm [shape: f32[1,128], index: 5, kind: input, shape index: {}]
  %s6 = inlined_call_operand.hbm [shape: bf16[128,128], index: 6, kind: input, shape index: {}]
  %s7 = inlined_call_operand.vmem [shape: bf16[16,128], index: 7, kind: output, shape index: {0}]
  %s8 = inlined_call_operand.vmem [shape: bf16[16,128], index: 8, kind: output, shape index: {1}]
  %9 = xla_tuple %s7, %s8
  %s10 = sld [smem:[#allocation0]]
  $region85: #{attention_with_fastkan.4} parent=0
    _
  %s12 = ssub.s32 1, %s10
  %s13 = scalar_select 0, %s12, %s10
  $region1: #{attention_with_fastkan.4} parent=0
    #allocation2 [shape = 'u8[32768]{0}', space=vmem, size = 0x8000, scoped, tag = 'input window, operand 3, single buffered']
    #allocation3 [shape = 's32[2]{0}', space=sflag, size = 0x8, scoped, tag = 'scoped memory for attention_with_fastkan.4']
    #allocation4 [shape = 'u8[512]{0}', space=vmem, size = 0x400, scoped, tag = 'input window, operand 4, single buffered']
    #allocation5 [shape = 's32[1]{0}', space=sflag, size = 0x4, scoped, tag = 'scoped memory for attention_with_fastkan.4']
    #allocation6 [shape = 'u8[512]{0}', space=vmem, size = 0x400, scoped, tag = 'input window, operand 5, single buffered']
    #allocation7 [shape = 'u8[32768]{0}', space=vmem, size = 0x8000, scoped, tag = 'input window, operand 6, single buffered']
    #allocation8 [shape = 's32[1]{0}', space=sflag, size = 0x4, scoped, tag = 'scoped memory for attention_with_fastkan.4']
    %14 = vsyncpa [#allocation3], 0
    %15 = vsyncpa [#allocation5], 0
    %16 = vsyncpa [#allocation8], 0
    loop: start=0, step=1, limit=4
    $region2: #{attention_with_fastkan.4} parent=1 // loop_pre_header
      _
    $region3: #{attention_with_fastkan.4} parent=1 // loop_header
      %s18 = sphi 0, %s22
      %p19 = scmp.ge.s32.totalorder %s18, 4
      %s28 = sphi 0, %s30
      %s31 = sphi 0, %s28
      %s32 = sphi 0, %s31
      %s48 = sphi 0, %s32
      %s52 = sphi 0, %s52
      %s54 = sphi 0, %s52
      %s55 = sphi 0, %s54
      %s69 = sphi 0, %s55
      %s73 = sphi 0, %s73
      %s75 = sphi 0, %s73
      %s76 = sphi 0, %s75
      %s90 = sphi 0, %s76
      %s94 = sphi 0, %s94
      %s96 = sphi 0, %s94
      %s97 = sphi 0, %s96
      %s111 = sphi 0, %s97
      %s115 = sphi 0, %s115
      %s117 = sphi 0, %s115
      %s118 = sphi 0, %s117
      %s132 = sphi 0, %s118
      %s136 = sphi 0, %s136
      %s138 = sphi 0, %s136
      %s139 = sphi 0, %s138
      %s153 = sphi 0, %s139
      %s157 = sphi 0, %s157
      %s159 = sphi 0, %s157
      %s160 = sphi 0, %s159
      %s174 = sphi 0, %s160
      %s180 = sphi 0, %s182
      %s183 = sphi 0, %s180
      %s184 = sphi 0, %s183
      %s200 = sphi 0, %s184
      %s206 = sphi 0, %s208
      %s209 = sphi 0, %s206
      %s210 = sphi 0, %s209
      %s226 = sphi 0, %s210
    $region4: #{attention_with_fastkan.4} parent=1 // loop_header_branch
      %21 = sbr.rel (%p19) target = $region8
    $region5: #{attention_with_fastkan.4} parent=1 // loop_body
      %s23 = ssub.s32 %s18, 1
      %s24 = ssub.s32 %s18, 2
      %s25 = sadd.s32 %s18, 1
      %s26 = ssub.s32 %s18, %s25
      %p27 = scmp.eq.s32.totalorder %s26, 0
      %s29 = sadd.s32 %s28, 1
      %s30 = scalar_select %p27, %s28, %s29
      %p33 = pneg %p27
      %p34 = scmp.eq.s32.totalorder %s18, 1
      %p35 = por %p33, %p34
      %p36 = scmp.ne.s32.totalorder %s28, %s31
      %p37 = scmp.eq.s32.totalorder %s18, 0
      %p38 = por %p36, %p37
      %p39 = scmp.ne.s32.totalorder %s28, %s31
      %p40 = scmp.eq.s32.totalorder %s23, 1
      %p41 = por %p39, %p40
      %p42 = scmp.ne.s32.totalorder %s31, %s32
      %p43 = scmp.eq.s32.totalorder %s23, 0
      %p44 = por %p42, %p43
      %p45 = scmp.ne.s32.totalorder %s31, %s32
      %p46 = scmp.eq.s32.totalorder %s24, 1
      %p47 = por %p45, %p46
      %p49 = scmp.ne.s32.totalorder %s32, %s48
      %p50 = scmp.eq.s32.totalorder %s24, 0
      %p51 = por %p49, %p50
      %s53 = sadd.s32 %s52, 1
      %p56 = scmp.eq.s32.totalorder %s18, 1
      %p57 = scmp.ne.s32.totalorder %s52, %s54
      %p58 = scmp.eq.s32.totalorder %s18, 0
      %p59 = por %p57, %p58
      %p60 = scmp.ne.s32.totalorder %s52, %s54
      %p61 = scmp.eq.s32.totalorder %s23, 1
      %p62 = por %p60, %p61
      %p63 = scmp.ne.s32.totalorder %s54, %s55
      %p64 = scmp.eq.s32.totalorder %s23, 0
      %p65 = por %p63, %p64
      %p66 = scmp.ne.s32.totalorder %s54, %s55
      %p67 = scmp.eq.s32.totalorder %s24, 1
      %p68 = por %p66, %p67
      %p70 = scmp.ne.s32.totalorder %s55, %s69
      %p71 = scmp.eq.s32.totalorder %s24, 0
      %p72 = por %p70, %p71
      %s74 = sadd.s32 %s73, 1
      %p77 = scmp.eq.s32.totalorder %s18, 1
      %p78 = scmp.ne.s32.totalorder %s73, %s75
      %p79 = scmp.eq.s32.totalorder %s18, 0
      %p80 = por %p78, %p79
      %p81 = scmp.ne.s32.totalorder %s73, %s75
      %p82 = scmp.eq.s32.totalorder %s23, 1
      %p83 = por %p81, %p82
      %p84 = scmp.ne.s32.totalorder %s75, %s76
      %p85 = scmp.eq.s32.totalorder %s23, 0
      %p86 = por %p84, %p85
      %p87 = scmp.ne.s32.totalorder %s75, %s76
      %p88 = scmp.eq.s32.totalorder %s24, 1
      %p89 = por %p87, %p88
      %p91 = scmp.ne.s32.totalorder %s76, %s90
      %p92 = scmp.eq.s32.totalorder %s24, 0
      %p93 = por %p91, %p92
      %s95 = sadd.s32 %s94, 1
      %p98 = scmp.eq.s32.totalorder %s18, 1
      %p99 = scmp.ne.s32.totalorder %s94, %s96
      %p100 = scmp.eq.s32.totalorder %s18, 0
      %p101 = por %p99, %p100
      %p102 = scmp.ne.s32.totalorder %s94, %s96
      %p103 = scmp.eq.s32.totalorder %s23, 1
      %p104 = por %p102, %p103
      %p105 = scmp.ne.s32.totalorder %s96, %s97
      %p106 = scmp.eq.s32.totalorder %s23, 0
      %p107 = por %p105, %p106
      %p108 = scmp.ne.s32.totalorder %s96, %s97
      %p109 = scmp.eq.s32.totalorder %s24, 1
      %p110 = por %p108, %p109
      %p112 = scmp.ne.s32.totalorder %s97, %s111
      %p113 = scmp.eq.s32.totalorder %s24, 0
      %p114 = por %p112, %p113
      %s116 = sadd.s32 %s115, 1
      %p119 = scmp.eq.s32.totalorder %s18, 1
      %p120 = scmp.ne.s32.totalorder %s115, %s117
      %p121 = scmp.eq.s32.totalorder %s18, 0
      %p122 = por %p120, %p121
      %p123 = scmp.ne.s32.totalorder %s115, %s117
      %p124 = scmp.eq.s32.totalorder %s23, 1
      %p125 = por %p123, %p124
      %p126 = scmp.ne.s32.totalorder %s117, %s118
      %p127 = scmp.eq.s32.totalorder %s23, 0
      %p128 = por %p126, %p127
      %p129 = scmp.ne.s32.totalorder %s117, %s118
      %p130 = scmp.eq.s32.totalorder %s24, 1
      %p131 = por %p129, %p130
      %p133 = scmp.ne.s32.totalorder %s118, %s132
      %p134 = scmp.eq.s32.totalorder %s24, 0
      %p135 = por %p133, %p134
      %s137 = sadd.s32 %s136, 1
      %p140 = scmp.eq.s32.totalorder %s18, 1
      %p141 = scmp.ne.s32.totalorder %s136, %s138
      %p142 = scmp.eq.s32.totalorder %s18, 0
      %p143 = por %p141, %p142
      %p144 = scmp.ne.s32.totalorder %s136, %s138
      %p145 = scmp.eq.s32.totalorder %s23, 1
      %p146 = por %p144, %p145
      %p147 = scmp.ne.s32.totalorder %s138, %s139
      %p148 = scmp.eq.s32.totalorder %s23, 0
      %p149 = por %p147, %p148
      %p150 = scmp.ne.s32.totalorder %s138, %s139
      %p151 = scmp.eq.s32.totalorder %s24, 1
      %p152 = por %p150, %p151
      %p154 = scmp.ne.s32.totalorder %s139, %s153
      %p155 = scmp.eq.s32.totalorder %s24, 0
      %p156 = por %p154, %p155
      %s158 = sadd.s32 %s157, 1
      %p161 = scmp.eq.s32.totalorder %s18, 1
      %p162 = scmp.ne.s32.totalorder %s157, %s159
      %p163 = scmp.eq.s32.totalorder %s18, 0
      %p164 = por %p162, %p163
      %p165 = scmp.ne.s32.totalorder %s157, %s159
      %p166 = scmp.eq.s32.totalorder %s23, 1
      %p167 = por %p165, %p166
      %p168 = scmp.ne.s32.totalorder %s159, %s160
      %p169 = scmp.eq.s32.totalorder %s23, 0
      %p170 = por %p168, %p169
      %p171 = scmp.ne.s32.totalorder %s159, %s160
      %p172 = scmp.eq.s32.totalorder %s24, 1
      %p173 = por %p171, %p172
      %p175 = scmp.ne.s32.totalorder %s160, %s174
      %p176 = scmp.eq.s32.totalorder %s24, 0
      %p177 = por %p175, %p176
      %s178 = ssub.s32 %s18, %s25
      %p179 = scmp.eq.s32.totalorder %s178, 0
      %s181 = sadd.s32 %s180, 1
      %s182 = scalar_select %p179, %s180, %s181
      %p185 = pneg %p179
      %p186 = scmp.eq.s32.totalorder %s18, 1
      %p187 = por %p185, %p186
      %p188 = scmp.ne.s32.totalorder %s180, %s183
      %p189 = scmp.eq.s32.totalorder %s18, 0
      %p190 = por %p188, %p189
      %p191 = scmp.ne.s32.totalorder %s180, %s183
      %p192 = scmp.eq.s32.totalorder %s23, 1
      %p193 = por %p191, %p192
      %p194 = scmp.ne.s32.totalorder %s183, %s184
      %p195 = scmp.eq.s32.totalorder %s23, 0
      %p196 = por %p194, %p195
      %p197 = scmp.ne.s32.totalorder %s183, %s184
      %p198 = scmp.eq.s32.totalorder %s24, 1
      %p199 = por %p197, %p198
      %p201 = scmp.ne.s32.totalorder %s184, %s200
      %p202 = scmp.eq.s32.totalorder %s24, 0
      %p203 = por %p201, %p202
      %s204 = ssub.s32 %s18, %s25
      %p205 = scmp.eq.s32.totalorder %s204, 0
      %s207 = sadd.s32 %s206, 1
      %s208 = scalar_select %p205, %s206, %s207
      %p211 = pneg %p205
      %p212 = scmp.eq.s32.totalorder %s18, 1
      %p213 = por %p211, %p212
      %p214 = scmp.ne.s32.totalorder %s206, %s209
      %p215 = scmp.eq.s32.totalorder %s18, 0
      %p216 = por %p214, %p215
      %p217 = scmp.ne.s32.totalorder %s206, %s209
      %p218 = scmp.eq.s32.totalorder %s23, 1
      %p219 = por %p217, %p218
      %p220 = scmp.ne.s32.totalorder %s209, %s210
      %p221 = scmp.eq.s32.totalorder %s23, 0
      %p222 = por %p220, %p221
      %p223 = scmp.ne.s32.totalorder %s209, %s210
      %p224 = scmp.eq.s32.totalorder %s24, 1
      %p225 = por %p223, %p224
      %p227 = scmp.ne.s32.totalorder %s210, %s226
      %p228 = scmp.eq.s32.totalorder %s24, 0
      %p229 = por %p227, %p228
      %p230 = scmp.le.s32.totalorder 1, %s18
      %p231 = scmp.lt.s32.totalorder %s18, 3
      %p232 = pnand %p230, %p231
      %p233 = pneg %p232
      // Predicated region
      $region9: #{attention_with_fastkan.4} parent=5 // pred_check
        _
      $region10: #{attention_with_fastkan.4} parent=5 // pred_check_branch
        %235 = sbr.rel (%p232) target = $region12
      $region11: #{attention_with_fastkan.4} parent=5 // pred_region
        %s236 = ssub.s32 %s18, 1
        // Predicated region
        $region13: #{attention_with_fastkan.4} parent=11 // pred_check
          %p237 = pneg %p65
        $region14: #{attention_with_fastkan.4} parent=11 // pred_check_branch
          %239 = sbr.rel (%p237) target = $region16
        $region15: #{attention_with_fastkan.4} parent=11 // pred_region
          _
        $region16: #{attention_with_fastkan.4} parent=11 // pred_fallthru
          _
        // Predicated region
        $region17: #{attention_with_fastkan.4} parent=11 // pred_check
          %p240 = pneg %p86
        $region18: #{attention_with_fastkan.4} parent=11 // pred_check_branch
          %242 = sbr.rel (%p240) target = $region20
        $region19: #{attention_with_fastkan.4} parent=11 // pred_region
          _
        $region20: #{attention_with_fastkan.4} parent=11 // pred_fallthru
          _
        // Predicated region
        $region21: #{attention_with_fastkan.4} parent=11 // pred_check
          %p243 = pneg %p107
        $region22: #{attention_with_fastkan.4} parent=11 // pred_check_branch
          %245 = sbr.rel (%p243) target = $region24
        $region23: #{attention_with_fastkan.4} parent=11 // pred_region
          %247 = vsyncadd [#allocation3], 0
          %s248 = sshll.u32 %s3, 4
          %s249 = int_to_ptr.hbm [resolvable:$true] %s248
          %s250 = sshll.u32 [#allocation2], 4
          %s251 = int_to_ptr.vmem [resolvable:$true] %s250
          %256 = dma.hbm_to_vmem [thread:$0]  %s249, 1024, %s251, [#allocation3], 64, 64, 4
        $region24: #{attention_with_fastkan.4} parent=11 // pred_fallthru
          _
        // Predicated region
        $region25: #{attention_with_fastkan.4} parent=11 // pred_check
          %p257 = pneg %p128
        $region26: #{attention_with_fastkan.4} parent=11 // pred_check_branch
          %259 = sbr.rel (%p257) target = $region28
        $region27: #{attention_with_fastkan.4} parent=11 // pred_region
          %261 = vsyncadd [#allocation5], 0
          %s263 = sshll.u32 %s4, 4
          %s264 = int_to_ptr.hbm [resolvable:$true] %s263
          %s265 = sshll.u32 [#allocation4], 4
          %s266 = int_to_ptr.vmem [resolvable:$true] %s265
          %268 = dma.hbm_to_vmem [thread:$0]  %s264, 16, %s266, [#allocation5]
        $region28: #{attention_with_fastkan.4} parent=11 // pred_fallthru
          _
        // Predicated region
        $region29: #{attention_with_fastkan.4} parent=11 // pred_check
          %p269 = pneg %p149
        $region30: #{attention_with_fastkan.4} parent=11 // pred_check_branch
          %271 = sbr.rel (%p269) target = $region32
        $region31: #{attention_with_fastkan.4} parent=11 // pred_region
          %273 = vsyncadd [#allocation5], 0
          %s275 = sshll.u32 %s5, 4
          %s276 = int_to_ptr.hbm [resolvable:$true] %s275
          %s277 = sshll.u32 [#allocation6], 4
          %s278 = int_to_ptr.vmem [resolvable:$true] %s277
          %280 = dma.hbm_to_vmem [thread:$0]  %s276, 16, %s278, [#allocation5]
        $region32: #{attention_with_fastkan.4} parent=11 // pred_fallthru
          _
        // Predicated region
        $region33: #{attention_with_fastkan.4} parent=11 // pred_check
          %p281 = pneg %p170
        $region34: #{attention_with_fastkan.4} parent=11 // pred_check_branch
          %283 = sbr.rel (%p281) target = $region36
        $region35: #{attention_with_fastkan.4} parent=11 // pred_region
          %285 = vsyncadd [#allocation8], 0
          %s286 = sshll.u32 %s6, 4
          %s287 = int_to_ptr.hbm [resolvable:$true] %s286
          %s288 = sshll.u32 [#allocation7], 4
          %s289 = int_to_ptr.vmem [resolvable:$true] %s288
          %294 = dma.hbm_to_vmem [thread:$0]  %s287, 1024, %s289, [#allocation8], 64, 64, 4
        $region36: #{attention_with_fastkan.4} parent=11 // pred_fallthru
          _
      $region12: #{attention_with_fastkan.4} parent=5 // pred_fallthru
        _
      %p295 = scmp.lt.s32.totalorder %s18, 2
      // Predicated region
      $region37: #{attention_with_fastkan.4} parent=5 // pred_check
        %p296 = pneg %p295
      $region38: #{attention_with_fastkan.4} parent=5 // pred_check_branch
        %298 = sbr.rel (%p296) target = $region40
      $region39: #{attention_with_fastkan.4} parent=5 // pred_region
        // Predicated region
        $region41: #{attention_with_fastkan.4} parent=39 // pred_check
          %p299 = pneg %p38
        $region42: #{attention_with_fastkan.4} parent=39 // pred_check_branch
          %301 = sbr.rel (%p299) target = $region44
        $region43: #{attention_with_fastkan.4} parent=39 // pred_region
          %p302 = scmp.lt.s32.totalorder %s18, 1
          %s303 = scalar_select %p302, %s18, 1
          %s304 = smul.addr %s303, 8
          %s305 = scalar_lea.vmem %s0, %s304
        $region44: #{attention_with_fastkan.4} parent=39 // pred_fallthru
          _
      $region40: #{attention_with_fastkan.4} parent=5 // pred_fallthru
        _
      %p306 = scmp.le.s32.totalorder 1, %s18
      %p307 = scmp.lt.s32.totalorder %s18, 3
      %p308 = pnand %p306, %p307
      %p309 = pneg %p308
      // Predicated region
      $region45: #{attention_with_fastkan.4} parent=5 // pred_check
        _
      $region46: #{attention_with_fastkan.4} parent=5 // pred_check_branch
        %311 = sbr.rel (%p308) target = $region48
      $region47: #{attention_with_fastkan.4} parent=5 // pred_region
        %s312 = ssub.s32 %s18, 1
        // Predicated region
        $region49: #{attention_with_fastkan.4} parent=47 // pred_check
          %p313 = pneg %p107
        $region50: #{attention_with_fastkan.4} parent=47 // pred_check_branch
          %315 = sbr.rel (%p313) target = $region52
        $region51: #{attention_with_fastkan.4} parent=47 // pred_region
          %317 = dma.done [#allocation3], 1024
        $region52: #{attention_with_fastkan.4} parent=47 // pred_fallthru
          _
        // Predicated region
        $region53: #{attention_with_fastkan.4} parent=47 // pred_check
          %p318 = pneg %p128
        $region54: #{attention_with_fastkan.4} parent=47 // pred_check_branch
          %320 = sbr.rel (%p318) target = $region56
        $region55: #{attention_with_fastkan.4} parent=47 // pred_region
          %322 = dma.done [#allocation5], 16
        $region56: #{attention_with_fastkan.4} parent=47 // pred_fallthru
          _
        // Predicated region
        $region57: #{attention_with_fastkan.4} parent=47 // pred_check
          %p323 = pneg %p149
        $region58: #{attention_with_fastkan.4} parent=47 // pred_check_branch
          %325 = sbr.rel (%p323) target = $region60
        $region59: #{attention_with_fastkan.4} parent=47 // pred_region
          %327 = dma.done [#allocation5], 16
        $region60: #{attention_with_fastkan.4} parent=47 // pred_fallthru
          _
        // Predicated region
        $region61: #{attention_with_fastkan.4} parent=47 // pred_check
          %p328 = pneg %p170
        $region62: #{attention_with_fastkan.4} parent=47 // pred_check_branch
          %330 = sbr.rel (%p328) target = $region64
        $region63: #{attention_with_fastkan.4} parent=47 // pred_region
          %332 = dma.done [#allocation8], 1024
        $region64: #{attention_with_fastkan.4} parent=47 // pred_fallthru
          _
        %p333 = scmp.lt.s32.totalorder %s23, 1
        %s334 = scalar_select %p333, %s23, 1
        %s335 = smul.addr %s334, 8
        %s336 = scalar_lea.vmem %s0, %s335
        %p337 = pneg %p44
        %p338 = pneg %p41
        %p339 = pneg %p65
        %p340 = pneg %p62
        %p341 = pneg %p86
        %p342 = pneg %p83
        %p343 = pneg %p107
        %p344 = pneg %p104
        %p345 = pneg %p128
        %p346 = pneg %p125
        %p347 = pneg %p149
        %p348 = pneg %p146
        %p349 = pneg %p170
        %p350 = pneg %p167
        %p351 = pneg %p196
        %p352 = pneg %p193
        %p353 = scmp.lt.s32.totalorder %s23, 1
        %s354 = scalar_select %p353, %s23, 1
        %s355 = smul.addr %s354, 4
        %s356 = scalar_lea.vmem %s7, %s355
        %p357 = pneg %p222
        %p358 = pneg %p219
        %p359 = scmp.lt.s32.totalorder %s23, 1
        %s360 = scalar_select %p359, %s23, 1
        %s361 = smul.addr %s360, 4
        %s362 = scalar_lea.vmem %s8, %s361
        %p363 = scmp.lt.s32.totalorder %s23, 1
        %s364 = scalar_select %p363, %s23, 1
        %s365 = smul.addr %s364, 8
        %s366 = scalar_lea.vmem %s0, %s365
        %p367 = scmp.lt.s32.totalorder %s23, 1
        %s368 = scalar_select %p367, %s23, 1
        %s369 = smul.addr %s368, 4
        %s370 = scalar_lea.vmem %s7, %s369
        %p371 = scmp.lt.s32.totalorder %s23, 1
        %s372 = scalar_select %p371, %s23, 1
        %s373 = smul.addr %s372, 4
        %s374 = scalar_lea.vmem %s8, %s373
        %v375 = vld [vmem:[%s366] sm:$0xff]
        %vm376 = vcmask 130048
        %v377 = vsel %vm376, %v375, 0.0
        %378 = vadd.xlane.f32.xlu0 %v377
        %v379 = vpop.xlane.xlu0 %378
        %v380 = vrcp.pop 16.0
        %v381 = vmul.f32 16.0, %v380
        %v382 = vsub.f32 1.0, %v381
        %v383 = vmul.f32 %v380, %v382
        %v384 = vadd.f32 %v380, %v383
        %vm385 = vweird.f32 %v380
        %v386 = vsel %vm385, %v380, %v384
        %v387 = vmul.f32 %v379, %v386
        %v388 = vsub.f32 %v375, %v387
        %v389 = vmul.f32 %v388, %v388
        %v390 = vsel %vm376, %v389, 0.0
        %391 = vadd.xlane.f32.xlu0 %v390
        %v392 = vpop.xlane.xlu0 %391
        %v393 = vmul.f32 %v392, %v386
        %v394 = vadd.f32 %v393, 1e-05
        %v395 = vrsqrt.pop %v394
        %v396 = vmul.f32 %v395, %v394
        %v397 = vmul.f32 %v396, %v395
        %v398 = vmul.f32 0.5, %v397
        %v399 = vsub.f32 1.5, %v398
        %v400 = vmul.f32 %v395, %v399
        %vm401 = vweird.f32 %v394
        %vm402 = vweird.f32 %v395
        %vm403 = vmor %vm401, %vm402
        %v404 = vsel %vm403, %v395, %v400
        %v405 = vmul.f32 %v388, %v404
        %407 = vrot.lane.b32.xlu0 %v405, 16
        %v408 = vpop.permute.xlu0 %407
        %410 = vrot.lane.b32.xlu0 %v405, 32
        %v411 = vpop.permute.xlu0 %410
        %413 = vrot.lane.b32.xlu0 %v405, 48
        %v414 = vpop.permute.xlu0 %413
        %416 = vrot.lane.b32.xlu0 %v405, 64
        %v417 = vpop.permute.xlu0 %416
        %419 = vrot.lane.b32.xlu0 %v405, 80
        %v420 = vpop.permute.xlu0 %419
        %422 = vrot.lane.b32.xlu0 %v405, 96
        %v423 = vpop.permute.xlu0 %422
        %425 = vrot.lane.b32.xlu0 %v405, 112
        %v426 = vpop.permute.xlu0 %425
        %v428 = vsel %vm376, %v405, %v408
        %vm429 = vcmask 261120
        %v430 = vsel %vm429, %v428, %v411
        %vm431 = vcmask 392192
        %v432 = vsel %vm431, %v430, %v414
        %vm433 = vcmask 523264
        %v434 = vsel %vm433, %v432, %v417
        %vm435 = vcmask 654336
        %v436 = vsel %vm435, %v434, %v420
        %vm437 = vcmask 785408
        %v438 = vsel %vm437, %v436, %v423
        %vm439 = vcmask 916480
        %v440 = vsel %vm439, %v438, %v426
        %v441 = vld [vmem:[%s1] sm:$0x1]
        %v443 = vperm.slane %v441, 0
        %v445 = vmul.f32 %v440, %v443
        %v446 = vld [vmem:[%s2] sm:$0x1]
        %v448 = vperm.slane %v446, 0
        %v450 = vadd.f32 %v445, %v448
        %v451 = vpack.c.bf16 %v450, %v450
        %v452 = vunpack.c.l.bf16 %v451
        %v453 = vmul.f32 %v452, %v452
        %v454 = vpack.c.bf16 %v453, %v453
        %v455 = vunpack.c.l.bf16 %v454
        %v456 = vsub.f32 0.0, %v455
        %v457 = vpack.c.bf16 %v456, %v456
        %v458 = vunpack.c.l.bf16 %v457
        %v459 = vmul.f32 %v458, 1.442695
        %v460 = vpow.pop %v459
        %v461 = vpack.c.bf16 %v460, %v460
        %v462 = vld [vmem:[#allocation2] sm:$0xf]
        %v463 = vld [vmem:[#allocation2 + $0x4] sm:$0xf]
        %v464 = vld [vmem:[#allocation2 + $0x8] sm:$0xf]
        %v465 = vld [vmem:[#allocation2 + $0xc] sm:$0xf]
        %v466 = vld [vmem:[#allocation2 + $0x10] sm:$0xf]
        %v467 = vld [vmem:[#allocation2 + $0x14] sm:$0xf]
        %v468 = vld [vmem:[#allocation2 + $0x18] sm:$0xf]
        %v469 = vld [vmem:[#allocation2 + $0x1c] sm:$0xf]
        %v470 = vld [vmem:[#allocation2 + $0x20] sm:$0xf]
        %v471 = vld [vmem:[#allocation2 + $0x24] sm:$0xf]
        %v472 = vld [vmem:[#allocation2 + $0x28] sm:$0xf]
        %v473 = vld [vmem:[#allocation2 + $0x2c] sm:$0xf]
        %v474 = vld [vmem:[#allocation2 + $0x30] sm:$0xf]
        %v475 = vld [vmem:[#allocation2 + $0x34] sm:$0xf]
        %v476 = vld [vmem:[#allocation2 + $0x38] sm:$0xf]
        %v477 = vld [vmem:[#allocation2 + $0x3c] sm:$0xf]
        %v494 = vunpack.c.l.b16 %v462
        %v495 = vunpack.c.l.b16 %v463
        %v496 = vunpack.c.l.b16 %v464
        %v497 = vunpack.c.l.b16 %v465
        %v498 = vunpack.c.l.b16 %v466
        %v499 = vunpack.c.l.b16 %v467
        %v500 = vunpack.c.l.b16 %v468
        %v501 = vunpack.c.l.b16 %v469
        %v502 = vunpack.c.l.b16 %v470
        %v503 = vunpack.c.l.b16 %v471
        %v504 = vunpack.c.l.b16 %v472
        %v505 = vunpack.c.l.b16 %v473
        %v506 = vunpack.c.l.b16 %v474
        %v507 = vunpack.c.l.b16 %v475
        %v508 = vunpack.c.l.b16 %v476
        %v509 = vunpack.c.l.b16 %v477
        %v510 = vpack.c.b16 %v495, %v494
        %v511 = vpack.c.b16 %v497, %v496
        %v512 = vpack.c.b16 %v499, %v498
        %v513 = vpack.c.b16 %v501, %v500
        %v514 = vpack.c.b16 %v503, %v502
        %v515 = vpack.c.b16 %v505, %v504
        %v516 = vpack.c.b16 %v507, %v506
        %v517 = vpack.c.b16 %v509, %v508
        %526 = vmatpush.bf16.msra.mxu0 %v517
        %527 = vmatpush.bf16.msra.mxu0 %v516
        %528 = vmatpush.bf16.msra.mxu0 %v515
        %529 = vmatpush.bf16.msra.mxu0 %v514
        %530 = vmatpush.bf16.msra.mxu0 %v513
        %531 = vmatpush.bf16.msra.mxu0 %v512
        %532 = vmatpush.bf16.msra.mxu0 %v511
        %533 = vmatpush.bf16.msra.mxu0 %v510
        %534 = vmatmul.bf16.gmra.mxu0 %v461
        %v535 = vpop.f32.mrf.mxu0
        %v536 = vadd.f32 0.0, %v535
        %v537 = vpop.f32.mrf.mxu0
        %538 = vdwg.mxu0
        %v539 = vpack.c.bf16 %v536, %v536
        %540 = vst [vmem:[%s370] sm:$0xf] %v539
        %v541 = vld [vmem:[#allocation4] sm:$0x1]
        %v543 = vperm.slane %v541, 0
        %v545 = vmul.f32 %v440, %v543
        %v546 = vld [vmem:[#allocation6] sm:$0x1]
        %v548 = vperm.slane %v546, 0
        %v550 = vadd.f32 %v545, %v548
        %v551 = vpack.c.bf16 %v550, %v550
        %v552 = vunpack.c.l.bf16 %v551
        %v553 = vmul.f32 %v552, %v552
        %v554 = vpack.c.bf16 %v553, %v553
        %v555 = vunpack.c.l.bf16 %v554
        %v556 = vsub.f32 0.0, %v555
        %v557 = vpack.c.bf16 %v556, %v556
        %v558 = vunpack.c.l.bf16 %v557
        %v559 = vmul.f32 %v558, 1.442695
        %v560 = vpow.pop %v559
        %v561 = vpack.c.bf16 %v560, %v560
        %v562 = vld [vmem:[#allocation7] sm:$0xf]
        %v563 = vld [vmem:[#allocation7 + $0x4] sm:$0xf]
        %v564 = vld [vmem:[#allocation7 + $0x8] sm:$0xf]
        %v565 = vld [vmem:[#allocation7 + $0xc] sm:$0xf]
        %v566 = vld [vmem:[#allocation7 + $0x10] sm:$0xf]
        %v567 = vld [vmem:[#allocation7 + $0x14] sm:$0xf]
        %v568 = vld [vmem:[#allocation7 + $0x18] sm:$0xf]
        %v569 = vld [vmem:[#allocation7 + $0x1c] sm:$0xf]
        %v570 = vld [vmem:[#allocation7 + $0x20] sm:$0xf]
        %v571 = vld [vmem:[#allocation7 + $0x24] sm:$0xf]
        %v572 = vld [vmem:[#allocation7 + $0x28] sm:$0xf]
        %v573 = vld [vmem:[#allocation7 + $0x2c] sm:$0xf]
        %v574 = vld [vmem:[#allocation7 + $0x30] sm:$0xf]
        %v575 = vld [vmem:[#allocation7 + $0x34] sm:$0xf]
        %v576 = vld [vmem:[#allocation7 + $0x38] sm:$0xf]
        %v577 = vld [vmem:[#allocation7 + $0x3c] sm:$0xf]
        %v594 = vunpack.c.l.b16 %v562
        %v595 = vunpack.c.l.b16 %v563
        %v596 = vunpack.c.l.b16 %v564
        %v597 = vunpack.c.l.b16 %v565
        %v598 = vunpack.c.l.b16 %v566
        %v599 = vunpack.c.l.b16 %v567
        %v600 = vunpack.c.l.b16 %v568
        %v601 = vunpack.c.l.b16 %v569
        %v602 = vunpack.c.l.b16 %v570
        %v603 = vunpack.c.l.b16 %v571
        %v604 = vunpack.c.l.b16 %v572
        %v605 = vunpack.c.l.b16 %v573
        %v606 = vunpack.c.l.b16 %v574
        %v607 = vunpack.c.l.b16 %v575
        %v608 = vunpack.c.l.b16 %v576
        %v609 = vunpack.c.l.b16 %v577
        %v610 = vpack.c.b16 %v595, %v594
        %v611 = vpack.c.b16 %v597, %v596
        %v612 = vpack.c.b16 %v599, %v598
        %v613 = vpack.c.b16 %v601, %v600
        %v614 = vpack.c.b16 %v603, %v602
        %v615 = vpack.c.b16 %v605, %v604
        %v616 = vpack.c.b16 %v607, %v606
        %v617 = vpack.c.b16 %v609, %v608
        %626 = vmatpush.bf16.msra.mxu0 %v617
        %627 = vmatpush.bf16.msra.mxu0 %v616
        %628 = vmatpush.bf16.msra.mxu0 %v615
        %629 = vmatpush.bf16.msra.mxu0 %v614
        %630 = vmatpush.bf16.msra.mxu0 %v613
        %631 = vmatpush.bf16.msra.mxu0 %v612
        %632 = vmatpush.bf16.msra.mxu0 %v611
        %633 = vmatpush.bf16.msra.mxu0 %v610
        %634 = vmatmul.bf16.gmra.mxu0 %v561
        %v635 = vpop.f32.mrf.mxu0
        %v636 = vadd.f32 0.0, %v635
        %v637 = vpop.f32.mrf.mxu0
        %638 = vdwg.mxu0
        %v639 = vpack.c.bf16 %v636, %v636
        %640 = vst [vmem:[%s374] sm:$0xf] %v639
        %p641 = scmp.lt.s32.totalorder %s23, 1
        %s642 = scalar_select %p641, %s23, 1
        %s643 = smul.addr %s642, 4
        %s644 = scalar_lea.vmem %s7, %s643
        %p645 = scmp.lt.s32.totalorder %s23, 1
        %s646 = scalar_select %p645, %s23, 1
        %s647 = smul.addr %s646, 4
        %s648 = scalar_lea.vmem %s8, %s647
        // Predicated region
        $region65: #{attention_with_fastkan.4} parent=47 // pred_check
          %p649 = pneg %p193
        $region66: #{attention_with_fastkan.4} parent=47 // pred_check_branch
          %651 = sbr.rel (%p649) target = $region68
        $region67: #{attention_with_fastkan.4} parent=47 // pred_region
          _
        $region68: #{attention_with_fastkan.4} parent=47 // pred_fallthru
          _
        // Predicated region
        $region69: #{attention_with_fastkan.4} parent=47 // pred_check
          %p652 = pneg %p219
        $region70: #{attention_with_fastkan.4} parent=47 // pred_check_branch
          %654 = sbr.rel (%p652) target = $region72
        $region71: #{attention_with_fastkan.4} parent=47 // pred_region
          _
        $region72: #{attention_with_fastkan.4} parent=47 // pred_fallthru
          _
      $region48: #{attention_with_fastkan.4} parent=5 // pred_fallthru
        _
      %p655 = scmp.le.s32.totalorder 2, %s18
      // Predicated region
      $region73: #{attention_with_fastkan.4} parent=5 // pred_check
        %p656 = pneg %p655
      $region74: #{attention_with_fastkan.4} parent=5 // pred_check_branch
        %658 = sbr.rel (%p656) target = $region76
      $region75: #{attention_with_fastkan.4} parent=5 // pred_region
        %s659 = ssub.s32 %s18, 2
        // Predicated region
        $region77: #{attention_with_fastkan.4} parent=75 // pred_check
          %p660 = pneg %p199
        $region78: #{attention_with_fastkan.4} parent=75 // pred_check_branch
          %662 = sbr.rel (%p660) target = $region80
        $region79: #{attention_with_fastkan.4} parent=75 // pred_region
          %p663 = scmp.lt.s32.totalorder %s24, 1
          %s664 = scalar_select %p663, %s24, 1
          %s665 = smul.addr %s664, 4
          %s666 = scalar_lea.vmem %s7, %s665
        $region80: #{attention_with_fastkan.4} parent=75 // pred_fallthru
          _
        // Predicated region
        $region81: #{attention_with_fastkan.4} parent=75 // pred_check
          %p667 = pneg %p225
        $region82: #{attention_with_fastkan.4} parent=75 // pred_check_branch
          %669 = sbr.rel (%p667) target = $region84
        $region83: #{attention_with_fastkan.4} parent=75 // pred_region
          %p670 = scmp.lt.s32.totalorder %s24, 1
          %s671 = scalar_select %p670, %s24, 1
          %s672 = smul.addr %s671, 4
          %s673 = scalar_lea.vmem %s8, %s672
        $region84: #{attention_with_fastkan.4} parent=75 // pred_fallthru
          _
      $region76: #{attention_with_fastkan.4} parent=5 // pred_fallthru
        _
    $region6: #{attention_with_fastkan.4} parent=1 // loop_footer
      %s22 = sadd.s32 1, %s18
    $region7: #{attention_with_fastkan.4} parent=1 // loop_footer_branch
      %17 = sbr.rel target = $region3
    $region8: #{attention_with_fastkan.4} parent=1 // loop_exit
      _
    %674 = vsyncpa [#allocation3], 1
    %s675 = scalar_lea.sflag [#allocation3], 1
    %676 = vsyncpa %s675, 1
    %677 = vsyncpa [#allocation5], 1
    %678 = vsyncpa [#allocation8], 1

// kernel: attention_with_fastkan.7
$region0: #{attention_with_fastkan.7}
  #allocation0 [shape = 'u32[]', space=smem, size = 0x4, offset = 0x4, fixed_abs, tag = 'smem constant byte address 0x4 - core index']
  #allocation1 [shape = 'u32[72,128]{1,0:T(1,128)}', space=vmem, size = 0x9000, scoped, tag = 'internal scratch']
  #allocation2 [shape = 'f32[1,8,32]{2,1,0:T(8,128)}', space=vmem, size = 0x1000, scoped, tag = 'scratch operand']
  %s0 = inlined_call_operand.vmem [shape: bf16[2,8,32], index: 0, kind: input, shape index: {}]
  %s1 = inlined_call_operand.vmem [shape: bf16[2,8,32], index: 1, kind: input, shape index: {}]
  %s2 = inlined_call_operand.vmem [shape: bf16[2,8,32], index: 2, kind: input, shape index: {}]
  %s3 = inlined_call_operand.vmem [shape: bf16[2,8,32], index: 3, kind: input, shape index: {}]
  %s4 = inlined_call_operand.vmem [shape: f32[1,256], index: 4, kind: input, shape index: {}]
  %s5 = inlined_call_operand.vmem [shape: f32[1,256], index: 5, kind: input, shape index: {}]
  %s6 = inlined_call_operand.hbm [shape: bf16[256,128], index: 6, kind: input, shape index: {}]
  %s7 = inlined_call_operand.hbm [shape: f32[2,8,128], index: 7, kind: output, shape index: {}]
  %s8 = sld [smem:[#allocation0]]
  $region65: #{attention_with_fastkan.7} parent=0
    _
  %s10 = ssub.s32 1, %s8
  %s11 = scalar_select 0, %s10, %s8
  $region1: #{attention_with_fastkan.7} parent=0
    #allocation3 [shape = 'u8[65536]{0}', space=vmem, size = 0x10000, scoped, tag = 'input window, operand 6, single buffered']
    #allocation4 [shape = 's32[2]{0}', space=sflag, size = 0x8, scoped, tag = 'scoped memory for attention_with_fastkan.7']
    #allocation5 [shape = 's32[2]{0}', space=sflag, size = 0x8, scoped, tag = 'scoped memory for attention_with_fastkan.7']
    #allocation6 [shape = 'u8[8192]{0}', space=vmem, size = 0x2000, scoped, tag = 'output window, operand 0']
    %12 = vsyncpa [#allocation4], 0
    %13 = vsyncpa [#allocation5], 0
    %s14 = scalar_lea.sflag [#allocation5], 1
    %15 = vsyncpa %s14, 0
    loop: start=0, step=1, limit=4
    $region2: #{attention_with_fastkan.7} parent=1 // loop_pre_header
      _
    $region3: #{attention_with_fastkan.7} parent=1 // loop_header
      %s17 = sphi 0, %s21
      %p18 = scmp.ge.s32.totalorder %s17, 4
      %s27 = sphi 0, %s29
      %s30 = sphi 0, %s27
      %s31 = sphi 0, %s30
      %s47 = sphi 0, %s31
      %s53 = sphi 0, %s55
      %s56 = sphi 0, %s53
      %s57 = sphi 0, %s56
      %s73 = sphi 0, %s57
      %s79 = sphi 0, %s81
      %s82 = sphi 0, %s79
      %s83 = sphi 0, %s82
      %s99 = sphi 0, %s83
      %s105 = sphi 0, %s107
      %s108 = sphi 0, %s105
      %s109 = sphi 0, %s108
      %s125 = sphi 0, %s109
      %s129 = sphi 0, %s129
      %s131 = sphi 0, %s129
      %s132 = sphi 0, %s131
      %s146 = sphi 0, %s132
      %s150 = sphi 0, %s150
      %s152 = sphi 0, %s150
      %s153 = sphi 0, %s152
      %s167 = sphi 0, %s153
      %s171 = sphi 0, %s171
      %s173 = sphi 0, %s171
      %s174 = sphi 0, %s173
      %s188 = sphi 0, %s174
      %s194 = sphi 0, %s196
      %s197 = sphi 0, %s194
      %s198 = sphi 0, %s197
      %s214 = sphi 0, %s198
    $region4: #{attention_with_fastkan.7} parent=1 // loop_header_branch
      %20 = sbr.rel (%p18) target = $region8
    $region5: #{attention_with_fastkan.7} parent=1 // loop_body
      %s22 = ssub.s32 %s17, 1
      %s23 = ssub.s32 %s17, 2
      %s24 = sadd.s32 %s17, 1
      %s25 = ssub.s32 %s17, %s24
      %p26 = scmp.eq.s32.totalorder %s25, 0
      %s28 = sadd.s32 %s27, 1
      %s29 = scalar_select %p26, %s27, %s28
      %p32 = pneg %p26
      %p33 = scmp.eq.s32.totalorder %s17, 1
      %p34 = por %p32, %p33
      %p35 = scmp.ne.s32.totalorder %s27, %s30
      %p36 = scmp.eq.s32.totalorder %s17, 0
      %p37 = por %p35, %p36
      %p38 = scmp.ne.s32.totalorder %s27, %s30
      %p39 = scmp.eq.s32.totalorder %s22, 1
      %p40 = por %p38, %p39
      %p41 = scmp.ne.s32.totalorder %s30, %s31
      %p42 = scmp.eq.s32.totalorder %s22, 0
      %p43 = por %p41, %p42
      %p44 = scmp.ne.s32.totalorder %s30, %s31
      %p45 = scmp.eq.s32.totalorder %s23, 1
      %p46 = por %p44, %p45
      %p48 = scmp.ne.s32.totalorder %s31, %s47
      %p49 = scmp.eq.s32.totalorder %s23, 0
      %p50 = por %p48, %p49
      %s51 = ssub.s32 %s17, %s24
      %p52 = scmp.eq.s32.totalorder %s51, 0
      %s54 = sadd.s32 %s53, 1
      %s55 = scalar_select %p52, %s53, %s54
      %p58 = pneg %p52
      %p59 = scmp.eq.s32.totalorder %s17, 1
      %p60 = por %p58, %p59
      %p61 = scmp.ne.s32.totalorder %s53, %s56
      %p62 = scmp.eq.s32.totalorder %s17, 0
      %p63 = por %p61, %p62
      %p64 = scmp.ne.s32.totalorder %s53, %s56
      %p65 = scmp.eq.s32.totalorder %s22, 1
      %p66 = por %p64, %p65
      %p67 = scmp.ne.s32.totalorder %s56, %s57
      %p68 = scmp.eq.s32.totalorder %s22, 0
      %p69 = por %p67, %p68
      %p70 = scmp.ne.s32.totalorder %s56, %s57
      %p71 = scmp.eq.s32.totalorder %s23, 1
      %p72 = por %p70, %p71
      %p74 = scmp.ne.s32.totalorder %s57, %s73
      %p75 = scmp.eq.s32.totalorder %s23, 0
      %p76 = por %p74, %p75
      %s77 = ssub.s32 %s17, %s24
      %p78 = scmp.eq.s32.totalorder %s77, 0
      %s80 = sadd.s32 %s79, 1
      %s81 = scalar_select %p78, %s79, %s80
      %p84 = pneg %p78
      %p85 = scmp.eq.s32.totalorder %s17, 1
      %p86 = por %p84, %p85
      %p87 = scmp.ne.s32.totalorder %s79, %s82
      %p88 = scmp.eq.s32.totalorder %s17, 0
      %p89 = por %p87, %p88
      %p90 = scmp.ne.s32.totalorder %s79, %s82
      %p91 = scmp.eq.s32.totalorder %s22, 1
      %p92 = por %p90, %p91
      %p93 = scmp.ne.s32.totalorder %s82, %s83
      %p94 = scmp.eq.s32.totalorder %s22, 0
      %p95 = por %p93, %p94
      %p96 = scmp.ne.s32.totalorder %s82, %s83
      %p97 = scmp.eq.s32.totalorder %s23, 1
      %p98 = por %p96, %p97
      %p100 = scmp.ne.s32.totalorder %s83, %s99
      %p101 = scmp.eq.s32.totalorder %s23, 0
      %p102 = por %p100, %p101
      %s103 = ssub.s32 %s17, %s24
      %p104 = scmp.eq.s32.totalorder %s103, 0
      %s106 = sadd.s32 %s105, 1
      %s107 = scalar_select %p104, %s105, %s106
      %p110 = pneg %p104
      %p111 = scmp.eq.s32.totalorder %s17, 1
      %p112 = por %p110, %p111
      %p113 = scmp.ne.s32.totalorder %s105, %s108
      %p114 = scmp.eq.s32.totalorder %s17, 0
      %p115 = por %p113, %p114
      %p116 = scmp.ne.s32.totalorder %s105, %s108
      %p117 = scmp.eq.s32.totalorder %s22, 1
      %p118 = por %p116, %p117
      %p119 = scmp.ne.s32.totalorder %s108, %s109
      %p120 = scmp.eq.s32.totalorder %s22, 0
      %p121 = por %p119, %p120
      %p122 = scmp.ne.s32.totalorder %s108, %s109
      %p123 = scmp.eq.s32.totalorder %s23, 1
      %p124 = por %p122, %p123
      %p126 = scmp.ne.s32.totalorder %s109, %s125
      %p127 = scmp.eq.s32.totalorder %s23, 0
      %p128 = por %p126, %p127
      %s130 = sadd.s32 %s129, 1
      %p133 = scmp.eq.s32.totalorder %s17, 1
      %p134 = scmp.ne.s32.totalorder %s129, %s131
      %p135 = scmp.eq.s32.totalorder %s17, 0
      %p136 = por %p134, %p135
      %p137 = scmp.ne.s32.totalorder %s129, %s131
      %p138 = scmp.eq.s32.totalorder %s22, 1
      %p139 = por %p137, %p138
      %p140 = scmp.ne.s32.totalorder %s131, %s132
      %p141 = scmp.eq.s32.totalorder %s22, 0
      %p142 = por %p140, %p141
      %p143 = scmp.ne.s32.totalorder %s131, %s132
      %p144 = scmp.eq.s32.totalorder %s23, 1
      %p145 = por %p143, %p144
      %p147 = scmp.ne.s32.totalorder %s132, %s146
      %p148 = scmp.eq.s32.totalorder %s23, 0
      %p149 = por %p147, %p148
      %s151 = sadd.s32 %s150, 1
      %p154 = scmp.eq.s32.totalorder %s17, 1
      %p155 = scmp.ne.s32.totalorder %s150, %s152
      %p156 = scmp.eq.s32.totalorder %s17, 0
      %p157 = por %p155, %p156
      %p158 = scmp.ne.s32.totalorder %s150, %s152
      %p159 = scmp.eq.s32.totalorder %s22, 1
      %p160 = por %p158, %p159
      %p161 = scmp.ne.s32.totalorder %s152, %s153
      %p162 = scmp.eq.s32.totalorder %s22, 0
      %p163 = por %p161, %p162
      %p164 = scmp.ne.s32.totalorder %s152, %s153
      %p165 = scmp.eq.s32.totalorder %s23, 1
      %p166 = por %p164, %p165
      %p168 = scmp.ne.s32.totalorder %s153, %s167
      %p169 = scmp.eq.s32.totalorder %s23, 0
      %p170 = por %p168, %p169
      %s172 = sadd.s32 %s171, 1
      %p175 = scmp.eq.s32.totalorder %s17, 1
      %p176 = scmp.ne.s32.totalorder %s171, %s173
      %p177 = scmp.eq.s32.totalorder %s17, 0
      %p178 = por %p176, %p177
      %p179 = scmp.ne.s32.totalorder %s171, %s173
      %p180 = scmp.eq.s32.totalorder %s22, 1
      %p181 = por %p179, %p180
      %p182 = scmp.ne.s32.totalorder %s173, %s174
      %p183 = scmp.eq.s32.totalorder %s22, 0
      %p184 = por %p182, %p183
      %p185 = scmp.ne.s32.totalorder %s173, %s174
      %p186 = scmp.eq.s32.totalorder %s23, 1
      %p187 = por %p185, %p186
      %p189 = scmp.ne.s32.totalorder %s174, %s188
      %p190 = scmp.eq.s32.totalorder %s23, 0
      %p191 = por %p189, %p190
      %s192 = ssub.s32 %s17, %s24
      %p193 = scmp.eq.s32.totalorder %s192, 0
      %s195 = sadd.s32 %s194, 1
      %s196 = scalar_select %p193, %s194, %s195
      %p199 = pneg %p193
      %p200 = scmp.eq.s32.totalorder %s17, 1
      %p201 = por %p199, %p200
      %p202 = scmp.ne.s32.totalorder %s194, %s197
      %p203 = scmp.eq.s32.totalorder %s17, 0
      %p204 = por %p202, %p203
      %p205 = scmp.ne.s32.totalorder %s194, %s197
      %p206 = scmp.eq.s32.totalorder %s22, 1
      %p207 = por %p205, %p206
      %p208 = scmp.ne.s32.totalorder %s197, %s198
      %p209 = scmp.eq.s32.totalorder %s22, 0
      %p210 = por %p208, %p209
      %p211 = scmp.ne.s32.totalorder %s197, %s198
      %p212 = scmp.eq.s32.totalorder %s23, 1
      %p213 = por %p211, %p212
      %p215 = scmp.ne.s32.totalorder %s198, %s214
      %p216 = scmp.eq.s32.totalorder %s23, 0
      %p217 = por %p215, %p216
      %p218 = scmp.le.s32.totalorder 1, %s17
      %p219 = scmp.lt.s32.totalorder %s17, 3
      %p220 = pnand %p218, %p219
      %p221 = pneg %p220
      // Predicated region
      $region9: #{attention_with_fastkan.7} parent=5 // pred_check
        _
      $region10: #{attention_with_fastkan.7} parent=5 // pred_check_branch
        %223 = sbr.rel (%p220) target = $region12
      $region11: #{attention_with_fastkan.7} parent=5 // pred_region
        %s224 = ssub.s32 %s17, 1
        // Predicated region
        $region13: #{attention_with_fastkan.7} parent=11 // pred_check
          %p225 = pneg %p142
        $region14: #{attention_with_fastkan.7} parent=11 // pred_check_branch
          %227 = sbr.rel (%p225) target = $region16
        $region15: #{attention_with_fastkan.7} parent=11 // pred_region
          _
        $region16: #{attention_with_fastkan.7} parent=11 // pred_fallthru
          _
        // Predicated region
        $region17: #{attention_with_fastkan.7} parent=11 // pred_check
          %p228 = pneg %p163
        $region18: #{attention_with_fastkan.7} parent=11 // pred_check_branch
          %230 = sbr.rel (%p228) target = $region20
        $region19: #{attention_with_fastkan.7} parent=11 // pred_region
          _
        $region20: #{attention_with_fastkan.7} parent=11 // pred_fallthru
          _
        // Predicated region
        $region21: #{attention_with_fastkan.7} parent=11 // pred_check
          %p231 = pneg %p184
        $region22: #{attention_with_fastkan.7} parent=11 // pred_check_branch
          %233 = sbr.rel (%p231) target = $region24
        $region23: #{attention_with_fastkan.7} parent=11 // pred_region
          %235 = vsyncadd [#allocation4], 0
          %s236 = sshll.u32 %s6, 4
          %s237 = int_to_ptr.hbm [resolvable:$true] %s236
          %s238 = sshll.u32 [#allocation3], 4
          %s239 = int_to_ptr.vmem [resolvable:$true] %s238
          %244 = dma.hbm_to_vmem [thread:$0]  %s237, 2048, %s239, [#allocation4], 64, 64, 4
        $region24: #{attention_with_fastkan.7} parent=11 // pred_fallthru
          _
      $region12: #{attention_with_fastkan.7} parent=5 // pred_fallthru
        _
      %p245 = scmp.lt.s32.totalorder %s17, 2
      // Predicated region
      $region25: #{attention_with_fastkan.7} parent=5 // pred_check
        %p246 = pneg %p245
      $region26: #{attention_with_fastkan.7} parent=5 // pred_check_branch
        %248 = sbr.rel (%p246) target = $region28
      $region27: #{attention_with_fastkan.7} parent=5 // pred_region
        // Predicated region
        $region29: #{attention_with_fastkan.7} parent=27 // pred_check
          %p249 = pneg %p37
        $region30: #{attention_with_fastkan.7} parent=27 // pred_check_branch
          %251 = sbr.rel (%p249) target = $region32
        $region31: #{attention_with_fastkan.7} parent=27 // pred_region
          %p252 = scmp.lt.s32.totalorder %s17, 1
          %s253 = scalar_select %p252, %s17, 1
          %s254 = smul.addr %s253, 4
          %s255 = scalar_lea.vmem %s0, %s254
        $region32: #{attention_with_fastkan.7} parent=27 // pred_fallthru
          _
        // Predicated region
        $region33: #{attention_with_fastkan.7} parent=27 // pred_check
          %p256 = pneg %p63
        $region34: #{attention_with_fastkan.7} parent=27 // pred_check_branch
          %258 = sbr.rel (%p256) target = $region36
        $region35: #{attention_with_fastkan.7} parent=27 // pred_region
          %p259 = scmp.lt.s32.totalorder %s17, 1
          %s260 = scalar_select %p259, %s17, 1
          %s261 = smul.addr %s260, 4
          %s262 = scalar_lea.vmem %s1, %s261
        $region36: #{attention_with_fastkan.7} parent=27 // pred_fallthru
          _
        // Predicated region
        $region37: #{attention_with_fastkan.7} parent=27 // pred_check
          %p263 = pneg %p89
        $region38: #{attention_with_fastkan.7} parent=27 // pred_check_branch
          %265 = sbr.rel (%p263) target = $region40
        $region39: #{attention_with_fastkan.7} parent=27 // pred_region
          %p266 = scmp.lt.s32.totalorder %s17, 1
          %s267 = scalar_select %p266, %s17, 1
          %s268 = smul.addr %s267, 4
          %s269 = scalar_lea.vmem %s2, %s268
        $region40: #{attention_with_fastkan.7} parent=27 // pred_fallthru
          _
        // Predicated region
        $region41: #{attention_with_fastkan.7} parent=27 // pred_check
          %p270 = pneg %p115
        $region42: #{attention_with_fastkan.7} parent=27 // pred_check_branch
          %272 = sbr.rel (%p270) target = $region44
        $region43: #{attention_with_fastkan.7} parent=27 // pred_region
          %p273 = scmp.lt.s32.totalorder %s17, 1
          %s274 = scalar_select %p273, %s17, 1
          %s275 = smul.addr %s274, 4
          %s276 = scalar_lea.vmem %s3, %s275
        $region44: #{attention_with_fastkan.7} parent=27 // pred_fallthru
          _
      $region28: #{attention_with_fastkan.7} parent=5 // pred_fallthru
        _
      %p277 = scmp.le.s32.totalorder 1, %s17
      %p278 = scmp.lt.s32.totalorder %s17, 3
      %p279 = pnand %p277, %p278
      %p280 = pneg %p279
      // Predicated region
      $region45: #{attention_with_fastkan.7} parent=5 // pred_check
        _
      $region46: #{attention_with_fastkan.7} parent=5 // pred_check_branch
        %282 = sbr.rel (%p279) target = $region48
      $region47: #{attention_with_fastkan.7} parent=5 // pred_region
        %s283 = ssub.s32 %s17, 1
        // Predicated region
        $region49: #{attention_with_fastkan.7} parent=47 // pred_check
          %p284 = pneg %p184
        $region50: #{attention_with_fastkan.7} parent=47 // pred_check_branch
          %286 = sbr.rel (%p284) target = $region52
        $region51: #{attention_with_fastkan.7} parent=47 // pred_region
          %288 = dma.done [#allocation4], 2048
        $region52: #{attention_with_fastkan.7} parent=47 // pred_fallthru
          _
        %p289 = scmp.lt.s32.totalorder %s22, 1
        %s290 = scalar_select %p289, %s22, 1
        %s291 = smul.addr %s290, 4
        %s292 = scalar_lea.vmem %s0, %s291
        %p293 = pneg %p43
        %p294 = pneg %p40
        %p295 = scmp.lt.s32.totalorder %s22, 1
        %s296 = scalar_select %p295, %s22, 1
        %s297 = smul.addr %s296, 4
        %s298 = scalar_lea.vmem %s1, %s297
        %p299 = pneg %p69
        %p300 = pneg %p66
        %p301 = scmp.lt.s32.totalorder %s22, 1
        %s302 = scalar_select %p301, %s22, 1
        %s303 = smul.addr %s302, 4
        %s304 = scalar_lea.vmem %s2, %s303
        %p305 = pneg %p95
        %p306 = pneg %p92
        %p307 = scmp.lt.s32.totalorder %s22, 1
        %s308 = scalar_select %p307, %s22, 1
        %s309 = smul.addr %s308, 4
        %s310 = scalar_lea.vmem %s3, %s309
        %p311 = pneg %p121
        %p312 = pneg %p118
        %p313 = pneg %p142
        %p314 = pneg %p139
        %p315 = pneg %p163
        %p316 = pneg %p160
        %p317 = pneg %p184
        %p318 = pneg %p181
        %p319 = pneg %p210
        %p320 = pneg %p207
        %s321 = sand.u32 %s197, 1
        %s322 = scalar_lea.sflag [#allocation5], %s321
        %s323 = sand.u32 %s197, 1
        %s324 = smul.addr %s323, 8
        %s325 = scalar_lea.vmem [#allocation6], %s324
        %p326 = scmp.lt.s32.totalorder %s22, 1
        %s327 = scalar_select %p326, %s22, 1
        %s328 = smul.addr %s327, 4
        %s329 = scalar_lea.vmem %s0, %s328
        %p330 = scmp.lt.s32.totalorder %s22, 1
        %s331 = scalar_select %p330, %s22, 1
        %s332 = smul.addr %s331, 4
        %s333 = scalar_lea.vmem %s1, %s332
        %p334 = scmp.lt.s32.totalorder %s22, 1
        %s335 = scalar_select %p334, %s22, 1
        %s336 = smul.addr %s335, 4
        %s337 = scalar_lea.vmem %s2, %s336
        %p338 = scmp.lt.s32.totalorder %s22, 1
        %s339 = scalar_select %p338, %s22, 1
        %s340 = smul.addr %s339, 4
        %s341 = scalar_lea.vmem %s3, %s340
        %v343 = vld [vmem:[%s329] sm:$0xf]
        %v344 = vld [vmem:[%s333] sm:$0xf]
        %v345 = vld [vmem:[%s337] sm:$0xf]
        %vm346 = vcmask 64512
        %v348 = vsel %vm346, %v343, 0
        %v351 = vsel %vm346, %v344, 0
        %353 = vmatpush.bf16.xpose.msra.mxu0 0
        %354 = vmatpush.bf16.xpose.msra.mxu0 0
        %355 = vmatpush.bf16.xpose.msra.mxu0 0
        %356 = vmatpush.bf16.xpose.msra.mxu0 0
        %357 = vmatpush.bf16.xpose.msra.mxu0 0
        %358 = vmatpush.bf16.xpose.msra.mxu0 0
        %359 = vmatpush.bf16.xpose.msra.mxu0 0
        %360 = vmatpush.bf16.xpose.msra.mxu0 %v351
        %361 = vmatmul.bf16.gmra.mxu0 %v348
        %v362 = vpop.f32.mrf.mxu0
        %v363 = vadd.f32 0.0, %v362
        %v364 = vpop.f32.mrf.mxu0
        %365 = vdwg.mxu0
        %v366 = vsel %vm346, %v363, -inf
        %367 = vmax.xlane.f32.xlu0 %v366
        %v368 = vpop.xlane.xlu0 %367
        %v369 = vsub.f32 %v363, %v368
        %v370 = vmul.f32 %v369, 1.442695
        %v371 = vpow.pop %v370
        %v372 = vsel %vm346, %v371, 0.0
        %373 = vadd.xlane.f32.xlu0 %v372
        %v374 = vpop.xlane.xlu0 %373
        %v375 = vrcp.pop %v374
        %v376 = vpack.c.bf16 %v371, %v371
        %v378 = vsel %vm346, %v376, 0
        %vm380 = vcmask 1043456
        %v382 = vsel %vm380, %v345, 0
        %384 = vmatpush.bf16.msra.mxu0 0
        %385 = vmatpush.bf16.msra.mxu0 0
        %386 = vmatpush.bf16.msra.mxu0 0
        %387 = vmatpush.bf16.msra.mxu0 0
        %388 = vmatpush.bf16.msra.mxu0 0
        %389 = vmatpush.bf16.msra.mxu0 0
        %390 = vmatpush.bf16.msra.mxu0 0
        %391 = vmatpush.bf16.msra.mxu0 %v382
        %392 = vmatmul.bf16.gmra.mxu0 %v378
        %v393 = vpop.f32.mrf.mxu0
        %v394 = vadd.f32 0.0, %v393
        %v395 = vpop.f32.mrf.mxu0
        %396 = vdwg.mxu0
        %v397 = vmul.f32 %v394, %v375
        %398 = vst.msk [vmem:[#allocation2] sm:$0xff] %vm346, %v397
        %v400 = vunpack.c.l.b16 %v343
        %v401 = vpack.c.b16 %v400, %v400
        %402 = vrot.lane.b32.xlu0 %v401, 120
        %v403 = vpop.permute.xlu0 %402
        %v405 = vunpack.c.l.b16 %v344
        %v406 = vpack.c.b16 %v405, %v405
        %407 = vrot.lane.b32.xlu0 %v406, 120
        %v408 = vpop.permute.xlu0 %407
        %v410 = vsel %vm346, %v403, 0
        %v413 = vsel %vm346, %v408, 0
        %415 = vmatpush.bf16.xpose.msra.mxu0 0
        %416 = vmatpush.bf16.xpose.msra.mxu0 0
        %417 = vmatpush.bf16.xpose.msra.mxu0 0
        %418 = vmatpush.bf16.xpose.msra.mxu0 0
        %419 = vmatpush.bf16.xpose.msra.mxu0 0
        %420 = vmatpush.bf16.xpose.msra.mxu0 0
        %421 = vmatpush.bf16.xpose.msra.mxu0 0
        %422 = vmatpush.bf16.xpose.msra.mxu0 %v413
        %423 = vmatmul.bf16.gmra.mxu0 %v410
        %v424 = vpop.f32.mrf.mxu0
        %v425 = vadd.f32 0.0, %v424
        %v426 = vpop.f32.mrf.mxu0
        %427 = vdwg.mxu0
        %v428 = vsel %vm346, %v425, -inf
        %429 = vmax.xlane.f32.xlu0 %v428
        %v430 = vpop.xlane.xlu0 %429
        %v431 = vsub.f32 %v425, %v430
        %v432 = vmul.f32 %v431, 1.442695
        %v433 = vpow.pop %v432
        %v434 = vsel %vm346, %v433, 0.0
        %435 = vadd.xlane.f32.xlu0 %v434
        %v436 = vpop.xlane.xlu0 %435
        %v437 = vrcp.pop %v436
        %v438 = vpack.c.bf16 %v433, %v433
        %v440 = vunpack.c.l.b16 %v345
        %v441 = vpack.c.b16 %v440, %v440
        %442 = vrot.lane.b32.xlu0 %v441, 120
        %v443 = vpop.permute.xlu0 %442
        %v445 = vsel %vm346, %v438, 0
        %v448 = vsel %vm380, %v443, 0
        %450 = vmatpush.bf16.msra.mxu0 0
        %451 = vmatpush.bf16.msra.mxu0 0
        %452 = vmatpush.bf16.msra.mxu0 0
        %453 = vmatpush.bf16.msra.mxu0 0
        %454 = vmatpush.bf16.msra.mxu0 0
        %455 = vmatpush.bf16.msra.mxu0 0
        %456 = vmatpush.bf16.msra.mxu0 0
        %457 = vmatpush.bf16.msra.mxu0 %v448
        %458 = vmatmul.bf16.gmra.mxu0 %v445
        %v459 = vpop.f32.mrf.mxu0
        %v460 = vadd.f32 0.0, %v459
        %v461 = vpop.f32.mrf.mxu0
        %462 = vdwg.mxu0
        %v463 = vmul.f32 %v460, %v437
        %465 = vrot.lane.b32.xlu0 %v463, 8
        %v466 = vpop.permute.xlu0 %465
        %vm468 = vcmask 130112
        %469 = vst.msk [vmem:[#allocation2] sm:$0xff] %vm468, %v466
        %470 = vrot.lane.b32.xlu0 %v401, 112
        %v471 = vpop.permute.xlu0 %470
        %472 = vrot.lane.b32.xlu0 %v406, 112
        %v473 = vpop.permute.xlu0 %472
        %v475 = vsel %vm346, %v471, 0
        %v478 = vsel %vm346, %v473, 0
        %480 = vmatpush.bf16.xpose.msra.mxu0 0
        %481 = vmatpush.bf16.xpose.msra.mxu0 0
        %482 = vmatpush.bf16.xpose.msra.mxu0 0
        %483 = vmatpush.bf16.xpose.msra.mxu0 0
        %484 = vmatpush.bf16.xpose.msra.mxu0 0
        %485 = vmatpush.bf16.xpose.msra.mxu0 0
        %486 = vmatpush.bf16.xpose.msra.mxu0 0
        %487 = vmatpush.bf16.xpose.msra.mxu0 %v478
        %488 = vmatmul.bf16.gmra.mxu0 %v475
        %v489 = vpop.f32.mrf.mxu0
        %v490 = vadd.f32 0.0, %v489
        %v491 = vpop.f32.mrf.mxu0
        %492 = vdwg.mxu0
        %v493 = vsel %vm346, %v490, -inf
        %494 = vmax.xlane.f32.xlu0 %v493
        %v495 = vpop.xlane.xlu0 %494
        %v496 = vsub.f32 %v490, %v495
        %v497 = vmul.f32 %v496, 1.442695
        %v498 = vpow.pop %v497
        %v499 = vsel %vm346, %v498, 0.0
        %500 = vadd.xlane.f32.xlu0 %v499
        %v501 = vpop.xlane.xlu0 %500
        %v502 = vrcp.pop %v501
        %v503 = vpack.c.bf16 %v498, %v498
        %504 = vrot.lane.b32.xlu0 %v441, 112
        %v505 = vpop.permute.xlu0 %504
        %v507 = vsel %vm346, %v503, 0
        %v510 = vsel %vm380, %v505, 0
        %512 = vmatpush.bf16.msra.mxu0 0
        %513 = vmatpush.bf16.msra.mxu0 0
        %514 = vmatpush.bf16.msra.mxu0 0
        %515 = vmatpush.bf16.msra.mxu0 0
        %516 = vmatpush.bf16.msra.mxu0 0
        %517 = vmatpush.bf16.msra.mxu0 0
        %518 = vmatpush.bf16.msra.mxu0 0
        %519 = vmatpush.bf16.msra.mxu0 %v510
        %520 = vmatmul.bf16.gmra.mxu0 %v507
        %v521 = vpop.f32.mrf.mxu0
        %v522 = vadd.f32 0.0, %v521
        %v523 = vpop.f32.mrf.mxu0
        %524 = vdwg.mxu0
        %v525 = vmul.f32 %v522, %v502
        %527 = vrot.lane.b32.xlu0 %v525, 16
        %v528 = vpop.permute.xlu0 %527
        %vm530 = vcmask 195712
        %531 = vst.msk [vmem:[#allocation2] sm:$0xff] %vm530, %v528
        %532 = vrot.lane.b32.xlu0 %v401, 104
        %v533 = vpop.permute.xlu0 %532
        %534 = vrot.lane.b32.xlu0 %v406, 104
        %v535 = vpop.permute.xlu0 %534
        %v537 = vsel %vm346, %v533, 0
        %v540 = vsel %vm346, %v535, 0
        %542 = vmatpush.bf16.xpose.msra.mxu0 0
        %543 = vmatpush.bf16.xpose.msra.mxu0 0
        %544 = vmatpush.bf16.xpose.msra.mxu0 0
        %545 = vmatpush.bf16.xpose.msra.mxu0 0
        %546 = vmatpush.bf16.xpose.msra.mxu0 0
        %547 = vmatpush.bf16.xpose.msra.mxu0 0
        %548 = vmatpush.bf16.xpose.msra.mxu0 0
        %549 = vmatpush.bf16.xpose.msra.mxu0 %v540
        %550 = vmatmul.bf16.gmra.mxu0 %v537
        %v551 = vpop.f32.mrf.mxu0
        %v552 = vadd.f32 0.0, %v551
        %v553 = vpop.f32.mrf.mxu0
        %554 = vdwg.mxu0
        %v555 = vsel %vm346, %v552, -inf
        %556 = vmax.xlane.f32.xlu0 %v555
        %v557 = vpop.xlane.xlu0 %556
        %v558 = vsub.f32 %v552, %v557
        %v559 = vmul.f32 %v558, 1.442695
        %v560 = vpow.pop %v559
        %v561 = vsel %vm346, %v560, 0.0
        %562 = vadd.xlane.f32.xlu0 %v561
        %v563 = vpop.xlane.xlu0 %562
        %v564 = vrcp.pop %v563
        %v565 = vpack.c.bf16 %v560, %v560
        %566 = vrot.lane.b32.xlu0 %v441, 104
        %v567 = vpop.permute.xlu0 %566
        %v569 = vsel %vm346, %v565, 0
        %v572 = vsel %vm380, %v567, 0
        %574 = vmatpush.bf16.msra.mxu0 0
        %575 = vmatpush.bf16.msra.mxu0 0
        %576 = vmatpush.bf16.msra.mxu0 0
        %577 = vmatpush.bf16.msra.mxu0 0
        %578 = vmatpush.bf16.msra.mxu0 0
        %579 = vmatpush.bf16.msra.mxu0 0
        %580 = vmatpush.bf16.msra.mxu0 0
        %581 = vmatpush.bf16.msra.mxu0 %v572
        %582 = vmatmul.bf16.gmra.mxu0 %v569
        %v583 = vpop.f32.mrf.mxu0
        %v584 = vadd.f32 0.0, %v583
        %v585 = vpop.f32.mrf.mxu0
        %586 = vdwg.mxu0
        %v587 = vmul.f32 %v584, %v564
        %589 = vrot.lane.b32.xlu0 %v587, 24
        %v590 = vpop.permute.xlu0 %589
        %vm592 = vcmask 261312
        %593 = vst.msk [vmem:[#allocation2] sm:$0xff] %vm592, %v590
        %v594 = vld [vmem:[%s341] sm:$0xf]
        %v595 = vunpack.c.l.bf16 %v594
        %v596 = vxor.u32 %v595, 2147483648
        %v597 = vmul.f32 %v596, 1.442695
        %v598 = vpow.pop %v597
        %v599 = vadd.f32 %v598, 1.0
        %v600 = vrcp.pop %v599
        %v601 = vmul.f32 %v599, %v600
        %v602 = vsub.f32 1.0, %v601
        %v603 = vmul.f32 %v600, %v602
        %v604 = vadd.f32 %v600, %v603
        %vm605 = vweird.f32 %v599
        %vm606 = vweird.f32 %v600
        %vm607 = vmor %vm605, %vm606
        %v608 = vsel %vm607, %v600, %v604
        %v609 = vand.u32 2147483647, %v599
        %vm610 = vcmp.eq.f32.partialorder %v609, 8.507059e+37
        %v611 = vand.u32 %v599, 2147483648
        %v612 = vor.u32 1.1754944e-38, %v611
        %v613 = vsel %vm610, %v612, %v608
        %v614 = vmul.f32 1.0, %v613
        %v615 = vld [vmem:[#allocation2] sm:$0xff]
        %v616 = vmul.f32 %v614, %v615
        %vm617 = vcmask 261120
        %v618 = vsel %vm617, %v616, 0.0
        %619 = vadd.xlane.f32.xlu0 %v618
        %v620 = vpop.xlane.xlu0 %619
        %v621 = vrcp.pop 32.0
        %v622 = vmul.f32 32.0, %v621
        %v623 = vsub.f32 1.0, %v622
        %v624 = vmul.f32 %v621, %v623
        %v625 = vadd.f32 %v621, %v624
        %vm626 = vweird.f32 %v621
        %v627 = vsel %vm626, %v621, %v625
        %v628 = vmul.f32 %v620, %v627
        %v629 = vsub.f32 %v616, %v628
        %v630 = vmul.f32 %v629, %v629
        %v631 = vsel %vm617, %v630, 0.0
        %632 = vadd.xlane.f32.xlu0 %v631
        %v633 = vpop.xlane.xlu0 %632
        %v634 = vmul.f32 %v633, %v627
        %v635 = vadd.f32 %v634, 1e-05
        %v636 = vrsqrt.pop %v635
        %v637 = vmul.f32 %v636, %v635
        %v638 = vmul.f32 %v637, %v636
        %v639 = vmul.f32 0.5, %v638
        %v640 = vsub.f32 1.5, %v639
        %v641 = vmul.f32 %v636, %v640
        %vm642 = vweird.f32 %v635
        %vm643 = vweird.f32 %v636
        %vm644 = vmor %vm642, %vm643
        %v645 = vsel %vm644, %v636, %v641
        %v646 = vmul.f32 %v629, %v645
        %648 = vrot.lane.b32.xlu0 %v646, 32
        %v649 = vpop.permute.xlu0 %648
        %651 = vrot.lane.b32.xlu0 %v646, 64
        %v652 = vpop.permute.xlu0 %651
        %654 = vrot.lane.b32.xlu0 %v646, 96
        %v655 = vpop.permute.xlu0 %654
        %v657 = vsel %vm617, %v646, %v649
        %vm658 = vcmask 523264
        %v659 = vsel %vm658, %v657, %v652
        %vm660 = vcmask 785408
        %v661 = vsel %vm660, %v659, %v655
        %v662 = vld [vmem:[%s4] sm:$0x3]
        %v664 = vperm.slane %v662, 0
        %v665 = vperm.slane %v662, 1
        %v668 = vmul.f32 %v661, %v664
        %v669 = vmul.f32 %v661, %v665
        %v670 = vld [vmem:[%s5] sm:$0x3]
        %v672 = vperm.slane %v670, 0
        %v673 = vperm.slane %v670, 1
        %v676 = vadd.f32 %v668, %v672
        %v677 = vadd.f32 %v669, %v673
        %v678 = vpack.c.bf16 %v677, %v676
        %v679 = vunpack.c.l.bf16 %v678
        %v680 = vunpack.c.h.bf16 %v678
        %v681 = vmul.f32 %v679, %v679
        %v682 = vmul.f32 %v680, %v680
        %v683 = vpack.c.bf16 %v682, %v681
        %v684 = vunpack.c.l.bf16 %v683
        %v685 = vunpack.c.h.bf16 %v683
        %v686 = vsub.f32 0.0, %v684
        %v687 = vsub.f32 0.0, %v685
        %v688 = vpack.c.bf16 %v687, %v686
        %v689 = vunpack.c.l.bf16 %v688
        %v690 = vunpack.c.h.bf16 %v688
        %v691 = vmul.f32 %v689, 1.442695
        %v692 = vpow.pop %v691
        %v693 = vmul.f32 %v690, 1.442695
        %v694 = vpow.pop %v693
        %v695 = vpack.c.bf16 %v694, %v692
        %v696 = vld [vmem:[#allocation3] sm:$0xf]
        %v697 = vld [vmem:[#allocation3 + $0x4] sm:$0xf]
        %v698 = vld [vmem:[#allocation3 + $0x8] sm:$0xf]
        %v699 = vld [vmem:[#allocation3 + $0xc] sm:$0xf]
        %v700 = vld [vmem:[#allocation3 + $0x10] sm:$0xf]
        %v701 = vld [vmem:[#allocation3 + $0x14] sm:$0xf]
        %v702 = vld [vmem:[#allocation3 + $0x18] sm:$0xf]
        %v703 = vld [vmem:[#allocation3 + $0x1c] sm:$0xf]
        %v704 = vld [vmem:[#allocation3 + $0x20] sm:$0xf]
        %v705 = vld [vmem:[#allocation3 + $0x24] sm:$0xf]
        %v706 = vld [vmem:[#allocation3 + $0x28] sm:$0xf]
        %v707 = vld [vmem:[#allocation3 + $0x2c] sm:$0xf]
        %v708 = vld [vmem:[#allocation3 + $0x30] sm:$0xf]
        %v709 = vld [vmem:[#allocation3 + $0x34] sm:$0xf]
        %v710 = vld [vmem:[#allocation3 + $0x38] sm:$0xf]
        %v711 = vld [vmem:[#allocation3 + $0x3c] sm:$0xf]
        %v712 = vld [vmem:[#allocation3 + $0x40] sm:$0xf]
        %v713 = vld [vmem:[#allocation3 + $0x44] sm:$0xf]
        %v714 = vld [vmem:[#allocation3 + $0x48] sm:$0xf]
        %v715 = vld [vmem:[#allocation3 + $0x4c] sm:$0xf]
        %v716 = vld [vmem:[#allocation3 + $0x50] sm:$0xf]
        %v717 = vld [vmem:[#allocation3 + $0x54] sm:$0xf]
        %v718 = vld [vmem:[#allocation3 + $0x58] sm:$0xf]
        %v719 = vld [vmem:[#allocation3 + $0x5c] sm:$0xf]
        %v720 = vld [vmem:[#allocation3 + $0x60] sm:$0xf]
        %v721 = vld [vmem:[#allocation3 + $0x64] sm:$0xf]
        %v722 = vld [vmem:[#allocation3 + $0x68] sm:$0xf]
        %v723 = vld [vmem:[#allocation3 + $0x6c] sm:$0xf]
        %v724 = vld [vmem:[#allocation3 + $0x70] sm:$0xf]
        %v725 = vld [vmem:[#allocation3 + $0x74] sm:$0xf]
        %v726 = vld [vmem:[#allocation3 + $0x78] sm:$0xf]
        %v727 = vld [vmem:[#allocation3 + $0x7c] sm:$0xf]
        %v729 = vunpack.c.l.b16 %v695
        %v730 = vunpack.c.h.b16 %v695
        %v731 = vpack.c.b16 %v729, %v729
        %v732 = vpack.c.b16 %v730, %v730
        %v767 = vunpack.c.l.b16 %v696
        %v768 = vunpack.c.l.b16 %v697
        %v769 = vunpack.c.l.b16 %v698
        %v770 = vunpack.c.l.b16 %v699
        %v771 = vunpack.c.l.b16 %v700
        %v772 = vunpack.c.l.b16 %v701
        %v773 = vunpack.c.l.b16 %v702
        %v774 = vunpack.c.l.b16 %v703
        %v775 = vunpack.c.l.b16 %v704
        %v776 = vunpack.c.l.b16 %v705
        %v777 = vunpack.c.l.b16 %v706
        %v778 = vunpack.c.l.b16 %v707
        %v779 = vunpack.c.l.b16 %v708
        %v780 = vunpack.c.l.b16 %v709
        %v781 = vunpack.c.l.b16 %v710
        %v782 = vunpack.c.l.b16 %v711
        %v783 = vunpack.c.l.b16 %v712
        %v784 = vunpack.c.l.b16 %v713
        %v785 = vunpack.c.l.b16 %v714
        %v786 = vunpack.c.l.b16 %v715
        %v787 = vunpack.c.l.b16 %v716
        %v788 = vunpack.c.l.b16 %v717
        %v789 = vunpack.c.l.b16 %v718
        %v790 = vunpack.c.l.b16 %v719
        %v791 = vunpack.c.l.b16 %v720
        %v792 = vunpack.c.l.b16 %v721
        %v793 = vunpack.c.l.b16 %v722
        %v794 = vunpack.c.l.b16 %v723
        %v795 = vunpack.c.l.b16 %v724
        %v796 = vunpack.c.l.b16 %v725
        %v797 = vunpack.c.l.b16 %v726
        %v798 = vunpack.c.l.b16 %v727
        %v799 = vpack.c.b16 %v768, %v767
        %v800 = vpack.c.b16 %v770, %v769
        %v801 = vpack.c.b16 %v772, %v771
        %v802 = vpack.c.b16 %v774, %v773
        %v803 = vpack.c.b16 %v776, %v775
        %v804 = vpack.c.b16 %v778, %v777
        %v805 = vpack.c.b16 %v780, %v779
        %v806 = vpack.c.b16 %v782, %v781
        %v807 = vpack.c.b16 %v784, %v783
        %v808 = vpack.c.b16 %v786, %v785
        %v809 = vpack.c.b16 %v788, %v787
        %v810 = vpack.c.b16 %v790, %v789
        %v811 = vpack.c.b16 %v792, %v791
        %v812 = vpack.c.b16 %v794, %v793
        %v813 = vpack.c.b16 %v796, %v795
        %v814 = vpack.c.b16 %v798, %v797
        %831 = vmatpush.bf16.msra.mxu0 %v806
        %832 = vmatpush.bf16.msra.mxu0 %v805
        %833 = vmatpush.bf16.msra.mxu0 %v804
        %834 = vmatpush.bf16.msra.mxu0 %v803
        %835 = vmatpush.bf16.msra.mxu0 %v802
        %836 = vmatpush.bf16.msra.mxu0 %v801
        %837 = vmatpush.bf16.msra.mxu0 %v800
        %838 = vmatpush.bf16.msra.mxu0 %v799
        %839 = vmatmul.bf16.gmra.mxu0 %v731
        %v840 = vpop.f32.mrf.mxu0
        %v841 = vadd.f32 0.0, %v840
        %v842 = vpop.f32.mrf.mxu0
        %843 = vdwg.mxu0
        %844 = vmatpush.bf16.msra.mxu0 %v814
        %845 = vmatpush.bf16.msra.mxu0 %v813
        %846 = vmatpush.bf16.msra.mxu0 %v812
        %847 = vmatpush.bf16.msra.mxu0 %v811
        %848 = vmatpush.bf16.msra.mxu0 %v810
        %849 = vmatpush.bf16.msra.mxu0 %v809
        %850 = vmatpush.bf16.msra.mxu0 %v808
        %851 = vmatpush.bf16.msra.mxu0 %v807
        %852 = vmatmul.bf16.gmra.mxu0 %v732
        %v853 = vpop.f32.mrf.mxu0
        %v854 = vadd.f32 %v841, %v853
        %v855 = vpop.f32.mrf.mxu0
        %856 = vdwg.mxu0
        %857 = vst [vmem:[%s325] sm:$0xff] %v854
        %s858 = sand.u32 %s197, 1
        %s859 = scalar_lea.sflag [#allocation5], %s858
        %s860 = sand.u32 %s197, 1
        %s861 = smul.addr %s860, 8
        %s862 = scalar_lea.vmem [#allocation6], %s861
        // Predicated region
        $region53: #{attention_with_fastkan.7} parent=47 // pred_check
          %p863 = pneg %p207
        $region54: #{attention_with_fastkan.7} parent=47 // pred_check_branch
          %865 = sbr.rel (%p863) target = $region56
        $region55: #{attention_with_fastkan.7} parent=47 // pred_region
          %867 = vsyncadd %s859, 0
          %s868 = smul.addr %s22, 8
          %s869 = scalar_lea.hbm %s7, %s868
          %s871 = sshll.u32 %s862, 4
          %s872 = int_to_ptr.vmem [resolvable:$true] %s871
          %s873 = sshll.u32 %s869, 4
          %s874 = int_to_ptr.hbm [resolvable:$true] %s873
          %876 = dma.vmem_to_hbm [thread:$0]  %s872, 128, %s874, %s859
        $region56: #{attention_with_fastkan.7} parent=47 // pred_fallthru
          _
      $region48: #{attention_with_fastkan.7} parent=5 // pred_fallthru
        _
      %p877 = scmp.le.s32.totalorder 2, %s17
      // Predicated region
      $region57: #{attention_with_fastkan.7} parent=5 // pred_check
        %p878 = pneg %p877
      $region58: #{attention_with_fastkan.7} parent=5 // pred_check_branch
        %880 = sbr.rel (%p878) target = $region60
      $region59: #{attention_with_fastkan.7} parent=5 // pred_region
        %s881 = ssub.s32 %s17, 2
        // Predicated region
        $region61: #{attention_with_fastkan.7} parent=59 // pred_check
          %p882 = pneg %p213
        $region62: #{attention_with_fastkan.7} parent=59 // pred_check_branch
          %884 = sbr.rel (%p882) target = $region64
        $region63: #{attention_with_fastkan.7} parent=59 // pred_region
          %s885 = sand.u32 %s198, 1
          %s886 = scalar_lea.sflag [#allocation5], %s885
          %s887 = sand.u32 %s198, 1
          %s888 = smul.addr %s887, 8
          %s889 = scalar_lea.vmem [#allocation6], %s888
          %891 = dma.done %s886, 128
        $region64: #{attention_with_fastkan.7} parent=59 // pred_fallthru
          _
      $region60: #{attention_with_fastkan.7} parent=5 // pred_fallthru
        _
    $region6: #{attention_with_fastkan.7} parent=1 // loop_footer
      %s21 = sadd.s32 1, %s17
    $region7: #{attention_with_fastkan.7} parent=1 // loop_footer_branch
      %16 = sbr.rel target = $region3
    $region8: #{attention_with_fastkan.7} parent=1 // loop_exit
      _
    %892 = vsyncpa [#allocation4], 1
    %s893 = scalar_lea.sflag [#allocation4], 1
    %894 = vsyncpa %s893, 1
    %895 = vsyncpa [#allocation5], 1
    %s896 = scalar_lea.sflag [#allocation5], 1
    %897 = vsyncpa %s896, 1

</llo_original>
